<compile_context>
chip_gen: v7x
topology: tpu7x:2x2x1
jax: 0.10.0
libtpu: 0.0.40
codegen_flags: <defaults>
</compile_context>

<pallas_src>
import jax
import jax.numpy as jnp
from jax.experimental import pallas as pl
from jax.experimental.pallas import tpu as pltpu


def _round_up(x, m):
    return ((x + m - 1) // m) * m


# K-split threshold for the first GEMM: above this, whole-w1-resident plus the
# f32 x tile no longer fit comfortably in v7x's 64 MiB VMEM, so we chunk K.
_K_SPLIT_ABOVE = 4096
_K_TILE = 2048


def _choose_k_tiling(in_dim):
    """Returns (tile_k, padded in_dim, number of K grid steps)."""
    if in_dim <= _K_SPLIT_ABOVE:
        return in_dim, in_dim, 1
    in_dim_pad = _round_up(in_dim, _K_TILE)
    return _K_TILE, in_dim_pad, in_dim_pad // _K_TILE


def _choose_tile_b(batch, tile_b_max):
    """>=2 grid steps whenever B allows (v7x 2nd TC); 16-row multiples (bf16)."""
    half = _round_up(pl.cdiv(batch, 2), 16)
    return max(16, min(tile_b_max, half))


def _vae_encoder_kernel(x_ref,
                        w1_ref, b1_ref,
                        w2_ref, b2_ref,
                        w3_ref, b3_ref,
                        wh_ref, bh_ref,
                        out_ref, acc_ref):
    """One (batch-tile, K-chunk) step.

    Accumulates the first GEMM over the K grid axis into an f32 VMEM scratch;
    on the last K step runs bias+ReLU and the remaining fused GEMM chain.
    """
    k = pl.program_id(1)

    @pl.when(k == 0)
    def _():
        acc_ref[...] = jnp.zeros_like(acc_ref)

    # Cast f32 -> bf16 inside the kernel (input DMA'd at native dtype).
    x = x_ref[...].astype(jnp.bfloat16)                               # (TB, TK)
    acc_ref[...] += jnp.dot(x, w1_ref[...],
                            preferred_element_type=jnp.float32)       # (TB, 512) f32

    @pl.when(k == pl.num_programs(1) - 1)
    def _():
        h = jnp.maximum(acc_ref[...] + b1_ref[...], 0.0).astype(jnp.bfloat16)

        h = jnp.dot(h, w2_ref[...], preferred_element_type=jnp.float32) + b2_ref[...]
        h = jnp.maximum(h, 0.0).astype(jnp.bfloat16)                  # (TB, 256)

        h = jnp.dot(h, w3_ref[...], preferred_element_type=jnp.float32) + b3_ref[...]
        h = jnp.maximum(h, 0.0).astype(jnp.bfloat16)                  # (TB, 128) padded

        out_ref[...] = (jnp.dot(h, wh_ref[...], preferred_element_type=jnp.float32)
                        + bh_ref[...]).astype(out_ref.dtype)          # (TB, HEAD_PAD)


def init_params(key, in_dim, z_dim):
    """Deterministic synthetic init (uniform, PyTorch-Linear-like scaling), f32."""
    dims = [(in_dim, 512), (512, 256), (256, 100), (100, z_dim), (100, z_dim)]
    names = ["1", "2", "3", "m", "v"]
    params = {}
    for (fan_in, fan_out), name in zip(dims, names):
        key, kw, kb = jax.random.split(key, 3)
        bound = 1.0 / (fan_in ** 0.5)
        params[f"w{name}"] = jax.random.uniform(
            kw, (fan_in, fan_out), jnp.float32, -bound, bound)
        params[f"b{name}"] = jax.random.uniform(
            kb, (1, fan_out), jnp.float32, -bound, bound)
    return params


def prepare_params(params, z_dim):
    """Pack f32 params into padded, fused, bf16 kernel parameters."""
    in_dim = params["w1"].shape[0]
    _, in_dim_pad, _ = _choose_k_tiling(in_dim)   # zero-pad K if K-split active

    w1 = jnp.pad(params["w1"], ((0, in_dim_pad - in_dim), (0, 0))).astype(jnp.bfloat16)
    b1 = params["b1"].astype(jnp.float32)
    w2 = params["w2"].astype(jnp.bfloat16)
    b2 = params["b2"].astype(jnp.float32)

    h3 = params["w3"].shape[1]                      # 100
    h3_pad = _round_up(h3, 128)                     # 128
    w3 = jnp.pad(params["w3"], ((0, 0), (0, h3_pad - h3))).astype(jnp.bfloat16)
    b3 = jnp.pad(params["b3"], ((0, 0), (0, h3_pad - h3))).astype(jnp.float32)

    head_pad = _round_up(2 * z_dim, 128)            # 128 for z_dim=8
    wh = jnp.zeros((h3_pad, head_pad), jnp.float32)
    wh = wh.at[:h3, :z_dim].set(params["wm"])
    wh = wh.at[:h3, z_dim:2 * z_dim].set(params["wv"])
    wh = wh.astype(jnp.bfloat16)
    bh = jnp.zeros((1, head_pad), jnp.float32)
    bh = bh.at[:, :z_dim].set(params["bm"][0])
    bh = bh.at[:, z_dim:2 * z_dim].set(params["bv"][0])

    return dict(w1=w1, b1=b1, w2=w2, b2=b2, w3=w3, b3=b3, wh=wh, bh=bh)


def vae_encoder_forward(x_nchw, kparams, z_dim, tile_b_max=512,
                        out_dtype=jnp.float32):
    """Returns (mean [B, z_dim], logvar [B, z_dim]) as float32.

    out_dtype=jnp.bfloat16 halves head writeback traffic (useful on v5e) at
    the cost of mean/logvar precision; default keeps f32 stores.
    """
    B = x_nchw.shape[0]
    x2d = x_nchw.reshape(B, -1).astype(jnp.float32)     # nn.Flatten on NCHW; f32 in
    in_dim = x2d.shape[1]

    w1, b1 = kparams["w1"], kparams["b1"]
    w2, b2 = kparams["w2"], kparams["b2"]
    w3, b3 = kparams["w3"], kparams["b3"]
    wh, bh = kparams["wh"], kparams["bh"]
    in_dim_pad, h1 = w1.shape
    h2, h3p = w2.shape[1], w3.shape[1]
    head_pad = wh.shape[1]

    tile_k, in_dim_pad2, nk = _choose_k_tiling(in_dim)
    assert in_dim_pad2 == in_dim_pad, "kparams were not prepared for this in_dim"

    tile_b = _choose_tile_b(B, tile_b_max)
    n_tiles = pl.cdiv(B, tile_b)
    b_pad = n_tiles * tile_b
    if b_pad != B or in_dim_pad != in_dim:
        x2d = jnp.pad(x2d, ((0, b_pad - B), (0, in_dim_pad - in_dim)))

    out_itemsize = jnp.dtype(out_dtype).itemsize
    w1_bytes = int(w1.size) * w1.dtype.itemsize
    small_weight_bytes = sum(int(a.size) * a.dtype.itemsize
                             for a in (b1, w2, b2, w3, b3, wh, bh))

    flops = 2 * b_pad * (in_dim_pad * h1 + h1 * h2 + h2 * h3p + h3p * head_pad)
    bytes_accessed = (small_weight_bytes
                      + w1_bytes * (1 if nk == 1 else n_tiles)
                      + b_pad * in_dim_pad * 4            # f32 activations in
                      + b_pad * head_pad * out_itemsize)  # head out

    def launch(single_buffer_weights):
        wt_buf = 1 if single_buffer_weights else 2

        def resident(a):
            nd = a.ndim
            idx = lambda i, k: (0,) * nd
            if single_buffer_weights:
                # Constant index_map -> no point double-buffering; halves VMEM.
                return pl.BlockSpec(a.shape, idx, pipeline_mode=pl.Buffered(1))
            return pl.BlockSpec(a.shape, idx)

        if nk == 1:
            w1_spec = resident(w1)
            w1_vmem = wt_buf * w1_bytes
        else:
            # K-split: stream (tile_k, h1) chunks of w1, default double-buffered.
            w1_spec = pl.BlockSpec((tile_k, h1), lambda i, k: (k, 0))
            w1_vmem = 2 * tile_k * h1 * w1.dtype.itemsize

        vmem_bytes = (wt_buf * small_weight_bytes + w1_vmem
                      + 2 * tile_b * tile_k * 4            # f32 x tiles (2-deep)
                      + 2 * tile_b * head_pad * out_itemsize
                      + tile_b * h1 * 4                    # f32 accumulator scratch
                      + tile_b * (h1 + h2 + h3p) * 4       # intermediate activations
                      + (4 << 20))                         # headroom

        return pl.pallas_call(
            _vae_encoder_kernel,
            out_shape=jax.ShapeDtypeStruct((b_pad, head_pad), out_dtype),
            grid=(n_tiles, nk),
            in_specs=[pl.BlockSpec((tile_b, tile_k), lambda i, k: (i, k)),
                      w1_spec, resident(b1),
                      resident(w2), resident(b2),
                      resident(w3), resident(b3),
                      resident(wh), resident(bh)],
            out_specs=pl.BlockSpec((tile_b, head_pad), lambda i, k: (i, 0)),
            scratch_shapes=[pltpu.VMEM((tile_b, h1), jnp.float32)],
            compiler_params=pltpu.CompilerParams(
                dimension_semantics=("parallel", "arbitrary"),
                vmem_limit_bytes=int(vmem_bytes)),
            cost_estimate=pl.CostEstimate(
                flops=int(flops), transcendentals=0,
                bytes_accessed=int(bytes_accessed)),
        )(x2d, w1, b1, w2, b2, w3, b3, wh, bh)

    try:
        out_pad = launch(single_buffer_weights=True)
    except Exception:
        # Fallback if pipeline_mode=pl.Buffered(1) is unsupported in this JAX:
        # default 2-deep buffers with a VMEM budget that accounts for them.
        out_pad = launch(single_buffer_weights=False)

    out = out_pad[:B].astype(jnp.float32)
    return out[:, :z_dim], out[:, z_dim:2 * z_dim]


def reference_forward_matched(x_nchw, kparams, z_dim):
    """Pure-JAX reference with the identical bf16-weight / f32-accumulate recipe."""
    x = x_nchw.reshape(x_nchw.shape[0], -1).astype(jnp.bfloat16)
    kpad = kparams["w1"].shape[0] - x.shape[1]
    if kpad:
        x = jnp.pad(x, ((0, 0), (0, kpad)))

    def lin(h, w, b):
        return jnp.dot(h, w, preferred_element_type=jnp.float32) + b

    h = jnp.maximum(lin(x, kparams["w1"], kparams["b1"]), 0.0).astype(jnp.bfloat16)
    h = jnp.maximum(lin(h, kparams["w2"], kparams["b2"]), 0.0).astype(jnp.bfloat16)
    h = jnp.maximum(lin(h, kparams["w3"], kparams["b3"]), 0.0).astype(jnp.bfloat16)
    out = lin(h, kparams["wh"], kparams["bh"])
    return out[:, :z_dim], out[:, z_dim:2 * z_dim]


def reference_forward_f32(x_nchw, params, z_dim):
    """True f32 reference matching the PyTorch VaeEncoder forward exactly."""
    x = x_nchw.reshape(x_nchw.shape[0], -1)
    h = jax.nn.relu(x @ params["w1"] + params["b1"])
    h = jax.nn.relu(h @ params["w2"] + params["b2"])
    h = jax.nn.relu(h @ params["w3"] + params["b3"])
    return h @ params["wm"] + params["bm"], h @ params["wv"] + params["bv"]


if __name__ == "__main__":
    key = jax.random.PRNGKey(0)
    k_x, k_p = jax.random.split(key)

    # Small example shapes: [B=2, C=4, H=16, W=16] -> in_dim=1024, z_dim=8.
    B, C, H, W = 2, 4, 16, 16
    in_dim = C * H * W
    z_dim = 8

    x = jax.random.normal(k_x, (B, C, H, W), jnp.float32)
    params = init_params(k_p, in_dim, z_dim)
    kparams = prepare_params(params, z_dim)

    mean, logvar = vae_encoder_forward(x, kparams, z_dim)
    jax.block_until_ready((mean, logvar))
    assert mean.shape == (B, z_dim) and logvar.shape == (B, z_dim)

    # (1) Exact-recipe check: same bf16 weights / padding / f32 accumulation.
    mean_m, logvar_m = reference_forward_matched(x, kparams, z_dim)
    assert jnp.allclose(mean, mean_m, atol=1e-2, rtol=1e-2)
    assert jnp.allclose(logvar, logvar_m, atol=1e-2, rtol=1e-2)

    # (2) Check against the true f32 PyTorch-style forward (bounds bf16 error).
    mean_f, logvar_f = reference_forward_f32(x, params, z_dim)
    assert jnp.allclose(mean, mean_f, atol=5e-2, rtol=5e-2)
    assert jnp.allclose(logvar, logvar_f, atol=5e-2, rtol=5e-2)

    print("KERNEL_OK")
</pallas_src>

<mosaic_0001>
module attributes {stable_mosaic.version = 11 : i64} {
  func.func @_vae_encoder_kernel(%arg0: i32, %arg1: i32, %arg2: memref<16x1024xf32, #tpu.memory_space<vmem>>, %arg3: memref<1024x512xbf16, #tpu.memory_space<vmem>>, %arg4: memref<1x512xf32, #tpu.memory_space<vmem>>, %arg5: memref<512x256xbf16, #tpu.memory_space<vmem>>, %arg6: memref<1x256xf32, #tpu.memory_space<vmem>>, %arg7: memref<256x128xbf16, #tpu.memory_space<vmem>>, %arg8: memref<1x128xf32, #tpu.memory_space<vmem>>, %arg9: memref<128x128xbf16, #tpu.memory_space<vmem>>, %arg10: memref<1x128xf32, #tpu.memory_space<vmem>>, %arg11: memref<16x128xf32, #tpu.memory_space<vmem>>, %arg12: memref<16x512xf32, #tpu.memory_space<vmem>>) attributes {dimension_semantics = [#tpu.dimension_semantics<parallel>, #tpu.dimension_semantics<arbitrary>], iteration_bounds = array<i64: 1, 1>, scalar_prefetch = 0 : i64, scratch_operands = 1 : i64, tpu.core_type = #tpu.core_type<tc>, window_params = [{transform_indices = @transform_0, window_bounds = array<i64: 16, 1024>}, {pipeline_mode = #tpu.pipeline_mode<synchronous>, transform_indices = @transform_1, window_bounds = array<i64: 1024, 512>}, {pipeline_mode = #tpu.pipeline_mode<synchronous>, transform_indices = @transform_2, window_bounds = array<i64: 1, 512>}, {pipeline_mode = #tpu.pipeline_mode<synchronous>, transform_indices = @transform_3, window_bounds = array<i64: 512, 256>}, {pipeline_mode = #tpu.pipeline_mode<synchronous>, transform_indices = @transform_4, window_bounds = array<i64: 1, 256>}, {pipeline_mode = #tpu.pipeline_mode<synchronous>, transform_indices = @transform_5, window_bounds = array<i64: 256, 128>}, {pipeline_mode = #tpu.pipeline_mode<synchronous>, transform_indices = @transform_6, window_bounds = array<i64: 1, 128>}, {pipeline_mode = #tpu.pipeline_mode<synchronous>, transform_indices = @transform_7, window_bounds = array<i64: 128, 128>}, {pipeline_mode = #tpu.pipeline_mode<synchronous>, transform_indices = @transform_8, window_bounds = array<i64: 1, 128>}, {transform_indices = @transform_9, window_bounds = array<i64: 16, 128>}]} {
    %c0_i32 = arith.constant 0 : i32
    %0 = arith.cmpi eq, %arg1, %c0_i32 : i32
    %1 = arith.extui %0 : i1 to i32
    %c0_i32_0 = arith.constant 0 : i32
    %2 = arith.cmpi ne, %1, %c0_i32_0 : i32
    scf.if %2 {
      %cst_10 = arith.constant 0.000000e+00 : f32
      %13 = vector.broadcast %cst_10 : f32 to vector<16x512xf32>
      %c0_11 = arith.constant 0 : index
      %c0_12 = arith.constant 0 : index
      %14 = vector.load %arg12[%c0_11, %c0_12] : memref<16x512xf32, #tpu.memory_space<vmem>>, vector<16x512xf32>
      tpu.vector_store %arg12[%c0_11, %c0_12], %13 {strides = array<i32>} : memref<16x512xf32, #tpu.memory_space<vmem>>, vector<16x512xf32>,
    } else {
    }
    %c0 = arith.constant 0 : index
    %c0_1 = arith.constant 0 : index
    %3 = vector.load %arg2[%c0, %c0_1] : memref<16x1024xf32, #tpu.memory_space<vmem>>, vector<16x1024xf32>
    %4 = arith.truncf %3 : vector<16x1024xf32> to vector<16x1024xbf16>
    %c0_2 = arith.constant 0 : index
    %c0_3 = arith.constant 0 : index
    %5 = vector.load %arg12[%c0_2, %c0_3] : memref<16x512xf32, #tpu.memory_space<vmem>>, vector<16x512xf32>
    %c0_4 = arith.constant 0 : index
    %c0_5 = arith.constant 0 : index
    %6 = vector.load %arg3[%c0_4, %c0_5] : memref<1024x512xbf16, #tpu.memory_space<vmem>>, vector<1024x512xbf16>
    %cst = arith.constant dense<0.000000e+00> : vector<16x512xf32>
    %7 = tpu.matmul %4, %6, %cst {dimension_numbers = #tpu.dot_dimension_numbers<[1], [0], [0], [1], [0, 0, 1, 1], [], []>} : vector<16x1024xbf16>, vector<1024x512xbf16>, vector<16x512xf32> -> vector<16x512xf32>
    %8 = arith.addf %5, %7 : vector<16x512xf32>
    %c0_6 = arith.constant 0 : index
    %c0_7 = arith.constant 0 : index
    %9 = vector.load %arg12[%c0_6, %c0_7] : memref<16x512xf32, #tpu.memory_space<vmem>>, vector<16x512xf32>
    tpu.vector_store %arg12[%c0_6, %c0_7], %8 {strides = array<i32>} : memref<16x512xf32, #tpu.memory_space<vmem>>, vector<16x512xf32>,
    %c0_i32_8 = arith.constant 0 : i32
    %10 = arith.cmpi eq, %arg1, %c0_i32_8 : i32
    %11 = arith.extui %10 : i1 to i32
    %c0_i32_9 = arith.constant 0 : i32
    %12 = arith.cmpi ne, %11, %c0_i32_9 : i32
    scf.if %12 {
      %c0_10 = arith.constant 0 : index
      %c0_11 = arith.constant 0 : index
      %13 = vector.load %arg12[%c0_10, %c0_11] : memref<16x512xf32, #tpu.memory_space<vmem>>, vector<16x512xf32>
      %c0_12 = arith.constant 0 : index
      %c0_13 = arith.constant 0 : index
      %14 = vector.load %arg4[%c0_12, %c0_13] : memref<1x512xf32, #tpu.memory_space<vmem>>, vector<1x512xf32>
      %15 = vector.broadcast %14 : vector<1x512xf32> to vector<16x512xf32>
      %16 = arith.addf %13, %15 : vector<16x512xf32>
      %cst_14 = arith.constant 0.000000e+00 : f32
      %17 = vector.broadcast %cst_14 : f32 to vector<16x512xf32>
      %18 = arith.maximumf %16, %17 : vector<16x512xf32>
      %19 = arith.truncf %18 : vector<16x512xf32> to vector<16x512xbf16>
      %c0_15 = arith.constant 0 : index
      %c0_16 = arith.constant 0 : index
      %20 = vector.load %arg5[%c0_15, %c0_16] : memref<512x256xbf16, #tpu.memory_space<vmem>>, vector<512x256xbf16>
      %cst_17 = arith.constant dense<0.000000e+00> : vector<16x256xf32>
      %21 = tpu.matmul %19, %20, %cst_17 {dimension_numbers = #tpu.dot_dimension_numbers<[1], [0], [0], [1], [0, 0, 1, 1], [], []>} : vector<16x512xbf16>, vector<512x256xbf16>, vector<16x256xf32> -> vector<16x256xf32>
      %c0_18 = arith.constant 0 : index
      %c0_19 = arith.constant 0 : index
      %22 = vector.load %arg6[%c0_18, %c0_19] : memref<1x256xf32, #tpu.memory_space<vmem>>, vector<1x256xf32>
      %23 = vector.broadcast %22 : vector<1x256xf32> to vector<16x256xf32>
      %24 = arith.addf %21, %23 : vector<16x256xf32>
      %cst_20 = arith.constant 0.000000e+00 : f32
      %25 = vector.broadcast %cst_20 : f32 to vector<16x256xf32>
      %26 = arith.maximumf %24, %25 : vector<16x256xf32>
      %27 = arith.truncf %26 : vector<16x256xf32> to vector<16x256xbf16>
      %c0_21 = arith.constant 0 : index
      %c0_22 = arith.constant 0 : index
      %28 = vector.load %arg7[%c0_21, %c0_22] : memref<256x128xbf16, #tpu.memory_space<vmem>>, vector<256x128xbf16>
      %cst_23 = arith.constant dense<0.000000e+00> : vector<16x128xf32>
      %29 = tpu.matmul %27, %28, %cst_23 {dimension_numbers = #tpu.dot_dimension_numbers<[1], [0], [0], [1], [0, 0, 1, 1], [], []>} : vector<16x256xbf16>, vector<256x128xbf16>, vector<16x128xf32> -> vector<16x128xf32>
      %c0_24 = arith.constant 0 : index
      %c0_25 = arith.constant 0 : index
      %30 = vector.load %arg8[%c0_24, %c0_25] : memref<1x128xf32, #tpu.memory_space<vmem>>, vector<1x128xf32>
      %31 = vector.broadcast %30 : vector<1x128xf32> to vector<16x128xf32>
      %32 = arith.addf %29, %31 : vector<16x128xf32>
      %cst_26 = arith.constant 0.000000e+00 : f32
      %33 = vector.broadcast %cst_26 : f32 to vector<16x128xf32>
      %34 = arith.maximumf %32, %33 : vector<16x128xf32>
      %35 = arith.truncf %34 : vector<16x128xf32> to vector<16x128xbf16>
      %c0_27 = arith.constant 0 : index
      %c0_28 = arith.constant 0 : index
      %36 = vector.load %arg9[%c0_27, %c0_28] : memref<128x128xbf16, #tpu.memory_space<vmem>>, vector<128x128xbf16>
      %cst_29 = arith.constant dense<0.000000e+00> : vector<16x128xf32>
      %37 = tpu.matmul %35, %36, %cst_29 {dimension_numbers = #tpu.dot_dimension_numbers<[1], [0], [0], [1], [0, 0, 1, 1], [], []>} : vector<16x128xbf16>, vector<128x128xbf16>, vector<16x128xf32> -> vector<16x128xf32>
      %c0_30 = arith.constant 0 : index
      %c0_31 = arith.constant 0 : index
      %38 = vector.load %arg10[%c0_30, %c0_31] : memref<1x128xf32, #tpu.memory_space<vmem>>, vector<1x128xf32>
      %39 = vector.broadcast %38 : vector<1x128xf32> to vector<16x128xf32>
      %40 = arith.addf %37, %39 : vector<16x128xf32>
      %c0_32 = arith.constant 0 : index
      %c0_33 = arith.constant 0 : index
      %41 = vector.load %arg11[%c0_32, %c0_33] : memref<16x128xf32, #tpu.memory_space<vmem>>, vector<16x128xf32>
      tpu.vector_store %arg11[%c0_32, %c0_33], %40 {strides = array<i32>} : memref<16x128xf32, #tpu.memory_space<vmem>>, vector<16x128xf32>,
    } else {
    }
    return
  }
  func.func @transform_0(%arg0: i32, %arg1: i32) -> (i32, i32) {
    %c0_i32 = arith.constant 0 : i32
    return %arg0, %arg1 : i32, i32
  }
  func.func @transform_1(%arg0: i32, %arg1: i32) -> (i32, i32) {
    %c0_i32 = arith.constant 0 : i32
    %c0_i32_0 = arith.constant 0 : i32
    %c0_i32_1 = arith.constant 0 : i32
    return %c0_i32, %c0_i32_0 : i32, i32
  }
  func.func @transform_2(%arg0: i32, %arg1: i32) -> (i32, i32) {
    %c0_i32 = arith.constant 0 : i32
    %c0_i32_0 = arith.constant 0 : i32
    %c0_i32_1 = arith.constant 0 : i32
    return %c0_i32, %c0_i32_0 : i32, i32
  }
  func.func @transform_3(%arg0: i32, %arg1: i32) -> (i32, i32) {
    %c0_i32 = arith.constant 0 : i32
    %c0_i32_0 = arith.constant 0 : i32
    %c0_i32_1 = arith.constant 0 : i32
    return %c0_i32, %c0_i32_0 : i32, i32
  }
  func.func @transform_4(%arg0: i32, %arg1: i32) -> (i32, i32) {
    %c0_i32 = arith.constant 0 : i32
    %c0_i32_0 = arith.constant 0 : i32
    %c0_i32_1 = arith.constant 0 : i32
    return %c0_i32, %c0_i32_0 : i32, i32
  }
  func.func @transform_5(%arg0: i32, %arg1: i32) -> (i32, i32) {
    %c0_i32 = arith.constant 0 : i32
    %c0_i32_0 = arith.constant 0 : i32
    %c0_i32_1 = arith.constant 0 : i32
    return %c0_i32, %c0_i32_0 : i32, i32
  }
  func.func @transform_6(%arg0: i32, %arg1: i32) -> (i32, i32) {
    %c0_i32 = arith.constant 0 : i32
    %c0_i32_0 = arith.constant 0 : i32
    %c0_i32_1 = arith.constant 0 : i32
    return %c0_i32, %c0_i32_0 : i32, i32
  }
  func.func @transform_7(%arg0: i32, %arg1: i32) -> (i32, i32) {
    %c0_i32 = arith.constant 0 : i32
    %c0_i32_0 = arith.constant 0 : i32
    %c0_i32_1 = arith.constant 0 : i32
    return %c0_i32, %c0_i32_0 : i32, i32
  }
  func.func @transform_8(%arg0: i32, %arg1: i32) -> (i32, i32) {
    %c0_i32 = arith.constant 0 : i32
    %c0_i32_0 = arith.constant 0 : i32
    %c0_i32_1 = arith.constant 0 : i32
    return %c0_i32, %c0_i32_0 : i32, i32
  }
  func.func @transform_9(%arg0: i32, %arg1: i32) -> (i32, i32) {
    %c0_i32 = arith.constant 0 : i32
    %c0_i32_0 = arith.constant 0 : i32
    return %arg0, %c0_i32 : i32, i32
  }
}

module attributes {stable_mosaic.version = 11 : i64} {
  func.func @_vae_encoder_kernel(%arg0: i32, %arg1: i32, %arg2: memref<16x1024xf32, #tpu.memory_space<vmem>>, %arg3: memref<1024x512xbf16, #tpu.memory_space<vmem>>, %arg4: memref<1x512xf32, #tpu.memory_space<vmem>>, %arg5: memref<512x256xbf16, #tpu.memory_space<vmem>>, %arg6: memref<1x256xf32, #tpu.memory_space<vmem>>, %arg7: memref<256x128xbf16, #tpu.memory_space<vmem>>, %arg8: memref<1x128xf32, #tpu.memory_space<vmem>>, %arg9: memref<128x128xbf16, #tpu.memory_space<vmem>>, %arg10: memref<1x128xf32, #tpu.memory_space<vmem>>, %arg11: memref<16x128xf32, #tpu.memory_space<vmem>>, %arg12: memref<16x512xf32, #tpu.memory_space<vmem>>) attributes {dimension_semantics = [#tpu.dimension_semantics<parallel>, #tpu.dimension_semantics<arbitrary>], iteration_bounds = array<i64: 1, 1>, scalar_prefetch = 0 : i64, scratch_operands = 1 : i64, tpu.core_type = #tpu.core_type<tc>, window_params = [{transform_indices = @transform_0, window_bounds = array<i64: 16, 1024>}, {pipeline_mode = #tpu.pipeline_mode<synchronous>, transform_indices = @transform_1, window_bounds = array<i64: 1024, 512>}, {pipeline_mode = #tpu.pipeline_mode<synchronous>, transform_indices = @transform_2, window_bounds = array<i64: 1, 512>}, {pipeline_mode = #tpu.pipeline_mode<synchronous>, transform_indices = @transform_3, window_bounds = array<i64: 512, 256>}, {pipeline_mode = #tpu.pipeline_mode<synchronous>, transform_indices = @transform_4, window_bounds = array<i64: 1, 256>}, {pipeline_mode = #tpu.pipeline_mode<synchronous>, transform_indices = @transform_5, window_bounds = array<i64: 256, 128>}, {pipeline_mode = #tpu.pipeline_mode<synchronous>, transform_indices = @transform_6, window_bounds = array<i64: 1, 128>}, {pipeline_mode = #tpu.pipeline_mode<synchronous>, transform_indices = @transform_7, window_bounds = array<i64: 128, 128>}, {pipeline_mode = #tpu.pipeline_mode<synchronous>, transform_indices = @transform_8, window_bounds = array<i64: 1, 128>}, {transform_indices = @transform_9, window_bounds = array<i64: 16, 128>}]} {
    %c0_i32 = arith.constant 0 : i32
    %0 = arith.cmpi eq, %arg1, %c0_i32 : i32
    %1 = arith.extui %0 : i1 to i32
    %c0_i32_0 = arith.constant 0 : i32
    %2 = arith.cmpi ne, %1, %c0_i32_0 : i32
    scf.if %2 {
      %cst_10 = arith.constant 0.000000e+00 : f32
      %13 = vector.broadcast %cst_10 : f32 to vector<16x512xf32>
      %c0_11 = arith.constant 0 : index
      %c0_12 = arith.constant 0 : index
      %14 = vector.load %arg12[%c0_11, %c0_12] : memref<16x512xf32, #tpu.memory_space<vmem>>, vector<16x512xf32>
      tpu.vector_store %arg12[%c0_11, %c0_12], %13 {strides = array<i32>} : memref<16x512xf32, #tpu.memory_space<vmem>>, vector<16x512xf32>,
    } else {
    }
    %c0 = arith.constant 0 : index
    %c0_1 = arith.constant 0 : index
    %3 = vector.load %arg2[%c0, %c0_1] : memref<16x1024xf32, #tpu.memory_space<vmem>>, vector<16x1024xf32>
    %4 = arith.truncf %3 : vector<16x1024xf32> to vector<16x1024xbf16>
    %c0_2 = arith.constant 0 : index
    %c0_3 = arith.constant 0 : index
    %5 = vector.load %arg12[%c0_2, %c0_3] : memref<16x512xf32, #tpu.memory_space<vmem>>, vector<16x512xf32>
    %c0_4 = arith.constant 0 : index
    %c0_5 = arith.constant 0 : index
    %6 = vector.load %arg3[%c0_4, %c0_5] : memref<1024x512xbf16, #tpu.memory_space<vmem>>, vector<1024x512xbf16>
    %cst = arith.constant dense<0.000000e+00> : vector<16x512xf32>
    %7 = tpu.matmul %4, %6, %cst {dimension_numbers = #tpu.dot_dimension_numbers<[1], [0], [0], [1], [0, 0, 1, 1], [], []>} : vector<16x1024xbf16>, vector<1024x512xbf16>, vector<16x512xf32> -> vector<16x512xf32>
    %8 = arith.addf %5, %7 : vector<16x512xf32>
    %c0_6 = arith.constant 0 : index
    %c0_7 = arith.constant 0 : index
    %9 = vector.load %arg12[%c0_6, %c0_7] : memref<16x512xf32, #tpu.memory_space<vmem>>, vector<16x512xf32>
    tpu.vector_store %arg12[%c0_6, %c0_7], %8 {strides = array<i32>} : memref<16x512xf32, #tpu.memory_space<vmem>>, vector<16x512xf32>,
    %c0_i32_8 = arith.constant 0 : i32
    %10 = arith.cmpi eq, %arg1, %c0_i32_8 : i32
    %11 = arith.extui %10 : i1 to i32
    %c0_i32_9 = arith.constant 0 : i32
    %12 = arith.cmpi ne, %11, %c0_i32_9 : i32
    scf.if %12 {
      %c0_10 = arith.constant 0 : index
      %c0_11 = arith.constant 0 : index
      %13 = vector.load %arg12[%c0_10, %c0_11] : memref<16x512xf32, #tpu.memory_space<vmem>>, vector<16x512xf32>
      %c0_12 = arith.constant 0 : index
      %c0_13 = arith.constant 0 : index
      %14 = vector.load %arg4[%c0_12, %c0_13] : memref<1x512xf32, #tpu.memory_space<vmem>>, vector<1x512xf32>
      %15 = vector.broadcast %14 : vector<1x512xf32> to vector<16x512xf32>
      %16 = arith.addf %13, %15 : vector<16x512xf32>
      %cst_14 = arith.constant 0.000000e+00 : f32
      %17 = vector.broadcast %cst_14 : f32 to vector<16x512xf32>
      %18 = arith.maximumf %16, %17 : vector<16x512xf32>
      %19 = arith.truncf %18 : vector<16x512xf32> to vector<16x512xbf16>
      %c0_15 = arith.constant 0 : index
      %c0_16 = arith.constant 0 : index
      %20 = vector.load %arg5[%c0_15, %c0_16] : memref<512x256xbf16, #tpu.memory_space<vmem>>, vector<512x256xbf16>
      %cst_17 = arith.constant dense<0.000000e+00> : vector<16x256xf32>
      %21 = tpu.matmul %19, %20, %cst_17 {dimension_numbers = #tpu.dot_dimension_numbers<[1], [0], [0], [1], [0, 0, 1, 1], [], []>} : vector<16x512xbf16>, vector<512x256xbf16>, vector<16x256xf32> -> vector<16x256xf32>
      %c0_18 = arith.constant 0 : index
      %c0_19 = arith.constant 0 : index
      %22 = vector.load %arg6[%c0_18, %c0_19] : memref<1x256xf32, #tpu.memory_space<vmem>>, vector<1x256xf32>
      %23 = vector.broadcast %22 : vector<1x256xf32> to vector<16x256xf32>
      %24 = arith.addf %21, %23 : vector<16x256xf32>
      %cst_20 = arith.constant 0.000000e+00 : f32
      %25 = vector.broadcast %cst_20 : f32 to vector<16x256xf32>
      %26 = arith.maximumf %24, %25 : vector<16x256xf32>
      %27 = arith.truncf %26 : vector<16x256xf32> to vector<16x256xbf16>
      %c0_21 = arith.constant 0 : index
      %c0_22 = arith.constant 0 : index
      %28 = vector.load %arg7[%c0_21, %c0_22] : memref<256x128xbf16, #tpu.memory_space<vmem>>, vector<256x128xbf16>
      %cst_23 = arith.constant dense<0.000000e+00> : vector<16x128xf32>
      %29 = tpu.matmul %27, %28, %cst_23 {dimension_numbers = #tpu.dot_dimension_numbers<[1], [0], [0], [1], [0, 0, 1, 1], [], []>} : vector<16x256xbf16>, vector<256x128xbf16>, vector<16x128xf32> -> vector<16x128xf32>
      %c0_24 = arith.constant 0 : index
      %c0_25 = arith.constant 0 : index
      %30 = vector.load %arg8[%c0_24, %c0_25] : memref<1x128xf32, #tpu.memory_space<vmem>>, vector<1x128xf32>
      %31 = vector.broadcast %30 : vector<1x128xf32> to vector<16x128xf32>
      %32 = arith.addf %29, %31 : vector<16x128xf32>
      %cst_26 = arith.constant 0.000000e+00 : f32
      %33 = vector.broadcast %cst_26 : f32 to vector<16x128xf32>
      %34 = arith.maximumf %32, %33 : vector<16x128xf32>
      %35 = arith.truncf %34 : vector<16x128xf32> to vector<16x128xbf16>
      %c0_27 = arith.constant 0 : index
      %c0_28 = arith.constant 0 : index
      %36 = vector.load %arg9[%c0_27, %c0_28] : memref<128x128xbf16, #tpu.memory_space<vmem>>, vector<128x128xbf16>
      %cst_29 = arith.constant dense<0.000000e+00> : vector<16x128xf32>
      %37 = tpu.matmul %35, %36, %cst_29 {dimension_numbers = #tpu.dot_dimension_numbers<[1], [0], [0], [1], [0, 0, 1, 1], [], []>} : vector<16x128xbf16>, vector<128x128xbf16>, vector<16x128xf32> -> vector<16x128xf32>
      %c0_30 = arith.constant 0 : index
      %c0_31 = arith.constant 0 : index
      %38 = vector.load %arg10[%c0_30, %c0_31] : memref<1x128xf32, #tpu.memory_space<vmem>>, vector<1x128xf32>
      %39 = vector.broadcast %38 : vector<1x128xf32> to vector<16x128xf32>
      %40 = arith.addf %37, %39 : vector<16x128xf32>
      %c0_32 = arith.constant 0 : index
      %c0_33 = arith.constant 0 : index
      %41 = vector.load %arg11[%c0_32, %c0_33] : memref<16x128xf32, #tpu.memory_space<vmem>>, vector<16x128xf32>
      tpu.vector_store %arg11[%c0_32, %c0_33], %40 {strides = array<i32>} : memref<16x128xf32, #tpu.memory_space<vmem>>, vector<16x128xf32>,
    } else {
    }
    return
  }
  func.func @transform_0(%arg0: i32, %arg1: i32) -> (i32, i32) {
    %c0_i32 = arith.constant 0 : i32
    return %arg0, %arg1 : i32, i32
  }
  func.func @transform_1(%arg0: i32, %arg1: i32) -> (i32, i32) {
    %c0_i32 = arith.constant 0 : i32
    %c0_i32_0 = arith.constant 0 : i32
    %c0_i32_1 = arith.constant 0 : i32
    return %c0_i32, %c0_i32_0 : i32, i32
  }
  func.func @transform_2(%arg0: i32, %arg1: i32) -> (i32, i32) {
    %c0_i32 = arith.constant 0 : i32
    %c0_i32_0 = arith.constant 0 : i32
    %c0_i32_1 = arith.constant 0 : i32
    return %c0_i32, %c0_i32_0 : i32, i32
  }
  func.func @transform_3(%arg0: i32, %arg1: i32) -> (i32, i32) {
    %c0_i32 = arith.constant 0 : i32
    %c0_i32_0 = arith.constant 0 : i32
    %c0_i32_1 = arith.constant 0 : i32
    return %c0_i32, %c0_i32_0 : i32, i32
  }
  func.func @transform_4(%arg0: i32, %arg1: i32) -> (i32, i32) {
    %c0_i32 = arith.constant 0 : i32
    %c0_i32_0 = arith.constant 0 : i32
    %c0_i32_1 = arith.constant 0 : i32
    return %c0_i32, %c0_i32_0 : i32, i32
  }
  func.func @transform_5(%arg0: i32, %arg1: i32) -> (i32, i32) {
    %c0_i32 = arith.constant 0 : i32
    %c0_i32_0 = arith.constant 0 : i32
    %c0_i32_1 = arith.constant 0 : i32
    return %c0_i32, %c0_i32_0 : i32, i32
  }
  func.func @transform_6(%arg0: i32, %arg1: i32) -> (i32, i32) {
    %c0_i32 = arith.constant 0 : i32
    %c0_i32_0 = arith.constant 0 : i32
    %c0_i32_1 = arith.constant 0 : i32
    return %c0_i32, %c0_i32_0 : i32, i32
  }
  func.func @transform_7(%arg0: i32, %arg1: i32) -> (i32, i32) {
    %c0_i32 = arith.constant 0 : i32
    %c0_i32_0 = arith.constant 0 : i32
    %c0_i32_1 = arith.constant 0 : i32
    return %c0_i32, %c0_i32_0 : i32, i32
  }
  func.func @transform_8(%arg0: i32, %arg1: i32) -> (i32, i32) {
    %c0_i32 = arith.constant 0 : i32
    %c0_i32_0 = arith.constant 0 : i32
    %c0_i32_1 = arith.constant 0 : i32
    return %c0_i32, %c0_i32_0 : i32, i32
  }
  func.func @transform_9(%arg0: i32, %arg1: i32) -> (i32, i32) {
    %c0_i32 = arith.constant 0 : i32
    %c0_i32_0 = arith.constant 0 : i32
    return %arg0, %c0_i32 : i32, i32
  }
}

</mosaic_0001>

<llo_original>
// kernel: tpu_custom_call.1
$region0: #{tpu_custom_call.1}
  #allocation0 [shape = 'u32[]', space=smem, size = 0x4, offset = 0x4, fixed_abs, tag = 'smem constant byte address 0x4 - core index']
  #allocation1 [shape = 'u32[144,128]{1,0:T(1,128)}', space=vmem, size = 0x12000, scoped, tag = 'internal scratch']
  #allocation2 [shape = 'f32[16,512]{1,0:T(8,128)}', space=vmem, size = 0x8000, scoped, tag = 'scratch operand']
  %s0 = inlined_call_operand.hbm [shape: f32[16,1024], index: 0, kind: input, shape index: {}]
  %s1 = inlined_call_operand.hbm [shape: bf16[1024,512], index: 1, kind: input, shape index: {}]
  %s2 = inlined_call_operand.vmem [shape: f32[1,512], index: 2, kind: input, shape index: {}]
  %s3 = inlined_call_operand.hbm [shape: bf16[512,256], index: 3, kind: input, shape index: {}]
  %s4 = inlined_call_operand.vmem [shape: f32[1,256], index: 4, kind: input, shape index: {}]
  %s5 = inlined_call_operand.hbm [shape: bf16[256,128], index: 5, kind: input, shape index: {}]
  %s6 = inlined_call_operand.vmem [shape: f32[1,128], index: 6, kind: input, shape index: {}]
  %s7 = inlined_call_operand.hbm [shape: bf16[128,128], index: 7, kind: input, shape index: {}]
  %s8 = inlined_call_operand.vmem [shape: f32[1,128], index: 8, kind: input, shape index: {}]
  %s9 = inlined_call_operand.hbm [shape: f32[16,128], index: 9, kind: output, shape index: {}]
  %s10 = sld [smem:[#allocation0]]
  $region74: #{tpu_custom_call.1} parent=0
    _
  %s12 = ssub.s32 1, %s10
  %s13 = scalar_select 0, %s12, %s10
  $region1: #{tpu_custom_call.1} parent=0
    #allocation3 [shape = 'u8[65536]{0}', space=vmem, size = 0x10000, scoped, tag = 'input window, operand 0, single buffered']
    #allocation4 [shape = 's32[1]{0}', space=sflag, size = 0x4, scoped, tag = 'scoped memory for tpu_custom_call.1']
    #allocation5 [shape = 's32[1]{0}', space=sflag, size = 0x4, scoped, tag = 'scoped memory for tpu_custom_call.1']
    #allocation6 [shape = 'u8[1048576]{0}', space=vmem, size = 0x100000, scoped, tag = 'input window, operand 1, single buffered']
    #allocation7 [shape = 's32[1]{0}', space=sflag, size = 0x4, scoped, tag = 'scoped memory for tpu_custom_call.1']
    #allocation8 [shape = 'u8[262144]{0}', space=vmem, size = 0x40000, scoped, tag = 'input window, operand 3, single buffered']
    #allocation9 [shape = 'u8[65536]{0}', space=vmem, size = 0x10000, scoped, tag = 'input window, operand 5, single buffered']
    #allocation10 [shape = 's32[1]{0}', space=sflag, size = 0x4, scoped, tag = 'scoped memory for tpu_custom_call.1']
    #allocation11 [shape = 'u8[32768]{0}', space=vmem, size = 0x8000, scoped, tag = 'input window, operand 7, single buffered']
    #allocation12 [shape = 'u8[8192]{0}', space=vmem, size = 0x2000, scoped, tag = 'output window, operand 0, single buffered']
    %14 = vsyncpa [#allocation4], 0
    %15 = vsyncpa [#allocation7], 0
    %16 = vsyncpa [#allocation10], 0
    %17 = vsyncpa [#allocation5], 0
    // Predicated region
    $region2: #{tpu_custom_call.1} parent=1 // pred_check
      _
    $region3: #{tpu_custom_call.1} parent=1 // pred_check_branch
      %19 = sbr.rel (0) target = $region5
    $region4: #{tpu_custom_call.1} parent=1 // pred_region
      %s21 = ssub.s32 2048, 2048
      %22 = vsyncadd [#allocation4], %s21
      %s23 = sshll.u32 [#allocation3], 4
      %s24 = int_to_ptr.vmem [resolvable:$true] %s23
      %29 = dma.hbm_to_vmem [thread:$0]  %s0, 2048, %s24, [#allocation4], 1024, 1024, 64
    $region5: #{tpu_custom_call.1} parent=1 // pred_fallthru
      _
    // Predicated region
    $region6: #{tpu_custom_call.1} parent=1 // pred_check
      _
    $region7: #{tpu_custom_call.1} parent=1 // pred_check_branch
      %31 = sbr.rel (0) target = $region9
    $region8: #{tpu_custom_call.1} parent=1 // pred_region
      %s33 = ssub.s32 32768, 32768
      %34 = vsyncadd [#allocation7], %s33
      %s35 = sshll.u32 [#allocation6], 4
      %s36 = int_to_ptr.vmem [resolvable:$true] %s35
      %41 = dma.hbm_to_vmem [thread:$0]  %s1, 32768, %s36, [#allocation7], 256, 256, 16
    $region9: #{tpu_custom_call.1} parent=1 // pred_fallthru
      _
    // Predicated region
    $region10: #{tpu_custom_call.1} parent=1 // pred_check
      _
    $region11: #{tpu_custom_call.1} parent=1 // pred_check_branch
      %43 = sbr.rel (0) target = $region13
    $region12: #{tpu_custom_call.1} parent=1 // pred_region
      _
    $region13: #{tpu_custom_call.1} parent=1 // pred_fallthru
      _
    // Predicated region
    $region14: #{tpu_custom_call.1} parent=1 // pred_check
      _
    $region15: #{tpu_custom_call.1} parent=1 // pred_check_branch
      %45 = sbr.rel (0) target = $region17
    $region16: #{tpu_custom_call.1} parent=1 // pred_region
      %s47 = ssub.s32 8192, 8192
      %48 = vsyncadd [#allocation7], %s47
      %s49 = sshll.u32 [#allocation8], 4
      %s50 = int_to_ptr.vmem [resolvable:$true] %s49
      %55 = dma.hbm_to_vmem [thread:$0]  %s3, 8192, %s50, [#allocation7], 128, 128, 8
    $region17: #{tpu_custom_call.1} parent=1 // pred_fallthru
      _
    // Predicated region
    $region18: #{tpu_custom_call.1} parent=1 // pred_check
      _
    $region19: #{tpu_custom_call.1} parent=1 // pred_check_branch
      %57 = sbr.rel (0) target = $region21
    $region20: #{tpu_custom_call.1} parent=1 // pred_region
      _
    $region21: #{tpu_custom_call.1} parent=1 // pred_fallthru
      _
    // Predicated region
    $region22: #{tpu_custom_call.1} parent=1 // pred_check
      _
    $region23: #{tpu_custom_call.1} parent=1 // pred_check_branch
      %59 = sbr.rel (0) target = $region25
    $region24: #{tpu_custom_call.1} parent=1 // pred_region
      %s61 = ssub.s32 2048, 2048
      %62 = vsyncadd [#allocation10], %s61
      %s63 = sshll.u32 [#allocation9], 4
      %s64 = int_to_ptr.vmem [resolvable:$true] %s63
      %69 = dma.hbm_to_vmem [thread:$0]  %s5, 2048, %s64, [#allocation10], 64, 64, 4
    $region25: #{tpu_custom_call.1} parent=1 // pred_fallthru
      _
    // Predicated region
    $region26: #{tpu_custom_call.1} parent=1 // pred_check
      _
    $region27: #{tpu_custom_call.1} parent=1 // pred_check_branch
      %71 = sbr.rel (0) target = $region29
    $region28: #{tpu_custom_call.1} parent=1 // pred_region
      _
    $region29: #{tpu_custom_call.1} parent=1 // pred_fallthru
      _
    // Predicated region
    $region30: #{tpu_custom_call.1} parent=1 // pred_check
      _
    $region31: #{tpu_custom_call.1} parent=1 // pred_check_branch
      %73 = sbr.rel (0) target = $region33
    $region32: #{tpu_custom_call.1} parent=1 // pred_region
      %s75 = ssub.s32 1024, 1024
      %76 = vsyncadd [#allocation10], %s75
      %s77 = sshll.u32 [#allocation11], 4
      %s78 = int_to_ptr.vmem [resolvable:$true] %s77
      %83 = dma.hbm_to_vmem [thread:$0]  %s7, 1024, %s78, [#allocation10], 64, 64, 4
    $region33: #{tpu_custom_call.1} parent=1 // pred_fallthru
      _
    // Predicated region
    $region34: #{tpu_custom_call.1} parent=1 // pred_check
      _
    $region35: #{tpu_custom_call.1} parent=1 // pred_check_branch
      %85 = sbr.rel (0) target = $region37
    $region36: #{tpu_custom_call.1} parent=1 // pred_region
      _
    $region37: #{tpu_custom_call.1} parent=1 // pred_fallthru
      _
    // Predicated region
    $region38: #{tpu_custom_call.1} parent=1 // pred_check
      _
    $region39: #{tpu_custom_call.1} parent=1 // pred_check_branch
      %87 = sbr.rel (0) target = $region41
    $region40: #{tpu_custom_call.1} parent=1 // pred_region
      %88 = dma.done [#allocation4], 2048
    $region41: #{tpu_custom_call.1} parent=1 // pred_fallthru
      _
    // Predicated region
    $region42: #{tpu_custom_call.1} parent=1 // pred_check
      _
    $region43: #{tpu_custom_call.1} parent=1 // pred_check_branch
      %90 = sbr.rel (0) target = $region45
    $region44: #{tpu_custom_call.1} parent=1 // pred_region
      %91 = dma.done [#allocation7], 32768
    $region45: #{tpu_custom_call.1} parent=1 // pred_fallthru
      _
    // Predicated region
    $region46: #{tpu_custom_call.1} parent=1 // pred_check
      _
    $region47: #{tpu_custom_call.1} parent=1 // pred_check_branch
      %93 = sbr.rel (0) target = $region49
    $region48: #{tpu_custom_call.1} parent=1 // pred_region
      %94 = dma.done [#allocation7], 8192
    $region49: #{tpu_custom_call.1} parent=1 // pred_fallthru
      _
    // Predicated region
    $region50: #{tpu_custom_call.1} parent=1 // pred_check
      _
    $region51: #{tpu_custom_call.1} parent=1 // pred_check_branch
      %96 = sbr.rel (0) target = $region53
    $region52: #{tpu_custom_call.1} parent=1 // pred_region
      %97 = dma.done [#allocation10], 2048
    $region53: #{tpu_custom_call.1} parent=1 // pred_fallthru
      _
    // Predicated region
    $region54: #{tpu_custom_call.1} parent=1 // pred_check
      _
    $region55: #{tpu_custom_call.1} parent=1 // pred_check_branch
      %99 = sbr.rel (0) target = $region57
    $region56: #{tpu_custom_call.1} parent=1 // pred_region
      %100 = dma.done [#allocation10], 1024
    $region57: #{tpu_custom_call.1} parent=1 // pred_fallthru
      _
    %p102 = scmp.eq.s32.totalorder 0, 0
    // Predicated region
    $region58: #{tpu_custom_call.1} parent=1 // pred_check
      %p103 = pneg %p102
    $region59: #{tpu_custom_call.1} parent=1 // pred_check_branch
      %105 = sbr.rel (%p103) target = $region61
    $region60: #{tpu_custom_call.1} parent=1 // pred_region
      %106 = vst [vmem:[#allocation2] sm:$0xff] 0.0
      %107 = vst [vmem:[#allocation2 + $0x8] sm:$0xff] 0.0
      %108 = vst [vmem:[#allocation2 + $0x10] sm:$0xff] 0.0
      %109 = vst [vmem:[#allocation2 + $0x18] sm:$0xff] 0.0
      %110 = vst [vmem:[#allocation2 + $0x20] sm:$0xff] 0.0
      %111 = vst [vmem:[#allocation2 + $0x28] sm:$0xff] 0.0
      %112 = vst [vmem:[#allocation2 + $0x30] sm:$0xff] 0.0
      %113 = vst [vmem:[#allocation2 + $0x38] sm:$0xff] 0.0
    $region61: #{tpu_custom_call.1} parent=1 // pred_fallthru
      _
    %v114 = vld [vmem:[#allocation3] sm:$0xff]
    %v115 = vld [vmem:[#allocation3 + $0x8] sm:$0xff]
    %v116 = vld [vmem:[#allocation3 + $0x10] sm:$0xff]
    %v117 = vld [vmem:[#allocation3 + $0x18] sm:$0xff]
    %v118 = vld [vmem:[#allocation3 + $0x20] sm:$0xff]
    %v119 = vld [vmem:[#allocation3 + $0x28] sm:$0xff]
    %v120 = vld [vmem:[#allocation3 + $0x30] sm:$0xff]
    %v121 = vld [vmem:[#allocation3 + $0x38] sm:$0xff]
    %v122 = vld [vmem:[#allocation3 + $0x40] sm:$0xff]
    %v123 = vld [vmem:[#allocation3 + $0x48] sm:$0xff]
    %v124 = vld [vmem:[#allocation3 + $0x50] sm:$0xff]
    %v125 = vld [vmem:[#allocation3 + $0x58] sm:$0xff]
    %v126 = vld [vmem:[#allocation3 + $0x60] sm:$0xff]
    %v127 = vld [vmem:[#allocation3 + $0x68] sm:$0xff]
    %v128 = vld [vmem:[#allocation3 + $0x70] sm:$0xff]
    %v129 = vld [vmem:[#allocation3 + $0x78] sm:$0xff]
    %v130 = vpack.c.bf16 %v122, %v114
    %v131 = vpack.c.bf16 %v123, %v115
    %v132 = vpack.c.bf16 %v124, %v116
    %v133 = vpack.c.bf16 %v125, %v117
    %v134 = vpack.c.bf16 %v126, %v118
    %v135 = vpack.c.bf16 %v127, %v119
    %v136 = vpack.c.bf16 %v128, %v120
    %v137 = vpack.c.bf16 %v129, %v121
    %v138 = vld [vmem:[#allocation2] sm:$0xff]
    %v139 = vld [vmem:[#allocation2 + $0x8] sm:$0xff]
    %v140 = vld [vmem:[#allocation2 + $0x10] sm:$0xff]
    %v141 = vld [vmem:[#allocation2 + $0x18] sm:$0xff]
    %v142 = vld [vmem:[#allocation2 + $0x20] sm:$0xff]
    %v143 = vld [vmem:[#allocation2 + $0x28] sm:$0xff]
    %v144 = vld [vmem:[#allocation2 + $0x30] sm:$0xff]
    %v145 = vld [vmem:[#allocation2 + $0x38] sm:$0xff]
    %v146 = vld [vmem:[#allocation6] sm:$0xff]
    %v147 = vld [vmem:[#allocation6 + $0x8] sm:$0xff]
    %v148 = vld [vmem:[#allocation6 + $0x10] sm:$0xff]
    %v149 = vld [vmem:[#allocation6 + $0x18] sm:$0xff]
    %v150 = vld [vmem:[#allocation6 + $0x20] sm:$0xff]
    %v151 = vld [vmem:[#allocation6 + $0x28] sm:$0xff]
    %v152 = vld [vmem:[#allocation6 + $0x30] sm:$0xff]
    %v153 = vld [vmem:[#allocation6 + $0x38] sm:$0xff]
    %v154 = vld [vmem:[#allocation6 + $0x40] sm:$0xff]
    %v155 = vld [vmem:[#allocation6 + $0x48] sm:$0xff]
    %v156 = vld [vmem:[#allocation6 + $0x50] sm:$0xff]
    %v157 = vld [vmem:[#allocation6 + $0x58] sm:$0xff]
    %v158 = vld [vmem:[#allocation6 + $0x60] sm:$0xff]
    %v159 = vld [vmem:[#allocation6 + $0x68] sm:$0xff]
    %v160 = vld [vmem:[#allocation6 + $0x70] sm:$0xff]
    %v161 = vld [vmem:[#allocation6 + $0x78] sm:$0xff]
    %v162 = vld [vmem:[#allocation6 + $0x80] sm:$0xff]
    %v163 = vld [vmem:[#allocation6 + $0x88] sm:$0xff]
    %v164 = vld [vmem:[#allocation6 + $0x90] sm:$0xff]
    %v165 = vld [vmem:[#allocation6 + $0x98] sm:$0xff]
    %v166 = vld [vmem:[#allocation6 + $0xa0] sm:$0xff]
    %v167 = vld [vmem:[#allocation6 + $0xa8] sm:$0xff]
    %v168 = vld [vmem:[#allocation6 + $0xb0] sm:$0xff]
    %v169 = vld [vmem:[#allocation6 + $0xb8] sm:$0xff]
    %v170 = vld [vmem:[#allocation6 + $0xc0] sm:$0xff]
    %v171 = vld [vmem:[#allocation6 + $0xc8] sm:$0xff]
    %v172 = vld [vmem:[#allocation6 + $0xd0] sm:$0xff]
    %v173 = vld [vmem:[#allocation6 + $0xd8] sm:$0xff]
    %v174 = vld [vmem:[#allocation6 + $0xe0] sm:$0xff]
    %v175 = vld [vmem:[#allocation6 + $0xe8] sm:$0xff]
    %v176 = vld [vmem:[#allocation6 + $0xf0] sm:$0xff]
    %v177 = vld [vmem:[#allocation6 + $0xf8] sm:$0xff]
    %v178 = vld [vmem:[#allocation6 + $0x100] sm:$0xff]
    %v179 = vld [vmem:[#allocation6 + $0x108] sm:$0xff]
    %v180 = vld [vmem:[#allocation6 + $0x110] sm:$0xff]
    %v181 = vld [vmem:[#allocation6 + $0x118] sm:$0xff]
    %v182 = vld [vmem:[#allocation6 + $0x120] sm:$0xff]
    %v183 = vld [vmem:[#allocation6 + $0x128] sm:$0xff]
    %v184 = vld [vmem:[#allocation6 + $0x130] sm:$0xff]
    %v185 = vld [vmem:[#allocation6 + $0x138] sm:$0xff]
    %v186 = vld [vmem:[#allocation6 + $0x140] sm:$0xff]
    %v187 = vld [vmem:[#allocation6 + $0x148] sm:$0xff]
    %v188 = vld [vmem:[#allocation6 + $0x150] sm:$0xff]
    %v189 = vld [vmem:[#allocation6 + $0x158] sm:$0xff]
    %v190 = vld [vmem:[#allocation6 + $0x160] sm:$0xff]
    %v191 = vld [vmem:[#allocation6 + $0x168] sm:$0xff]
    %v192 = vld [vmem:[#allocation6 + $0x170] sm:$0xff]
    %v193 = vld [vmem:[#allocation6 + $0x178] sm:$0xff]
    %v194 = vld [vmem:[#allocation6 + $0x180] sm:$0xff]
    %v195 = vld [vmem:[#allocation6 + $0x188] sm:$0xff]
    %v196 = vld [vmem:[#allocation6 + $0x190] sm:$0xff]
    %v197 = vld [vmem:[#allocation6 + $0x198] sm:$0xff]
    %v198 = vld [vmem:[#allocation6 + $0x1a0] sm:$0xff]
    %v199 = vld [vmem:[#allocation6 + $0x1a8] sm:$0xff]
    %v200 = vld [vmem:[#allocation6 + $0x1b0] sm:$0xff]
    %v201 = vld [vmem:[#allocation6 + $0x1b8] sm:$0xff]
    %v202 = vld [vmem:[#allocation6 + $0x1c0] sm:$0xff]
    %v203 = vld [vmem:[#allocation6 + $0x1c8] sm:$0xff]
    %v204 = vld [vmem:[#allocation6 + $0x1d0] sm:$0xff]
    %v205 = vld [vmem:[#allocation6 + $0x1d8] sm:$0xff]
    %v206 = vld [vmem:[#allocation6 + $0x1e0] sm:$0xff]
    %v207 = vld [vmem:[#allocation6 + $0x1e8] sm:$0xff]
    %v208 = vld [vmem:[#allocation6 + $0x1f0] sm:$0xff]
    %v209 = vld [vmem:[#allocation6 + $0x1f8] sm:$0xff]
    %v210 = vld [vmem:[#allocation6 + $0x200] sm:$0xff]
    %v211 = vld [vmem:[#allocation6 + $0x208] sm:$0xff]
    %v212 = vld [vmem:[#allocation6 + $0x210] sm:$0xff]
    %v213 = vld [vmem:[#allocation6 + $0x218] sm:$0xff]
    %v214 = vld [vmem:[#allocation6 + $0x220] sm:$0xff]
    %v215 = vld [vmem:[#allocation6 + $0x228] sm:$0xff]
    %v216 = vld [vmem:[#allocation6 + $0x230] sm:$0xff]
    %v217 = vld [vmem:[#allocation6 + $0x238] sm:$0xff]
    %v218 = vld [vmem:[#allocation6 + $0x240] sm:$0xff]
    %v219 = vld [vmem:[#allocation6 + $0x248] sm:$0xff]
    %v220 = vld [vmem:[#allocation6 + $0x250] sm:$0xff]
    %v221 = vld [vmem:[#allocation6 + $0x258] sm:$0xff]
    %v222 = vld [vmem:[#allocation6 + $0x260] sm:$0xff]
    %v223 = vld [vmem:[#allocation6 + $0x268] sm:$0xff]
    %v224 = vld [vmem:[#allocation6 + $0x270] sm:$0xff]
    %v225 = vld [vmem:[#allocation6 + $0x278] sm:$0xff]
    %v226 = vld [vmem:[#allocation6 + $0x280] sm:$0xff]
    %v227 = vld [vmem:[#allocation6 + $0x288] sm:$0xff]
    %v228 = vld [vmem:[#allocation6 + $0x290] sm:$0xff]
    %v229 = vld [vmem:[#allocation6 + $0x298] sm:$0xff]
    %v230 = vld [vmem:[#allocation6 + $0x2a0] sm:$0xff]
    %v231 = vld [vmem:[#allocation6 + $0x2a8] sm:$0xff]
    %v232 = vld [vmem:[#allocation6 + $0x2b0] sm:$0xff]
    %v233 = vld [vmem:[#allocation6 + $0x2b8] sm:$0xff]
    %v234 = vld [vmem:[#allocation6 + $0x2c0] sm:$0xff]
    %v235 = vld [vmem:[#allocation6 + $0x2c8] sm:$0xff]
    %v236 = vld [vmem:[#allocation6 + $0x2d0] sm:$0xff]
    %v237 = vld [vmem:[#allocation6 + $0x2d8] sm:$0xff]
    %v238 = vld [vmem:[#allocation6 + $0x2e0] sm:$0xff]
    %v239 = vld [vmem:[#allocation6 + $0x2e8] sm:$0xff]
    %v240 = vld [vmem:[#allocation6 + $0x2f0] sm:$0xff]
    %v241 = vld [vmem:[#allocation6 + $0x2f8] sm:$0xff]
    %v242 = vld [vmem:[#allocation6 + $0x300] sm:$0xff]
    %v243 = vld [vmem:[#allocation6 + $0x308] sm:$0xff]
    %v244 = vld [vmem:[#allocation6 + $0x310] sm:$0xff]
    %v245 = vld [vmem:[#allocation6 + $0x318] sm:$0xff]
    %v246 = vld [vmem:[#allocation6 + $0x320] sm:$0xff]
    %v247 = vld [vmem:[#allocation6 + $0x328] sm:$0xff]
    %v248 = vld [vmem:[#allocation6 + $0x330] sm:$0xff]
    %v249 = vld [vmem:[#allocation6 + $0x338] sm:$0xff]
    %v250 = vld [vmem:[#allocation6 + $0x340] sm:$0xff]
    %v251 = vld [vmem:[#allocation6 + $0x348] sm:$0xff]
    %v252 = vld [vmem:[#allocation6 + $0x350] sm:$0xff]
    %v253 = vld [vmem:[#allocation6 + $0x358] sm:$0xff]
    %v254 = vld [vmem:[#allocation6 + $0x360] sm:$0xff]
    %v255 = vld [vmem:[#allocation6 + $0x368] sm:$0xff]
    %v256 = vld [vmem:[#allocation6 + $0x370] sm:$0xff]
    %v257 = vld [vmem:[#allocation6 + $0x378] sm:$0xff]
    %v258 = vld [vmem:[#allocation6 + $0x380] sm:$0xff]
    %v259 = vld [vmem:[#allocation6 + $0x388] sm:$0xff]
    %v260 = vld [vmem:[#allocation6 + $0x390] sm:$0xff]
    %v261 = vld [vmem:[#allocation6 + $0x398] sm:$0xff]
    %v262 = vld [vmem:[#allocation6 + $0x3a0] sm:$0xff]
    %v263 = vld [vmem:[#allocation6 + $0x3a8] sm:$0xff]
    %v264 = vld [vmem:[#allocation6 + $0x3b0] sm:$0xff]
    %v265 = vld [vmem:[#allocation6 + $0x3b8] sm:$0xff]
    %v266 = vld [vmem:[#allocation6 + $0x3c0] sm:$0xff]
    %v267 = vld [vmem:[#allocation6 + $0x3c8] sm:$0xff]
    %v268 = vld [vmem:[#allocation6 + $0x3d0] sm:$0xff]
    %v269 = vld [vmem:[#allocation6 + $0x3d8] sm:$0xff]
    %v270 = vld [vmem:[#allocation6 + $0x3e0] sm:$0xff]
    %v271 = vld [vmem:[#allocation6 + $0x3e8] sm:$0xff]
    %v272 = vld [vmem:[#allocation6 + $0x3f0] sm:$0xff]
    %v273 = vld [vmem:[#allocation6 + $0x3f8] sm:$0xff]
    %v274 = vld [vmem:[#allocation6 + $0x400] sm:$0xff]
    %v275 = vld [vmem:[#allocation6 + $0x408] sm:$0xff]
    %v276 = vld [vmem:[#allocation6 + $0x410] sm:$0xff]
    %v277 = vld [vmem:[#allocation6 + $0x418] sm:$0xff]
    %v278 = vld [vmem:[#allocation6 + $0x420] sm:$0xff]
    %v279 = vld [vmem:[#allocation6 + $0x428] sm:$0xff]
    %v280 = vld [vmem:[#allocation6 + $0x430] sm:$0xff]
    %v281 = vld [vmem:[#allocation6 + $0x438] sm:$0xff]
    %v282 = vld [vmem:[#allocation6 + $0x440] sm:$0xff]
    %v283 = vld [vmem:[#allocation6 + $0x448] sm:$0xff]
    %v284 = vld [vmem:[#allocation6 + $0x450] sm:$0xff]
    %v285 = vld [vmem:[#allocation6 + $0x458] sm:$0xff]
    %v286 = vld [vmem:[#allocation6 + $0x460] sm:$0xff]
    %v287 = vld [vmem:[#allocation6 + $0x468] sm:$0xff]
    %v288 = vld [vmem:[#allocation6 + $0x470] sm:$0xff]
    %v289 = vld [vmem:[#allocation6 + $0x478] sm:$0xff]
    %v290 = vld [vmem:[#allocation6 + $0x480] sm:$0xff]
    %v291 = vld [vmem:[#allocation6 + $0x488] sm:$0xff]
    %v292 = vld [vmem:[#allocation6 + $0x490] sm:$0xff]
    %v293 = vld [vmem:[#allocation6 + $0x498] sm:$0xff]
    %v294 = vld [vmem:[#allocation6 + $0x4a0] sm:$0xff]
    %v295 = vld [vmem:[#allocation6 + $0x4a8] sm:$0xff]
    %v296 = vld [vmem:[#allocation6 + $0x4b0] sm:$0xff]
    %v297 = vld [vmem:[#allocation6 + $0x4b8] sm:$0xff]
    %v298 = vld [vmem:[#allocation6 + $0x4c0] sm:$0xff]
    %v299 = vld [vmem:[#allocation6 + $0x4c8] sm:$0xff]
    %v300 = vld [vmem:[#allocation6 + $0x4d0] sm:$0xff]
    %v301 = vld [vmem:[#allocation6 + $0x4d8] sm:$0xff]
    %v302 = vld [vmem:[#allocation6 + $0x4e0] sm:$0xff]
    %v303 = vld [vmem:[#allocation6 + $0x4e8] sm:$0xff]
    %v304 = vld [vmem:[#allocation6 + $0x4f0] sm:$0xff]
    %v305 = vld [vmem:[#allocation6 + $0x4f8] sm:$0xff]
    %v306 = vld [vmem:[#allocation6 + $0x500] sm:$0xff]
    %v307 = vld [vmem:[#allocation6 + $0x508] sm:$0xff]
    %v308 = vld [vmem:[#allocation6 + $0x510] sm:$0xff]
    %v309 = vld [vmem:[#allocation6 + $0x518] sm:$0xff]
    %v310 = vld [vmem:[#allocation6 + $0x520] sm:$0xff]
    %v311 = vld [vmem:[#allocation6 + $0x528] sm:$0xff]
    %v312 = vld [vmem:[#allocation6 + $0x530] sm:$0xff]
    %v313 = vld [vmem:[#allocation6 + $0x538] sm:$0xff]
    %v314 = vld [vmem:[#allocation6 + $0x540] sm:$0xff]
    %v315 = vld [vmem:[#allocation6 + $0x548] sm:$0xff]
    %v316 = vld [vmem:[#allocation6 + $0x550] sm:$0xff]
    %v317 = vld [vmem:[#allocation6 + $0x558] sm:$0xff]
    %v318 = vld [vmem:[#allocation6 + $0x560] sm:$0xff]
    %v319 = vld [vmem:[#allocation6 + $0x568] sm:$0xff]
    %v320 = vld [vmem:[#allocation6 + $0x570] sm:$0xff]
    %v321 = vld [vmem:[#allocation6 + $0x578] sm:$0xff]
    %v322 = vld [vmem:[#allocation6 + $0x580] sm:$0xff]
    %v323 = vld [vmem:[#allocation6 + $0x588] sm:$0xff]
    %v324 = vld [vmem:[#allocation6 + $0x590] sm:$0xff]
    %v325 = vld [vmem:[#allocation6 + $0x598] sm:$0xff]
    %v326 = vld [vmem:[#allocation6 + $0x5a0] sm:$0xff]
    %v327 = vld [vmem:[#allocation6 + $0x5a8] sm:$0xff]
    %v328 = vld [vmem:[#allocation6 + $0x5b0] sm:$0xff]
    %v329 = vld [vmem:[#allocation6 + $0x5b8] sm:$0xff]
    %v330 = vld [vmem:[#allocation6 + $0x5c0] sm:$0xff]
    %v331 = vld [vmem:[#allocation6 + $0x5c8] sm:$0xff]
    %v332 = vld [vmem:[#allocation6 + $0x5d0] sm:$0xff]
    %v333 = vld [vmem:[#allocation6 + $0x5d8] sm:$0xff]
    %v334 = vld [vmem:[#allocation6 + $0x5e0] sm:$0xff]
    %v335 = vld [vmem:[#allocation6 + $0x5e8] sm:$0xff]
    %v336 = vld [vmem:[#allocation6 + $0x5f0] sm:$0xff]
    %v337 = vld [vmem:[#allocation6 + $0x5f8] sm:$0xff]
    %v338 = vld [vmem:[#allocation6 + $0x600] sm:$0xff]
    %v339 = vld [vmem:[#allocation6 + $0x608] sm:$0xff]
    %v340 = vld [vmem:[#allocation6 + $0x610] sm:$0xff]
    %v341 = vld [vmem:[#allocation6 + $0x618] sm:$0xff]
    %v342 = vld [vmem:[#allocation6 + $0x620] sm:$0xff]
    %v343 = vld [vmem:[#allocation6 + $0x628] sm:$0xff]
    %v344 = vld [vmem:[#allocation6 + $0x630] sm:$0xff]
    %v345 = vld [vmem:[#allocation6 + $0x638] sm:$0xff]
    %v346 = vld [vmem:[#allocation6 + $0x640] sm:$0xff]
    %v347 = vld [vmem:[#allocation6 + $0x648] sm:$0xff]
    %v348 = vld [vmem:[#allocation6 + $0x650] sm:$0xff]
    %v349 = vld [vmem:[#allocation6 + $0x658] sm:$0xff]
    %v350 = vld [vmem:[#allocation6 + $0x660] sm:$0xff]
    %v351 = vld [vmem:[#allocation6 + $0x668] sm:$0xff]
    %v352 = vld [vmem:[#allocation6 + $0x670] sm:$0xff]
    %v353 = vld [vmem:[#allocation6 + $0x678] sm:$0xff]
    %v354 = vld [vmem:[#allocation6 + $0x680] sm:$0xff]
    %v355 = vld [vmem:[#allocation6 + $0x688] sm:$0xff]
    %v356 = vld [vmem:[#allocation6 + $0x690] sm:$0xff]
    %v357 = vld [vmem:[#allocation6 + $0x698] sm:$0xff]
    %v358 = vld [vmem:[#allocation6 + $0x6a0] sm:$0xff]
    %v359 = vld [vmem:[#allocation6 + $0x6a8] sm:$0xff]
    %v360 = vld [vmem:[#allocation6 + $0x6b0] sm:$0xff]
    %v361 = vld [vmem:[#allocation6 + $0x6b8] sm:$0xff]
    %v362 = vld [vmem:[#allocation6 + $0x6c0] sm:$0xff]
    %v363 = vld [vmem:[#allocation6 + $0x6c8] sm:$0xff]
    %v364 = vld [vmem:[#allocation6 + $0x6d0] sm:$0xff]
    %v365 = vld [vmem:[#allocation6 + $0x6d8] sm:$0xff]
    %v366 = vld [vmem:[#allocation6 + $0x6e0] sm:$0xff]
    %v367 = vld [vmem:[#allocation6 + $0x6e8] sm:$0xff]
    %v368 = vld [vmem:[#allocation6 + $0x6f0] sm:$0xff]
    %v369 = vld [vmem:[#allocation6 + $0x6f8] sm:$0xff]
    %v370 = vld [vmem:[#allocation6 + $0x700] sm:$0xff]
    %v371 = vld [vmem:[#allocation6 + $0x708] sm:$0xff]
    %v372 = vld [vmem:[#allocation6 + $0x710] sm:$0xff]
    %v373 = vld [vmem:[#allocation6 + $0x718] sm:$0xff]
    %v374 = vld [vmem:[#allocation6 + $0x720] sm:$0xff]
    %v375 = vld [vmem:[#allocation6 + $0x728] sm:$0xff]
    %v376 = vld [vmem:[#allocation6 + $0x730] sm:$0xff]
    %v377 = vld [vmem:[#allocation6 + $0x738] sm:$0xff]
    %v378 = vld [vmem:[#allocation6 + $0x740] sm:$0xff]
    %v379 = vld [vmem:[#allocation6 + $0x748] sm:$0xff]
    %v380 = vld [vmem:[#allocation6 + $0x750] sm:$0xff]
    %v381 = vld [vmem:[#allocation6 + $0x758] sm:$0xff]
    %v382 = vld [vmem:[#allocation6 + $0x760] sm:$0xff]
    %v383 = vld [vmem:[#allocation6 + $0x768] sm:$0xff]
    %v384 = vld [vmem:[#allocation6 + $0x770] sm:$0xff]
    %v385 = vld [vmem:[#allocation6 + $0x778] sm:$0xff]
    %v386 = vld [vmem:[#allocation6 + $0x780] sm:$0xff]
    %v387 = vld [vmem:[#allocation6 + $0x788] sm:$0xff]
    %v388 = vld [vmem:[#allocation6 + $0x790] sm:$0xff]
    %v389 = vld [vmem:[#allocation6 + $0x798] sm:$0xff]
    %v390 = vld [vmem:[#allocation6 + $0x7a0] sm:$0xff]
    %v391 = vld [vmem:[#allocation6 + $0x7a8] sm:$0xff]
    %v392 = vld [vmem:[#allocation6 + $0x7b0] sm:$0xff]
    %v393 = vld [vmem:[#allocation6 + $0x7b8] sm:$0xff]
    %v394 = vld [vmem:[#allocation6 + $0x7c0] sm:$0xff]
    %v395 = vld [vmem:[#allocation6 + $0x7c8] sm:$0xff]
    %v396 = vld [vmem:[#allocation6 + $0x7d0] sm:$0xff]
    %v397 = vld [vmem:[#allocation6 + $0x7d8] sm:$0xff]
    %v398 = vld [vmem:[#allocation6 + $0x7e0] sm:$0xff]
    %v399 = vld [vmem:[#allocation6 + $0x7e8] sm:$0xff]
    %v400 = vld [vmem:[#allocation6 + $0x7f0] sm:$0xff]
    %v401 = vld [vmem:[#allocation6 + $0x7f8] sm:$0xff]
    %v658 = vunpack.c.l.b16 %v146
    %v659 = vunpack.c.h.b16 %v146
    %v660 = vunpack.c.l.b16 %v147
    %v661 = vunpack.c.h.b16 %v147
    %v662 = vunpack.c.l.b16 %v148
    %v663 = vunpack.c.h.b16 %v148
    %v664 = vunpack.c.l.b16 %v149
    %v665 = vunpack.c.h.b16 %v149
    %v666 = vunpack.c.l.b16 %v150
    %v667 = vunpack.c.h.b16 %v150
    %v668 = vunpack.c.l.b16 %v151
    %v669 = vunpack.c.h.b16 %v151
    %v670 = vunpack.c.l.b16 %v152
    %v671 = vunpack.c.h.b16 %v152
    %v672 = vunpack.c.l.b16 %v153
    %v673 = vunpack.c.h.b16 %v153
    %v674 = vunpack.c.l.b16 %v154
    %v675 = vunpack.c.h.b16 %v154
    %v676 = vunpack.c.l.b16 %v155
    %v677 = vunpack.c.h.b16 %v155
    %v678 = vunpack.c.l.b16 %v156
    %v679 = vunpack.c.h.b16 %v156
    %v680 = vunpack.c.l.b16 %v157
    %v681 = vunpack.c.h.b16 %v157
    %v682 = vunpack.c.l.b16 %v158
    %v683 = vunpack.c.h.b16 %v158
    %v684 = vunpack.c.l.b16 %v159
    %v685 = vunpack.c.h.b16 %v159
    %v686 = vunpack.c.l.b16 %v160
    %v687 = vunpack.c.h.b16 %v160
    %v688 = vunpack.c.l.b16 %v161
    %v689 = vunpack.c.h.b16 %v161
    %v690 = vunpack.c.l.b16 %v162
    %v691 = vunpack.c.h.b16 %v162
    %v692 = vunpack.c.l.b16 %v163
    %v693 = vunpack.c.h.b16 %v163
    %v694 = vunpack.c.l.b16 %v164
    %v695 = vunpack.c.h.b16 %v164
    %v696 = vunpack.c.l.b16 %v165
    %v697 = vunpack.c.h.b16 %v165
    %v698 = vunpack.c.l.b16 %v166
    %v699 = vunpack.c.h.b16 %v166
    %v700 = vunpack.c.l.b16 %v167
    %v701 = vunpack.c.h.b16 %v167
    %v702 = vunpack.c.l.b16 %v168
    %v703 = vunpack.c.h.b16 %v168
    %v704 = vunpack.c.l.b16 %v169
    %v705 = vunpack.c.h.b16 %v169
    %v706 = vunpack.c.l.b16 %v170
    %v707 = vunpack.c.h.b16 %v170
    %v708 = vunpack.c.l.b16 %v171
    %v709 = vunpack.c.h.b16 %v171
    %v710 = vunpack.c.l.b16 %v172
    %v711 = vunpack.c.h.b16 %v172
    %v712 = vunpack.c.l.b16 %v173
    %v713 = vunpack.c.h.b16 %v173
    %v714 = vunpack.c.l.b16 %v174
    %v715 = vunpack.c.h.b16 %v174
    %v716 = vunpack.c.l.b16 %v175
    %v717 = vunpack.c.h.b16 %v175
    %v718 = vunpack.c.l.b16 %v176
    %v719 = vunpack.c.h.b16 %v176
    %v720 = vunpack.c.l.b16 %v177
    %v721 = vunpack.c.h.b16 %v177
    %v722 = vunpack.c.l.b16 %v178
    %v723 = vunpack.c.h.b16 %v178
    %v724 = vunpack.c.l.b16 %v179
    %v725 = vunpack.c.h.b16 %v179
    %v726 = vunpack.c.l.b16 %v180
    %v727 = vunpack.c.h.b16 %v180
    %v728 = vunpack.c.l.b16 %v181
    %v729 = vunpack.c.h.b16 %v181
    %v730 = vunpack.c.l.b16 %v182
    %v731 = vunpack.c.h.b16 %v182
    %v732 = vunpack.c.l.b16 %v183
    %v733 = vunpack.c.h.b16 %v183
    %v734 = vunpack.c.l.b16 %v184
    %v735 = vunpack.c.h.b16 %v184
    %v736 = vunpack.c.l.b16 %v185
    %v737 = vunpack.c.h.b16 %v185
    %v738 = vunpack.c.l.b16 %v186
    %v739 = vunpack.c.h.b16 %v186
    %v740 = vunpack.c.l.b16 %v187
    %v741 = vunpack.c.h.b16 %v187
    %v742 = vunpack.c.l.b16 %v188
    %v743 = vunpack.c.h.b16 %v188
    %v744 = vunpack.c.l.b16 %v189
    %v745 = vunpack.c.h.b16 %v189
    %v746 = vunpack.c.l.b16 %v190
    %v747 = vunpack.c.h.b16 %v190
    %v748 = vunpack.c.l.b16 %v191
    %v749 = vunpack.c.h.b16 %v191
    %v750 = vunpack.c.l.b16 %v192
    %v751 = vunpack.c.h.b16 %v192
    %v752 = vunpack.c.l.b16 %v193
    %v753 = vunpack.c.h.b16 %v193
    %v754 = vunpack.c.l.b16 %v194
    %v755 = vunpack.c.h.b16 %v194
    %v756 = vunpack.c.l.b16 %v195
    %v757 = vunpack.c.h.b16 %v195
    %v758 = vunpack.c.l.b16 %v196
    %v759 = vunpack.c.h.b16 %v196
    %v760 = vunpack.c.l.b16 %v197
    %v761 = vunpack.c.h.b16 %v197
    %v762 = vunpack.c.l.b16 %v198
    %v763 = vunpack.c.h.b16 %v198
    %v764 = vunpack.c.l.b16 %v199
    %v765 = vunpack.c.h.b16 %v199
    %v766 = vunpack.c.l.b16 %v200
    %v767 = vunpack.c.h.b16 %v200
    %v768 = vunpack.c.l.b16 %v201
    %v769 = vunpack.c.h.b16 %v201
    %v770 = vunpack.c.l.b16 %v202
    %v771 = vunpack.c.h.b16 %v202
    %v772 = vunpack.c.l.b16 %v203
    %v773 = vunpack.c.h.b16 %v203
    %v774 = vunpack.c.l.b16 %v204
    %v775 = vunpack.c.h.b16 %v204
    %v776 = vunpack.c.l.b16 %v205
    %v777 = vunpack.c.h.b16 %v205
    %v778 = vunpack.c.l.b16 %v206
    %v779 = vunpack.c.h.b16 %v206
    %v780 = vunpack.c.l.b16 %v207
    %v781 = vunpack.c.h.b16 %v207
    %v782 = vunpack.c.l.b16 %v208
    %v783 = vunpack.c.h.b16 %v208
    %v784 = vunpack.c.l.b16 %v209
    %v785 = vunpack.c.h.b16 %v209
    %v786 = vunpack.c.l.b16 %v210
    %v787 = vunpack.c.h.b16 %v210
    %v788 = vunpack.c.l.b16 %v211
    %v789 = vunpack.c.h.b16 %v211
    %v790 = vunpack.c.l.b16 %v212
    %v791 = vunpack.c.h.b16 %v212
    %v792 = vunpack.c.l.b16 %v213
    %v793 = vunpack.c.h.b16 %v213
    %v794 = vunpack.c.l.b16 %v214
    %v795 = vunpack.c.h.b16 %v214
    %v796 = vunpack.c.l.b16 %v215
    %v797 = vunpack.c.h.b16 %v215
    %v798 = vunpack.c.l.b16 %v216
    %v799 = vunpack.c.h.b16 %v216
    %v800 = vunpack.c.l.b16 %v217
    %v801 = vunpack.c.h.b16 %v217
    %v802 = vunpack.c.l.b16 %v218
    %v803 = vunpack.c.h.b16 %v218
    %v804 = vunpack.c.l.b16 %v219
    %v805 = vunpack.c.h.b16 %v219
    %v806 = vunpack.c.l.b16 %v220
    %v807 = vunpack.c.h.b16 %v220
    %v808 = vunpack.c.l.b16 %v221
    %v809 = vunpack.c.h.b16 %v221
    %v810 = vunpack.c.l.b16 %v222
    %v811 = vunpack.c.h.b16 %v222
    %v812 = vunpack.c.l.b16 %v223
    %v813 = vunpack.c.h.b16 %v223
    %v814 = vunpack.c.l.b16 %v224
    %v815 = vunpack.c.h.b16 %v224
    %v816 = vunpack.c.l.b16 %v225
    %v817 = vunpack.c.h.b16 %v225
    %v818 = vunpack.c.l.b16 %v226
    %v819 = vunpack.c.h.b16 %v226
    %v820 = vunpack.c.l.b16 %v227
    %v821 = vunpack.c.h.b16 %v227
    %v822 = vunpack.c.l.b16 %v228
    %v823 = vunpack.c.h.b16 %v228
    %v824 = vunpack.c.l.b16 %v229
    %v825 = vunpack.c.h.b16 %v229
    %v826 = vunpack.c.l.b16 %v230
    %v827 = vunpack.c.h.b16 %v230
    %v828 = vunpack.c.l.b16 %v231
    %v829 = vunpack.c.h.b16 %v231
    %v830 = vunpack.c.l.b16 %v232
    %v831 = vunpack.c.h.b16 %v232
    %v832 = vunpack.c.l.b16 %v233
    %v833 = vunpack.c.h.b16 %v233
    %v834 = vunpack.c.l.b16 %v234
    %v835 = vunpack.c.h.b16 %v234
    %v836 = vunpack.c.l.b16 %v235
    %v837 = vunpack.c.h.b16 %v235
    %v838 = vunpack.c.l.b16 %v236
    %v839 = vunpack.c.h.b16 %v236
    %v840 = vunpack.c.l.b16 %v237
    %v841 = vunpack.c.h.b16 %v237
    %v842 = vunpack.c.l.b16 %v238
    %v843 = vunpack.c.h.b16 %v238
    %v844 = vunpack.c.l.b16 %v239
    %v845 = vunpack.c.h.b16 %v239
    %v846 = vunpack.c.l.b16 %v240
    %v847 = vunpack.c.h.b16 %v240
    %v848 = vunpack.c.l.b16 %v241
    %v849 = vunpack.c.h.b16 %v241
    %v850 = vunpack.c.l.b16 %v242
    %v851 = vunpack.c.h.b16 %v242
    %v852 = vunpack.c.l.b16 %v243
    %v853 = vunpack.c.h.b16 %v243
    %v854 = vunpack.c.l.b16 %v244
    %v855 = vunpack.c.h.b16 %v244
    %v856 = vunpack.c.l.b16 %v245
    %v857 = vunpack.c.h.b16 %v245
    %v858 = vunpack.c.l.b16 %v246
    %v859 = vunpack.c.h.b16 %v246
    %v860 = vunpack.c.l.b16 %v247
    %v861 = vunpack.c.h.b16 %v247
    %v862 = vunpack.c.l.b16 %v248
    %v863 = vunpack.c.h.b16 %v248
    %v864 = vunpack.c.l.b16 %v249
    %v865 = vunpack.c.h.b16 %v249
    %v866 = vunpack.c.l.b16 %v250
    %v867 = vunpack.c.h.b16 %v250
    %v868 = vunpack.c.l.b16 %v251
    %v869 = vunpack.c.h.b16 %v251
    %v870 = vunpack.c.l.b16 %v252
    %v871 = vunpack.c.h.b16 %v252
    %v872 = vunpack.c.l.b16 %v253
    %v873 = vunpack.c.h.b16 %v253
    %v874 = vunpack.c.l.b16 %v254
    %v875 = vunpack.c.h.b16 %v254
    %v876 = vunpack.c.l.b16 %v255
    %v877 = vunpack.c.h.b16 %v255
    %v878 = vunpack.c.l.b16 %v256
    %v879 = vunpack.c.h.b16 %v256
    %v880 = vunpack.c.l.b16 %v257
    %v881 = vunpack.c.h.b16 %v257
    %v882 = vunpack.c.l.b16 %v258
    %v883 = vunpack.c.h.b16 %v258
    %v884 = vunpack.c.l.b16 %v259
    %v885 = vunpack.c.h.b16 %v259
    %v886 = vunpack.c.l.b16 %v260
    %v887 = vunpack.c.h.b16 %v260
    %v888 = vunpack.c.l.b16 %v261
    %v889 = vunpack.c.h.b16 %v261
    %v890 = vunpack.c.l.b16 %v262
    %v891 = vunpack.c.h.b16 %v262
    %v892 = vunpack.c.l.b16 %v263
    %v893 = vunpack.c.h.b16 %v263
    %v894 = vunpack.c.l.b16 %v264
    %v895 = vunpack.c.h.b16 %v264
    %v896 = vunpack.c.l.b16 %v265
    %v897 = vunpack.c.h.b16 %v265
    %v898 = vunpack.c.l.b16 %v266
    %v899 = vunpack.c.h.b16 %v266
    %v900 = vunpack.c.l.b16 %v267
    %v901 = vunpack.c.h.b16 %v267
    %v902 = vunpack.c.l.b16 %v268
    %v903 = vunpack.c.h.b16 %v268
    %v904 = vunpack.c.l.b16 %v269
    %v905 = vunpack.c.h.b16 %v269
    %v906 = vunpack.c.l.b16 %v270
    %v907 = vunpack.c.h.b16 %v270
    %v908 = vunpack.c.l.b16 %v271
    %v909 = vunpack.c.h.b16 %v271
    %v910 = vunpack.c.l.b16 %v272
    %v911 = vunpack.c.h.b16 %v272
    %v912 = vunpack.c.l.b16 %v273
    %v913 = vunpack.c.h.b16 %v273
    %v914 = vunpack.c.l.b16 %v274
    %v915 = vunpack.c.h.b16 %v274
    %v916 = vunpack.c.l.b16 %v275
    %v917 = vunpack.c.h.b16 %v275
    %v918 = vunpack.c.l.b16 %v276
    %v919 = vunpack.c.h.b16 %v276
    %v920 = vunpack.c.l.b16 %v277
    %v921 = vunpack.c.h.b16 %v277
    %v922 = vunpack.c.l.b16 %v278
    %v923 = vunpack.c.h.b16 %v278
    %v924 = vunpack.c.l.b16 %v279
    %v925 = vunpack.c.h.b16 %v279
    %v926 = vunpack.c.l.b16 %v280
    %v927 = vunpack.c.h.b16 %v280
    %v928 = vunpack.c.l.b16 %v281
    %v929 = vunpack.c.h.b16 %v281
    %v930 = vunpack.c.l.b16 %v282
    %v931 = vunpack.c.h.b16 %v282
    %v932 = vunpack.c.l.b16 %v283
    %v933 = vunpack.c.h.b16 %v283
    %v934 = vunpack.c.l.b16 %v284
    %v935 = vunpack.c.h.b16 %v284
    %v936 = vunpack.c.l.b16 %v285
    %v937 = vunpack.c.h.b16 %v285
    %v938 = vunpack.c.l.b16 %v286
    %v939 = vunpack.c.h.b16 %v286
    %v940 = vunpack.c.l.b16 %v287
    %v941 = vunpack.c.h.b16 %v287
    %v942 = vunpack.c.l.b16 %v288
    %v943 = vunpack.c.h.b16 %v288
    %v944 = vunpack.c.l.b16 %v289
    %v945 = vunpack.c.h.b16 %v289
    %v946 = vunpack.c.l.b16 %v290
    %v947 = vunpack.c.h.b16 %v290
    %v948 = vunpack.c.l.b16 %v291
    %v949 = vunpack.c.h.b16 %v291
    %v950 = vunpack.c.l.b16 %v292
    %v951 = vunpack.c.h.b16 %v292
    %v952 = vunpack.c.l.b16 %v293
    %v953 = vunpack.c.h.b16 %v293
    %v954 = vunpack.c.l.b16 %v294
    %v955 = vunpack.c.h.b16 %v294
    %v956 = vunpack.c.l.b16 %v295
    %v957 = vunpack.c.h.b16 %v295
    %v958 = vunpack.c.l.b16 %v296
    %v959 = vunpack.c.h.b16 %v296
    %v960 = vunpack.c.l.b16 %v297
    %v961 = vunpack.c.h.b16 %v297
    %v962 = vunpack.c.l.b16 %v298
    %v963 = vunpack.c.h.b16 %v298
    %v964 = vunpack.c.l.b16 %v299
    %v965 = vunpack.c.h.b16 %v299
    %v966 = vunpack.c.l.b16 %v300
    %v967 = vunpack.c.h.b16 %v300
    %v968 = vunpack.c.l.b16 %v301
    %v969 = vunpack.c.h.b16 %v301
    %v970 = vunpack.c.l.b16 %v302
    %v971 = vunpack.c.h.b16 %v302
    %v972 = vunpack.c.l.b16 %v303
    %v973 = vunpack.c.h.b16 %v303
    %v974 = vunpack.c.l.b16 %v304
    %v975 = vunpack.c.h.b16 %v304
    %v976 = vunpack.c.l.b16 %v305
    %v977 = vunpack.c.h.b16 %v305
    %v978 = vunpack.c.l.b16 %v306
    %v979 = vunpack.c.h.b16 %v306
    %v980 = vunpack.c.l.b16 %v307
    %v981 = vunpack.c.h.b16 %v307
    %v982 = vunpack.c.l.b16 %v308
    %v983 = vunpack.c.h.b16 %v308
    %v984 = vunpack.c.l.b16 %v309
    %v985 = vunpack.c.h.b16 %v309
    %v986 = vunpack.c.l.b16 %v310
    %v987 = vunpack.c.h.b16 %v310
    %v988 = vunpack.c.l.b16 %v311
    %v989 = vunpack.c.h.b16 %v311
    %v990 = vunpack.c.l.b16 %v312
    %v991 = vunpack.c.h.b16 %v312
    %v992 = vunpack.c.l.b16 %v313
    %v993 = vunpack.c.h.b16 %v313
    %v994 = vunpack.c.l.b16 %v314
    %v995 = vunpack.c.h.b16 %v314
    %v996 = vunpack.c.l.b16 %v315
    %v997 = vunpack.c.h.b16 %v315
    %v998 = vunpack.c.l.b16 %v316
    %v999 = vunpack.c.h.b16 %v316
    %v1000 = vunpack.c.l.b16 %v317
    %v1001 = vunpack.c.h.b16 %v317
    %v1002 = vunpack.c.l.b16 %v318
    %v1003 = vunpack.c.h.b16 %v318
    %v1004 = vunpack.c.l.b16 %v319
    %v1005 = vunpack.c.h.b16 %v319
    %v1006 = vunpack.c.l.b16 %v320
    %v1007 = vunpack.c.h.b16 %v320
    %v1008 = vunpack.c.l.b16 %v321
    %v1009 = vunpack.c.h.b16 %v321
    %v1010 = vunpack.c.l.b16 %v322
    %v1011 = vunpack.c.h.b16 %v322
    %v1012 = vunpack.c.l.b16 %v323
    %v1013 = vunpack.c.h.b16 %v323
    %v1014 = vunpack.c.l.b16 %v324
    %v1015 = vunpack.c.h.b16 %v324
    %v1016 = vunpack.c.l.b16 %v325
    %v1017 = vunpack.c.h.b16 %v325
    %v1018 = vunpack.c.l.b16 %v326
    %v1019 = vunpack.c.h.b16 %v326
    %v1020 = vunpack.c.l.b16 %v327
    %v1021 = vunpack.c.h.b16 %v327
    %v1022 = vunpack.c.l.b16 %v328
    %v1023 = vunpack.c.h.b16 %v328
    %v1024 = vunpack.c.l.b16 %v329
    %v1025 = vunpack.c.h.b16 %v329
    %v1026 = vunpack.c.l.b16 %v330
    %v1027 = vunpack.c.h.b16 %v330
    %v1028 = vunpack.c.l.b16 %v331
    %v1029 = vunpack.c.h.b16 %v331
    %v1030 = vunpack.c.l.b16 %v332
    %v1031 = vunpack.c.h.b16 %v332
    %v1032 = vunpack.c.l.b16 %v333
    %v1033 = vunpack.c.h.b16 %v333
    %v1034 = vunpack.c.l.b16 %v334
    %v1035 = vunpack.c.h.b16 %v334
    %v1036 = vunpack.c.l.b16 %v335
    %v1037 = vunpack.c.h.b16 %v335
    %v1038 = vunpack.c.l.b16 %v336
    %v1039 = vunpack.c.h.b16 %v336
    %v1040 = vunpack.c.l.b16 %v337
    %v1041 = vunpack.c.h.b16 %v337
    %v1042 = vunpack.c.l.b16 %v338
    %v1043 = vunpack.c.h.b16 %v338
    %v1044 = vunpack.c.l.b16 %v339
    %v1045 = vunpack.c.h.b16 %v339
    %v1046 = vunpack.c.l.b16 %v340
    %v1047 = vunpack.c.h.b16 %v340
    %v1048 = vunpack.c.l.b16 %v341
    %v1049 = vunpack.c.h.b16 %v341
    %v1050 = vunpack.c.l.b16 %v342
    %v1051 = vunpack.c.h.b16 %v342
    %v1052 = vunpack.c.l.b16 %v343
    %v1053 = vunpack.c.h.b16 %v343
    %v1054 = vunpack.c.l.b16 %v344
    %v1055 = vunpack.c.h.b16 %v344
    %v1056 = vunpack.c.l.b16 %v345
    %v1057 = vunpack.c.h.b16 %v345
    %v1058 = vunpack.c.l.b16 %v346
    %v1059 = vunpack.c.h.b16 %v346
    %v1060 = vunpack.c.l.b16 %v347
    %v1061 = vunpack.c.h.b16 %v347
    %v1062 = vunpack.c.l.b16 %v348
    %v1063 = vunpack.c.h.b16 %v348
    %v1064 = vunpack.c.l.b16 %v349
    %v1065 = vunpack.c.h.b16 %v349
    %v1066 = vunpack.c.l.b16 %v350
    %v1067 = vunpack.c.h.b16 %v350
    %v1068 = vunpack.c.l.b16 %v351
    %v1069 = vunpack.c.h.b16 %v351
    %v1070 = vunpack.c.l.b16 %v352
    %v1071 = vunpack.c.h.b16 %v352
    %v1072 = vunpack.c.l.b16 %v353
    %v1073 = vunpack.c.h.b16 %v353
    %v1074 = vunpack.c.l.b16 %v354
    %v1075 = vunpack.c.h.b16 %v354
    %v1076 = vunpack.c.l.b16 %v355
    %v1077 = vunpack.c.h.b16 %v355
    %v1078 = vunpack.c.l.b16 %v356
    %v1079 = vunpack.c.h.b16 %v356
    %v1080 = vunpack.c.l.b16 %v357
    %v1081 = vunpack.c.h.b16 %v357
    %v1082 = vunpack.c.l.b16 %v358
    %v1083 = vunpack.c.h.b16 %v358
    %v1084 = vunpack.c.l.b16 %v359
    %v1085 = vunpack.c.h.b16 %v359
    %v1086 = vunpack.c.l.b16 %v360
    %v1087 = vunpack.c.h.b16 %v360
    %v1088 = vunpack.c.l.b16 %v361
    %v1089 = vunpack.c.h.b16 %v361
    %v1090 = vunpack.c.l.b16 %v362
    %v1091 = vunpack.c.h.b16 %v362
    %v1092 = vunpack.c.l.b16 %v363
    %v1093 = vunpack.c.h.b16 %v363
    %v1094 = vunpack.c.l.b16 %v364
    %v1095 = vunpack.c.h.b16 %v364
    %v1096 = vunpack.c.l.b16 %v365
    %v1097 = vunpack.c.h.b16 %v365
    %v1098 = vunpack.c.l.b16 %v366
    %v1099 = vunpack.c.h.b16 %v366
    %v1100 = vunpack.c.l.b16 %v367
    %v1101 = vunpack.c.h.b16 %v367
    %v1102 = vunpack.c.l.b16 %v368
    %v1103 = vunpack.c.h.b16 %v368
    %v1104 = vunpack.c.l.b16 %v369
    %v1105 = vunpack.c.h.b16 %v369
    %v1106 = vunpack.c.l.b16 %v370
    %v1107 = vunpack.c.h.b16 %v370
    %v1108 = vunpack.c.l.b16 %v371
    %v1109 = vunpack.c.h.b16 %v371
    %v1110 = vunpack.c.l.b16 %v372
    %v1111 = vunpack.c.h.b16 %v372
    %v1112 = vunpack.c.l.b16 %v373
    %v1113 = vunpack.c.h.b16 %v373
    %v1114 = vunpack.c.l.b16 %v374
    %v1115 = vunpack.c.h.b16 %v374
    %v1116 = vunpack.c.l.b16 %v375
    %v1117 = vunpack.c.h.b16 %v375
    %v1118 = vunpack.c.l.b16 %v376
    %v1119 = vunpack.c.h.b16 %v376
    %v1120 = vunpack.c.l.b16 %v377
    %v1121 = vunpack.c.h.b16 %v377
    %v1122 = vunpack.c.l.b16 %v378
    %v1123 = vunpack.c.h.b16 %v378
    %v1124 = vunpack.c.l.b16 %v379
    %v1125 = vunpack.c.h.b16 %v379
    %v1126 = vunpack.c.l.b16 %v380
    %v1127 = vunpack.c.h.b16 %v380
    %v1128 = vunpack.c.l.b16 %v381
    %v1129 = vunpack.c.h.b16 %v381
    %v1130 = vunpack.c.l.b16 %v382
    %v1131 = vunpack.c.h.b16 %v382
    %v1132 = vunpack.c.l.b16 %v383
    %v1133 = vunpack.c.h.b16 %v383
    %v1134 = vunpack.c.l.b16 %v384
    %v1135 = vunpack.c.h.b16 %v384
    %v1136 = vunpack.c.l.b16 %v385
    %v1137 = vunpack.c.h.b16 %v385
    %v1138 = vunpack.c.l.b16 %v386
    %v1139 = vunpack.c.h.b16 %v386
    %v1140 = vunpack.c.l.b16 %v387
    %v1141 = vunpack.c.h.b16 %v387
    %v1142 = vunpack.c.l.b16 %v388
    %v1143 = vunpack.c.h.b16 %v388
    %v1144 = vunpack.c.l.b16 %v389
    %v1145 = vunpack.c.h.b16 %v389
    %v1146 = vunpack.c.l.b16 %v390
    %v1147 = vunpack.c.h.b16 %v390
    %v1148 = vunpack.c.l.b16 %v391
    %v1149 = vunpack.c.h.b16 %v391
    %v1150 = vunpack.c.l.b16 %v392
    %v1151 = vunpack.c.h.b16 %v392
    %v1152 = vunpack.c.l.b16 %v393
    %v1153 = vunpack.c.h.b16 %v393
    %v1154 = vunpack.c.l.b16 %v394
    %v1155 = vunpack.c.h.b16 %v394
    %v1156 = vunpack.c.l.b16 %v395
    %v1157 = vunpack.c.h.b16 %v395
    %v1158 = vunpack.c.l.b16 %v396
    %v1159 = vunpack.c.h.b16 %v396
    %v1160 = vunpack.c.l.b16 %v397
    %v1161 = vunpack.c.h.b16 %v397
    %v1162 = vunpack.c.l.b16 %v398
    %v1163 = vunpack.c.h.b16 %v398
    %v1164 = vunpack.c.l.b16 %v399
    %v1165 = vunpack.c.h.b16 %v399
    %v1166 = vunpack.c.l.b16 %v400
    %v1167 = vunpack.c.h.b16 %v400
    %v1168 = vunpack.c.l.b16 %v401
    %v1169 = vunpack.c.h.b16 %v401
    %v1170 = vpack.c.b16 %v662, %v658
    %v1171 = vpack.c.b16 %v663, %v659
    %v1172 = vpack.c.b16 %v664, %v660
    %v1173 = vpack.c.b16 %v665, %v661
    %v1174 = vpack.c.b16 %v670, %v666
    %v1175 = vpack.c.b16 %v671, %v667
    %v1176 = vpack.c.b16 %v672, %v668
    %v1177 = vpack.c.b16 %v673, %v669
    %v1178 = vpack.c.b16 %v678, %v674
    %v1179 = vpack.c.b16 %v679, %v675
    %v1180 = vpack.c.b16 %v680, %v676
    %v1181 = vpack.c.b16 %v681, %v677
    %v1182 = vpack.c.b16 %v686, %v682
    %v1183 = vpack.c.b16 %v687, %v683
    %v1184 = vpack.c.b16 %v688, %v684
    %v1185 = vpack.c.b16 %v689, %v685
    %v1186 = vpack.c.b16 %v694, %v690
    %v1187 = vpack.c.b16 %v695, %v691
    %v1188 = vpack.c.b16 %v696, %v692
    %v1189 = vpack.c.b16 %v697, %v693
    %v1190 = vpack.c.b16 %v702, %v698
    %v1191 = vpack.c.b16 %v703, %v699
    %v1192 = vpack.c.b16 %v704, %v700
    %v1193 = vpack.c.b16 %v705, %v701
    %v1194 = vpack.c.b16 %v710, %v706
    %v1195 = vpack.c.b16 %v711, %v707
    %v1196 = vpack.c.b16 %v712, %v708
    %v1197 = vpack.c.b16 %v713, %v709
    %v1198 = vpack.c.b16 %v718, %v714
    %v1199 = vpack.c.b16 %v719, %v715
    %v1200 = vpack.c.b16 %v720, %v716
    %v1201 = vpack.c.b16 %v721, %v717
    %v1202 = vpack.c.b16 %v726, %v722
    %v1203 = vpack.c.b16 %v727, %v723
    %v1204 = vpack.c.b16 %v728, %v724
    %v1205 = vpack.c.b16 %v729, %v725
    %v1206 = vpack.c.b16 %v734, %v730
    %v1207 = vpack.c.b16 %v735, %v731
    %v1208 = vpack.c.b16 %v736, %v732
    %v1209 = vpack.c.b16 %v737, %v733
    %v1210 = vpack.c.b16 %v742, %v738
    %v1211 = vpack.c.b16 %v743, %v739
    %v1212 = vpack.c.b16 %v744, %v740
    %v1213 = vpack.c.b16 %v745, %v741
    %v1214 = vpack.c.b16 %v750, %v746
    %v1215 = vpack.c.b16 %v751, %v747
    %v1216 = vpack.c.b16 %v752, %v748
    %v1217 = vpack.c.b16 %v753, %v749
    %v1218 = vpack.c.b16 %v758, %v754
    %v1219 = vpack.c.b16 %v759, %v755
    %v1220 = vpack.c.b16 %v760, %v756
    %v1221 = vpack.c.b16 %v761, %v757
    %v1222 = vpack.c.b16 %v766, %v762
    %v1223 = vpack.c.b16 %v767, %v763
    %v1224 = vpack.c.b16 %v768, %v764
    %v1225 = vpack.c.b16 %v769, %v765
    %v1226 = vpack.c.b16 %v774, %v770
    %v1227 = vpack.c.b16 %v775, %v771
    %v1228 = vpack.c.b16 %v776, %v772
    %v1229 = vpack.c.b16 %v777, %v773
    %v1230 = vpack.c.b16 %v782, %v778
    %v1231 = vpack.c.b16 %v783, %v779
    %v1232 = vpack.c.b16 %v784, %v780
    %v1233 = vpack.c.b16 %v785, %v781
    %v1234 = vpack.c.b16 %v790, %v786
    %v1235 = vpack.c.b16 %v791, %v787
    %v1236 = vpack.c.b16 %v792, %v788
    %v1237 = vpack.c.b16 %v793, %v789
    %v1238 = vpack.c.b16 %v798, %v794
    %v1239 = vpack.c.b16 %v799, %v795
    %v1240 = vpack.c.b16 %v800, %v796
    %v1241 = vpack.c.b16 %v801, %v797
    %v1242 = vpack.c.b16 %v806, %v802
    %v1243 = vpack.c.b16 %v807, %v803
    %v1244 = vpack.c.b16 %v808, %v804
    %v1245 = vpack.c.b16 %v809, %v805
    %v1246 = vpack.c.b16 %v814, %v810
    %v1247 = vpack.c.b16 %v815, %v811
    %v1248 = vpack.c.b16 %v816, %v812
    %v1249 = vpack.c.b16 %v817, %v813
    %v1250 = vpack.c.b16 %v822, %v818
    %v1251 = vpack.c.b16 %v823, %v819
    %v1252 = vpack.c.b16 %v824, %v820
    %v1253 = vpack.c.b16 %v825, %v821
    %v1254 = vpack.c.b16 %v830, %v826
    %v1255 = vpack.c.b16 %v831, %v827
    %v1256 = vpack.c.b16 %v832, %v828
    %v1257 = vpack.c.b16 %v833, %v829
    %v1258 = vpack.c.b16 %v838, %v834
    %v1259 = vpack.c.b16 %v839, %v835
    %v1260 = vpack.c.b16 %v840, %v836
    %v1261 = vpack.c.b16 %v841, %v837
    %v1262 = vpack.c.b16 %v846, %v842
    %v1263 = vpack.c.b16 %v847, %v843
    %v1264 = vpack.c.b16 %v848, %v844
    %v1265 = vpack.c.b16 %v849, %v845
    %v1266 = vpack.c.b16 %v854, %v850
    %v1267 = vpack.c.b16 %v855, %v851
    %v1268 = vpack.c.b16 %v856, %v852
    %v1269 = vpack.c.b16 %v857, %v853
    %v1270 = vpack.c.b16 %v862, %v858
    %v1271 = vpack.c.b16 %v863, %v859
    %v1272 = vpack.c.b16 %v864, %v860
    %v1273 = vpack.c.b16 %v865, %v861
    %v1274 = vpack.c.b16 %v870, %v866
    %v1275 = vpack.c.b16 %v871, %v867
    %v1276 = vpack.c.b16 %v872, %v868
    %v1277 = vpack.c.b16 %v873, %v869
    %v1278 = vpack.c.b16 %v878, %v874
    %v1279 = vpack.c.b16 %v879, %v875
    %v1280 = vpack.c.b16 %v880, %v876
    %v1281 = vpack.c.b16 %v881, %v877
    %v1282 = vpack.c.b16 %v886, %v882
    %v1283 = vpack.c.b16 %v887, %v883
    %v1284 = vpack.c.b16 %v888, %v884
    %v1285 = vpack.c.b16 %v889, %v885
    %v1286 = vpack.c.b16 %v894, %v890
    %v1287 = vpack.c.b16 %v895, %v891
    %v1288 = vpack.c.b16 %v896, %v892
    %v1289 = vpack.c.b16 %v897, %v893
    %v1290 = vpack.c.b16 %v902, %v898
    %v1291 = vpack.c.b16 %v903, %v899
    %v1292 = vpack.c.b16 %v904, %v900
    %v1293 = vpack.c.b16 %v905, %v901
    %v1294 = vpack.c.b16 %v910, %v906
    %v1295 = vpack.c.b16 %v911, %v907
    %v1296 = vpack.c.b16 %v912, %v908
    %v1297 = vpack.c.b16 %v913, %v909
    %v1298 = vpack.c.b16 %v918, %v914
    %v1299 = vpack.c.b16 %v919, %v915
    %v1300 = vpack.c.b16 %v920, %v916
    %v1301 = vpack.c.b16 %v921, %v917
    %v1302 = vpack.c.b16 %v926, %v922
    %v1303 = vpack.c.b16 %v927, %v923
    %v1304 = vpack.c.b16 %v928, %v924
    %v1305 = vpack.c.b16 %v929, %v925
    %v1306 = vpack.c.b16 %v934, %v930
    %v1307 = vpack.c.b16 %v935, %v931
    %v1308 = vpack.c.b16 %v936, %v932
    %v1309 = vpack.c.b16 %v937, %v933
    %v1310 = vpack.c.b16 %v942, %v938
    %v1311 = vpack.c.b16 %v943, %v939
    %v1312 = vpack.c.b16 %v944, %v940
    %v1313 = vpack.c.b16 %v945, %v941
    %v1314 = vpack.c.b16 %v950, %v946
    %v1315 = vpack.c.b16 %v951, %v947
    %v1316 = vpack.c.b16 %v952, %v948
    %v1317 = vpack.c.b16 %v953, %v949
    %v1318 = vpack.c.b16 %v958, %v954
    %v1319 = vpack.c.b16 %v959, %v955
    %v1320 = vpack.c.b16 %v960, %v956
    %v1321 = vpack.c.b16 %v961, %v957
    %v1322 = vpack.c.b16 %v966, %v962
    %v1323 = vpack.c.b16 %v967, %v963
    %v1324 = vpack.c.b16 %v968, %v964
    %v1325 = vpack.c.b16 %v969, %v965
    %v1326 = vpack.c.b16 %v974, %v970
    %v1327 = vpack.c.b16 %v975, %v971
    %v1328 = vpack.c.b16 %v976, %v972
    %v1329 = vpack.c.b16 %v977, %v973
    %v1330 = vpack.c.b16 %v982, %v978
    %v1331 = vpack.c.b16 %v983, %v979
    %v1332 = vpack.c.b16 %v984, %v980
    %v1333 = vpack.c.b16 %v985, %v981
    %v1334 = vpack.c.b16 %v990, %v986
    %v1335 = vpack.c.b16 %v991, %v987
    %v1336 = vpack.c.b16 %v992, %v988
    %v1337 = vpack.c.b16 %v993, %v989
    %v1338 = vpack.c.b16 %v998, %v994
    %v1339 = vpack.c.b16 %v999, %v995
    %v1340 = vpack.c.b16 %v1000, %v996
    %v1341 = vpack.c.b16 %v1001, %v997
    %v1342 = vpack.c.b16 %v1006, %v1002
    %v1343 = vpack.c.b16 %v1007, %v1003
    %v1344 = vpack.c.b16 %v1008, %v1004
    %v1345 = vpack.c.b16 %v1009, %v1005
    %v1346 = vpack.c.b16 %v1014, %v1010
    %v1347 = vpack.c.b16 %v1015, %v1011
    %v1348 = vpack.c.b16 %v1016, %v1012
    %v1349 = vpack.c.b16 %v1017, %v1013
    %v1350 = vpack.c.b16 %v1022, %v1018
    %v1351 = vpack.c.b16 %v1023, %v1019
    %v1352 = vpack.c.b16 %v1024, %v1020
    %v1353 = vpack.c.b16 %v1025, %v1021
    %v1354 = vpack.c.b16 %v1030, %v1026
    %v1355 = vpack.c.b16 %v1031, %v1027
    %v1356 = vpack.c.b16 %v1032, %v1028
    %v1357 = vpack.c.b16 %v1033, %v1029
    %v1358 = vpack.c.b16 %v1038, %v1034
    %v1359 = vpack.c.b16 %v1039, %v1035
    %v1360 = vpack.c.b16 %v1040, %v1036
    %v1361 = vpack.c.b16 %v1041, %v1037
    %v1362 = vpack.c.b16 %v1046, %v1042
    %v1363 = vpack.c.b16 %v1047, %v1043
    %v1364 = vpack.c.b16 %v1048, %v1044
    %v1365 = vpack.c.b16 %v1049, %v1045
    %v1366 = vpack.c.b16 %v1054, %v1050
    %v1367 = vpack.c.b16 %v1055, %v1051
    %v1368 = vpack.c.b16 %v1056, %v1052
    %v1369 = vpack.c.b16 %v1057, %v1053
    %v1370 = vpack.c.b16 %v1062, %v1058
    %v1371 = vpack.c.b16 %v1063, %v1059
    %v1372 = vpack.c.b16 %v1064, %v1060
    %v1373 = vpack.c.b16 %v1065, %v1061
    %v1374 = vpack.c.b16 %v1070, %v1066
    %v1375 = vpack.c.b16 %v1071, %v1067
    %v1376 = vpack.c.b16 %v1072, %v1068
    %v1377 = vpack.c.b16 %v1073, %v1069
    %v1378 = vpack.c.b16 %v1078, %v1074
    %v1379 = vpack.c.b16 %v1079, %v1075
    %v1380 = vpack.c.b16 %v1080, %v1076
    %v1381 = vpack.c.b16 %v1081, %v1077
    %v1382 = vpack.c.b16 %v1086, %v1082
    %v1383 = vpack.c.b16 %v1087, %v1083
    %v1384 = vpack.c.b16 %v1088, %v1084
    %v1385 = vpack.c.b16 %v1089, %v1085
    %v1386 = vpack.c.b16 %v1094, %v1090
    %v1387 = vpack.c.b16 %v1095, %v1091
    %v1388 = vpack.c.b16 %v1096, %v1092
    %v1389 = vpack.c.b16 %v1097, %v1093
    %v1390 = vpack.c.b16 %v1102, %v1098
    %v1391 = vpack.c.b16 %v1103, %v1099
    %v1392 = vpack.c.b16 %v1104, %v1100
    %v1393 = vpack.c.b16 %v1105, %v1101
    %v1394 = vpack.c.b16 %v1110, %v1106
    %v1395 = vpack.c.b16 %v1111, %v1107
    %v1396 = vpack.c.b16 %v1112, %v1108
    %v1397 = vpack.c.b16 %v1113, %v1109
    %v1398 = vpack.c.b16 %v1118, %v1114
    %v1399 = vpack.c.b16 %v1119, %v1115
    %v1400 = vpack.c.b16 %v1120, %v1116
    %v1401 = vpack.c.b16 %v1121, %v1117
    %v1402 = vpack.c.b16 %v1126, %v1122
    %v1403 = vpack.c.b16 %v1127, %v1123
    %v1404 = vpack.c.b16 %v1128, %v1124
    %v1405 = vpack.c.b16 %v1129, %v1125
    %v1406 = vpack.c.b16 %v1134, %v1130
    %v1407 = vpack.c.b16 %v1135, %v1131
    %v1408 = vpack.c.b16 %v1136, %v1132
    %v1409 = vpack.c.b16 %v1137, %v1133
    %v1410 = vpack.c.b16 %v1142, %v1138
    %v1411 = vpack.c.b16 %v1143, %v1139
    %v1412 = vpack.c.b16 %v1144, %v1140
    %v1413 = vpack.c.b16 %v1145, %v1141
    %v1414 = vpack.c.b16 %v1150, %v1146
    %v1415 = vpack.c.b16 %v1151, %v1147
    %v1416 = vpack.c.b16 %v1152, %v1148
    %v1417 = vpack.c.b16 %v1153, %v1149
    %v1418 = vpack.c.b16 %v1158, %v1154
    %v1419 = vpack.c.b16 %v1159, %v1155
    %v1420 = vpack.c.b16 %v1160, %v1156
    %v1421 = vpack.c.b16 %v1161, %v1157
    %v1422 = vpack.c.b16 %v1166, %v1162
    %v1423 = vpack.c.b16 %v1167, %v1163
    %v1424 = vpack.c.b16 %v1168, %v1164
    %v1425 = vpack.c.b16 %v1169, %v1165
    %1682 = vmatprep.subr.bf16.mxu0 %v1171
    %1683 = vmatpush1.bf16.msra.mxu0 %v1170
    %1684 = vmatprep.subr.bf16.mxu0 %v1175
    %1685 = vmatpush1.bf16.msra.mxu0 %v1174
    %1686 = vmatprep.subr.bf16.mxu0 %v1179
    %1687 = vmatpush1.bf16.msra.mxu0 %v1178
    %1688 = vmatprep.subr.bf16.mxu0 %v1183
    %1689 = vmatpush1.bf16.msra.mxu0 %v1182
    %1690 = vmatprep.subr.bf16.mxu0 %v1187
    %1691 = vmatpush1.bf16.msra.mxu0 %v1186
    %1692 = vmatprep.subr.bf16.mxu0 %v1191
    %1693 = vmatpush1.bf16.msra.mxu0 %v1190
    %1694 = vmatprep.subr.bf16.mxu0 %v1195
    %1695 = vmatpush1.bf16.msra.mxu0 %v1194
    %1696 = vmatprep.subr.bf16.mxu0 %v1199
    %1697 = vmatpush1.bf16.msra.mxu0 %v1198
    %1698 = vmatprep.subr.bf16.mxu0 %v1203
    %1699 = vmatpush1.bf16.msra.mxu0 %v1202
    %1700 = vmatprep.subr.bf16.mxu0 %v1207
    %1701 = vmatpush1.bf16.msra.mxu0 %v1206
    %1702 = vmatprep.subr.bf16.mxu0 %v1211
    %1703 = vmatpush1.bf16.msra.mxu0 %v1210
    %1704 = vmatprep.subr.bf16.mxu0 %v1215
    %1705 = vmatpush1.bf16.msra.mxu0 %v1214
    %1706 = vmatprep.subr.bf16.mxu0 %v1219
    %1707 = vmatpush1.bf16.msra.mxu0 %v1218
    %1708 = vmatprep.subr.bf16.mxu0 %v1223
    %1709 = vmatpush1.bf16.msra.mxu0 %v1222
    %1710 = vmatprep.subr.bf16.mxu0 %v1227
    %1711 = vmatpush1.bf16.msra.mxu0 %v1226
    %1712 = vmatprep.subr.bf16.mxu0 %v1231
    %1713 = vmatpush1.bf16.msra.mxu0 %v1230
    %1714 = vmatprep.mubr.bf16.mxu0 %v131
    %1715 = vmatmul.mubr.bf16.gmra.mrb[0].mxu0 %v130
    %v1716 = vpop.f32.mrb[0].mxu0
    %v1717 = vadd.f32 0.0, %v1716
    %v1718 = vpop.f32.mrb[0].mxu0
    %v1719 = vadd.f32 0.0, %v1718
    %v1720 = vpop.f32.mrb[0].mxu0
    %v1721 = vadd.f32 0.0, %v1720
    %v1722 = vpop.f32.mrb[0].mxu0
    %v1723 = vadd.f32 0.0, %v1722
    %1724 = vdwg.mxu0
    %1725 = vmatprep.subr.bf16.mxu0 %v1235
    %1726 = vmatpush1.bf16.msra.mxu0 %v1234
    %1727 = vmatprep.subr.bf16.mxu0 %v1239
    %1728 = vmatpush1.bf16.msra.mxu0 %v1238
    %1729 = vmatprep.subr.bf16.mxu0 %v1243
    %1730 = vmatpush1.bf16.msra.mxu0 %v1242
    %1731 = vmatprep.subr.bf16.mxu0 %v1247
    %1732 = vmatpush1.bf16.msra.mxu0 %v1246
    %1733 = vmatprep.subr.bf16.mxu0 %v1251
    %1734 = vmatpush1.bf16.msra.mxu0 %v1250
    %1735 = vmatprep.subr.bf16.mxu0 %v1255
    %1736 = vmatpush1.bf16.msra.mxu0 %v1254
    %1737 = vmatprep.subr.bf16.mxu0 %v1259
    %1738 = vmatpush1.bf16.msra.mxu0 %v1258
    %1739 = vmatprep.subr.bf16.mxu0 %v1263
    %1740 = vmatpush1.bf16.msra.mxu0 %v1262
    %1741 = vmatprep.subr.bf16.mxu0 %v1267
    %1742 = vmatpush1.bf16.msra.mxu0 %v1266
    %1743 = vmatprep.subr.bf16.mxu0 %v1271
    %1744 = vmatpush1.bf16.msra.mxu0 %v1270
    %1745 = vmatprep.subr.bf16.mxu0 %v1275
    %1746 = vmatpush1.bf16.msra.mxu0 %v1274
    %1747 = vmatprep.subr.bf16.mxu0 %v1279
    %1748 = vmatpush1.bf16.msra.mxu0 %v1278
    %1749 = vmatprep.subr.bf16.mxu0 %v1283
    %1750 = vmatpush1.bf16.msra.mxu0 %v1282
    %1751 = vmatprep.subr.bf16.mxu0 %v1287
    %1752 = vmatpush1.bf16.msra.mxu0 %v1286
    %1753 = vmatprep.subr.bf16.mxu0 %v1291
    %1754 = vmatpush1.bf16.msra.mxu0 %v1290
    %1755 = vmatprep.subr.bf16.mxu0 %v1295
    %1756 = vmatpush1.bf16.msra.mxu0 %v1294
    %1757 = vmatprep.mubr.bf16.mxu0 %v133
    %1758 = vmatmul.mubr.bf16.gmra.mrb[0].mxu0 %v132
    %v1759 = vpop.f32.mrb[0].mxu0
    %v1760 = vadd.f32 %v1717, %v1759
    %v1761 = vpop.f32.mrb[0].mxu0
    %v1762 = vadd.f32 %v1719, %v1761
    %v1763 = vpop.f32.mrb[0].mxu0
    %v1764 = vadd.f32 %v1721, %v1763
    %v1765 = vpop.f32.mrb[0].mxu0
    %v1766 = vadd.f32 %v1723, %v1765
    %1767 = vdwg.mxu0
    %1768 = vmatprep.subr.bf16.mxu0 %v1299
    %1769 = vmatpush1.bf16.msra.mxu0 %v1298
    %1770 = vmatprep.subr.bf16.mxu0 %v1303
    %1771 = vmatpush1.bf16.msra.mxu0 %v1302
    %1772 = vmatprep.subr.bf16.mxu0 %v1307
    %1773 = vmatpush1.bf16.msra.mxu0 %v1306
    %1774 = vmatprep.subr.bf16.mxu0 %v1311
    %1775 = vmatpush1.bf16.msra.mxu0 %v1310
    %1776 = vmatprep.subr.bf16.mxu0 %v1315
    %1777 = vmatpush1.bf16.msra.mxu0 %v1314
    %1778 = vmatprep.subr.bf16.mxu0 %v1319
    %1779 = vmatpush1.bf16.msra.mxu0 %v1318
    %1780 = vmatprep.subr.bf16.mxu0 %v1323
    %1781 = vmatpush1.bf16.msra.mxu0 %v1322
    %1782 = vmatprep.subr.bf16.mxu0 %v1327
    %1783 = vmatpush1.bf16.msra.mxu0 %v1326
    %1784 = vmatprep.subr.bf16.mxu0 %v1331
    %1785 = vmatpush1.bf16.msra.mxu0 %v1330
    %1786 = vmatprep.subr.bf16.mxu0 %v1335
    %1787 = vmatpush1.bf16.msra.mxu0 %v1334
    %1788 = vmatprep.subr.bf16.mxu0 %v1339
    %1789 = vmatpush1.bf16.msra.mxu0 %v1338
    %1790 = vmatprep.subr.bf16.mxu0 %v1343
    %1791 = vmatpush1.bf16.msra.mxu0 %v1342
    %1792 = vmatprep.subr.bf16.mxu0 %v1347
    %1793 = vmatpush1.bf16.msra.mxu0 %v1346
    %1794 = vmatprep.subr.bf16.mxu0 %v1351
    %1795 = vmatpush1.bf16.msra.mxu0 %v1350
    %1796 = vmatprep.subr.bf16.mxu0 %v1355
    %1797 = vmatpush1.bf16.msra.mxu0 %v1354
    %1798 = vmatprep.subr.bf16.mxu0 %v1359
    %1799 = vmatpush1.bf16.msra.mxu0 %v1358
    %1800 = vmatprep.mubr.bf16.mxu0 %v135
    %1801 = vmatmul.mubr.bf16.gmra.mrb[0].mxu0 %v134
    %v1802 = vpop.f32.mrb[0].mxu0
    %v1803 = vadd.f32 %v1760, %v1802
    %v1804 = vpop.f32.mrb[0].mxu0
    %v1805 = vadd.f32 %v1762, %v1804
    %v1806 = vpop.f32.mrb[0].mxu0
    %v1807 = vadd.f32 %v1764, %v1806
    %v1808 = vpop.f32.mrb[0].mxu0
    %v1809 = vadd.f32 %v1766, %v1808
    %1810 = vdwg.mxu0
    %1811 = vmatprep.subr.bf16.mxu0 %v1363
    %1812 = vmatpush1.bf16.msra.mxu0 %v1362
    %1813 = vmatprep.subr.bf16.mxu0 %v1367
    %1814 = vmatpush1.bf16.msra.mxu0 %v1366
    %1815 = vmatprep.subr.bf16.mxu0 %v1371
    %1816 = vmatpush1.bf16.msra.mxu0 %v1370
    %1817 = vmatprep.subr.bf16.mxu0 %v1375
    %1818 = vmatpush1.bf16.msra.mxu0 %v1374
    %1819 = vmatprep.subr.bf16.mxu0 %v1379
    %1820 = vmatpush1.bf16.msra.mxu0 %v1378
    %1821 = vmatprep.subr.bf16.mxu0 %v1383
    %1822 = vmatpush1.bf16.msra.mxu0 %v1382
    %1823 = vmatprep.subr.bf16.mxu0 %v1387
    %1824 = vmatpush1.bf16.msra.mxu0 %v1386
    %1825 = vmatprep.subr.bf16.mxu0 %v1391
    %1826 = vmatpush1.bf16.msra.mxu0 %v1390
    %1827 = vmatprep.subr.bf16.mxu0 %v1395
    %1828 = vmatpush1.bf16.msra.mxu0 %v1394
    %1829 = vmatprep.subr.bf16.mxu0 %v1399
    %1830 = vmatpush1.bf16.msra.mxu0 %v1398
    %1831 = vmatprep.subr.bf16.mxu0 %v1403
    %1832 = vmatpush1.bf16.msra.mxu0 %v1402
    %1833 = vmatprep.subr.bf16.mxu0 %v1407
    %1834 = vmatpush1.bf16.msra.mxu0 %v1406
    %1835 = vmatprep.subr.bf16.mxu0 %v1411
    %1836 = vmatpush1.bf16.msra.mxu0 %v1410
    %1837 = vmatprep.subr.bf16.mxu0 %v1415
    %1838 = vmatpush1.bf16.msra.mxu0 %v1414
    %1839 = vmatprep.subr.bf16.mxu0 %v1419
    %1840 = vmatpush1.bf16.msra.mxu0 %v1418
    %1841 = vmatprep.subr.bf16.mxu0 %v1423
    %1842 = vmatpush1.bf16.msra.mxu0 %v1422
    %1843 = vmatprep.mubr.bf16.mxu0 %v137
    %1844 = vmatmul.mubr.bf16.gmra.mrb[0].mxu0 %v136
    %v1845 = vpop.f32.mrb[0].mxu0
    %v1846 = vadd.f32 %v1803, %v1845
    %v1847 = vpop.f32.mrb[0].mxu0
    %v1848 = vadd.f32 %v1805, %v1847
    %v1849 = vpop.f32.mrb[0].mxu0
    %v1850 = vadd.f32 %v1807, %v1849
    %v1851 = vpop.f32.mrb[0].mxu0
    %v1852 = vadd.f32 %v1809, %v1851
    %1853 = vdwg.mxu0
    %1854 = vmatprep.subr.bf16.mxu0 %v1173
    %1855 = vmatpush1.bf16.msra.mxu0 %v1172
    %1856 = vmatprep.subr.bf16.mxu0 %v1177
    %1857 = vmatpush1.bf16.msra.mxu0 %v1176
    %1858 = vmatprep.subr.bf16.mxu0 %v1181
    %1859 = vmatpush1.bf16.msra.mxu0 %v1180
    %1860 = vmatprep.subr.bf16.mxu0 %v1185
    %1861 = vmatpush1.bf16.msra.mxu0 %v1184
    %1862 = vmatprep.subr.bf16.mxu0 %v1189
    %1863 = vmatpush1.bf16.msra.mxu0 %v1188
    %1864 = vmatprep.subr.bf16.mxu0 %v1193
    %1865 = vmatpush1.bf16.msra.mxu0 %v1192
    %1866 = vmatprep.subr.bf16.mxu0 %v1197
    %1867 = vmatpush1.bf16.msra.mxu0 %v1196
    %1868 = vmatprep.subr.bf16.mxu0 %v1201
    %1869 = vmatpush1.bf16.msra.mxu0 %v1200
    %1870 = vmatprep.subr.bf16.mxu0 %v1205
    %1871 = vmatpush1.bf16.msra.mxu0 %v1204
    %1872 = vmatprep.subr.bf16.mxu0 %v1209
    %1873 = vmatpush1.bf16.msra.mxu0 %v1208
    %1874 = vmatprep.subr.bf16.mxu0 %v1213
    %1875 = vmatpush1.bf16.msra.mxu0 %v1212
    %1876 = vmatprep.subr.bf16.mxu0 %v1217
    %1877 = vmatpush1.bf16.msra.mxu0 %v1216
    %1878 = vmatprep.subr.bf16.mxu0 %v1221
    %1879 = vmatpush1.bf16.msra.mxu0 %v1220
    %1880 = vmatprep.subr.bf16.mxu0 %v1225
    %1881 = vmatpush1.bf16.msra.mxu0 %v1224
    %1882 = vmatprep.subr.bf16.mxu0 %v1229
    %1883 = vmatpush1.bf16.msra.mxu0 %v1228
    %1884 = vmatprep.subr.bf16.mxu0 %v1233
    %1885 = vmatpush1.bf16.msra.mxu0 %v1232
    %1886 = vmatprep.mubr.bf16.mxu0 %v131
    %1887 = vmatmul.mubr.bf16.gmra.mrb[0].mxu0 %v130
    %v1888 = vpop.f32.mrb[0].mxu0
    %v1889 = vadd.f32 0.0, %v1888
    %v1890 = vpop.f32.mrb[0].mxu0
    %v1891 = vadd.f32 0.0, %v1890
    %v1892 = vpop.f32.mrb[0].mxu0
    %v1893 = vadd.f32 0.0, %v1892
    %v1894 = vpop.f32.mrb[0].mxu0
    %v1895 = vadd.f32 0.0, %v1894
    %1896 = vdwg.mxu0
    %1897 = vmatprep.subr.bf16.mxu0 %v1237
    %1898 = vmatpush1.bf16.msra.mxu0 %v1236
    %1899 = vmatprep.subr.bf16.mxu0 %v1241
    %1900 = vmatpush1.bf16.msra.mxu0 %v1240
    %1901 = vmatprep.subr.bf16.mxu0 %v1245
    %1902 = vmatpush1.bf16.msra.mxu0 %v1244
    %1903 = vmatprep.subr.bf16.mxu0 %v1249
    %1904 = vmatpush1.bf16.msra.mxu0 %v1248
    %1905 = vmatprep.subr.bf16.mxu0 %v1253
    %1906 = vmatpush1.bf16.msra.mxu0 %v1252
    %1907 = vmatprep.subr.bf16.mxu0 %v1257
    %1908 = vmatpush1.bf16.msra.mxu0 %v1256
    %1909 = vmatprep.subr.bf16.mxu0 %v1261
    %1910 = vmatpush1.bf16.msra.mxu0 %v1260
    %1911 = vmatprep.subr.bf16.mxu0 %v1265
    %1912 = vmatpush1.bf16.msra.mxu0 %v1264
    %1913 = vmatprep.subr.bf16.mxu0 %v1269
    %1914 = vmatpush1.bf16.msra.mxu0 %v1268
    %1915 = vmatprep.subr.bf16.mxu0 %v1273
    %1916 = vmatpush1.bf16.msra.mxu0 %v1272
    %1917 = vmatprep.subr.bf16.mxu0 %v1277
    %1918 = vmatpush1.bf16.msra.mxu0 %v1276
    %1919 = vmatprep.subr.bf16.mxu0 %v1281
    %1920 = vmatpush1.bf16.msra.mxu0 %v1280
    %1921 = vmatprep.subr.bf16.mxu0 %v1285
    %1922 = vmatpush1.bf16.msra.mxu0 %v1284
    %1923 = vmatprep.subr.bf16.mxu0 %v1289
    %1924 = vmatpush1.bf16.msra.mxu0 %v1288
    %1925 = vmatprep.subr.bf16.mxu0 %v1293
    %1926 = vmatpush1.bf16.msra.mxu0 %v1292
    %1927 = vmatprep.subr.bf16.mxu0 %v1297
    %1928 = vmatpush1.bf16.msra.mxu0 %v1296
    %1929 = vmatprep.mubr.bf16.mxu0 %v133
    %1930 = vmatmul.mubr.bf16.gmra.mrb[0].mxu0 %v132
    %v1931 = vpop.f32.mrb[0].mxu0
    %v1932 = vadd.f32 %v1889, %v1931
    %v1933 = vpop.f32.mrb[0].mxu0
    %v1934 = vadd.f32 %v1891, %v1933
    %v1935 = vpop.f32.mrb[0].mxu0
    %v1936 = vadd.f32 %v1893, %v1935
    %v1937 = vpop.f32.mrb[0].mxu0
    %v1938 = vadd.f32 %v1895, %v1937
    %1939 = vdwg.mxu0
    %1940 = vmatprep.subr.bf16.mxu0 %v1301
    %1941 = vmatpush1.bf16.msra.mxu0 %v1300
    %1942 = vmatprep.subr.bf16.mxu0 %v1305
    %1943 = vmatpush1.bf16.msra.mxu0 %v1304
    %1944 = vmatprep.subr.bf16.mxu0 %v1309
    %1945 = vmatpush1.bf16.msra.mxu0 %v1308
    %1946 = vmatprep.subr.bf16.mxu0 %v1313
    %1947 = vmatpush1.bf16.msra.mxu0 %v1312
    %1948 = vmatprep.subr.bf16.mxu0 %v1317
    %1949 = vmatpush1.bf16.msra.mxu0 %v1316
    %1950 = vmatprep.subr.bf16.mxu0 %v1321
    %1951 = vmatpush1.bf16.msra.mxu0 %v1320
    %1952 = vmatprep.subr.bf16.mxu0 %v1325
    %1953 = vmatpush1.bf16.msra.mxu0 %v1324
    %1954 = vmatprep.subr.bf16.mxu0 %v1329
    %1955 = vmatpush1.bf16.msra.mxu0 %v1328
    %1956 = vmatprep.subr.bf16.mxu0 %v1333
    %1957 = vmatpush1.bf16.msra.mxu0 %v1332
    %1958 = vmatprep.subr.bf16.mxu0 %v1337
    %1959 = vmatpush1.bf16.msra.mxu0 %v1336
    %1960 = vmatprep.subr.bf16.mxu0 %v1341
    %1961 = vmatpush1.bf16.msra.mxu0 %v1340
    %1962 = vmatprep.subr.bf16.mxu0 %v1345
    %1963 = vmatpush1.bf16.msra.mxu0 %v1344
    %1964 = vmatprep.subr.bf16.mxu0 %v1349
    %1965 = vmatpush1.bf16.msra.mxu0 %v1348
    %1966 = vmatprep.subr.bf16.mxu0 %v1353
    %1967 = vmatpush1.bf16.msra.mxu0 %v1352
    %1968 = vmatprep.subr.bf16.mxu0 %v1357
    %1969 = vmatpush1.bf16.msra.mxu0 %v1356
    %1970 = vmatprep.subr.bf16.mxu0 %v1361
    %1971 = vmatpush1.bf16.msra.mxu0 %v1360
    %1972 = vmatprep.mubr.bf16.mxu0 %v135
    %1973 = vmatmul.mubr.bf16.gmra.mrb[0].mxu0 %v134
    %v1974 = vpop.f32.mrb[0].mxu0
    %v1975 = vadd.f32 %v1932, %v1974
    %v1976 = vpop.f32.mrb[0].mxu0
    %v1977 = vadd.f32 %v1934, %v1976
    %v1978 = vpop.f32.mrb[0].mxu0
    %v1979 = vadd.f32 %v1936, %v1978
    %v1980 = vpop.f32.mrb[0].mxu0
    %v1981 = vadd.f32 %v1938, %v1980
    %1982 = vdwg.mxu0
    %1983 = vmatprep.subr.bf16.mxu0 %v1365
    %1984 = vmatpush1.bf16.msra.mxu0 %v1364
    %1985 = vmatprep.subr.bf16.mxu0 %v1369
    %1986 = vmatpush1.bf16.msra.mxu0 %v1368
    %1987 = vmatprep.subr.bf16.mxu0 %v1373
    %1988 = vmatpush1.bf16.msra.mxu0 %v1372
    %1989 = vmatprep.subr.bf16.mxu0 %v1377
    %1990 = vmatpush1.bf16.msra.mxu0 %v1376
    %1991 = vmatprep.subr.bf16.mxu0 %v1381
    %1992 = vmatpush1.bf16.msra.mxu0 %v1380
    %1993 = vmatprep.subr.bf16.mxu0 %v1385
    %1994 = vmatpush1.bf16.msra.mxu0 %v1384
    %1995 = vmatprep.subr.bf16.mxu0 %v1389
    %1996 = vmatpush1.bf16.msra.mxu0 %v1388
    %1997 = vmatprep.subr.bf16.mxu0 %v1393
    %1998 = vmatpush1.bf16.msra.mxu0 %v1392
    %1999 = vmatprep.subr.bf16.mxu0 %v1397
    %2000 = vmatpush1.bf16.msra.mxu0 %v1396
    %2001 = vmatprep.subr.bf16.mxu0 %v1401
    %2002 = vmatpush1.bf16.msra.mxu0 %v1400
    %2003 = vmatprep.subr.bf16.mxu0 %v1405
    %2004 = vmatpush1.bf16.msra.mxu0 %v1404
    %2005 = vmatprep.subr.bf16.mxu0 %v1409
    %2006 = vmatpush1.bf16.msra.mxu0 %v1408
    %2007 = vmatprep.subr.bf16.mxu0 %v1413
    %2008 = vmatpush1.bf16.msra.mxu0 %v1412
    %2009 = vmatprep.subr.bf16.mxu0 %v1417
    %2010 = vmatpush1.bf16.msra.mxu0 %v1416
    %2011 = vmatprep.subr.bf16.mxu0 %v1421
    %2012 = vmatpush1.bf16.msra.mxu0 %v1420
    %2013 = vmatprep.subr.bf16.mxu0 %v1425
    %2014 = vmatpush1.bf16.msra.mxu0 %v1424
    %2015 = vmatprep.mubr.bf16.mxu0 %v137
    %2016 = vmatmul.mubr.bf16.gmra.mrb[0].mxu0 %v136
    %v2017 = vpop.f32.mrb[0].mxu0
    %v2018 = vadd.f32 %v1975, %v2017
    %v2019 = vpop.f32.mrb[0].mxu0
    %v2020 = vadd.f32 %v1977, %v2019
    %v2021 = vpop.f32.mrb[0].mxu0
    %v2022 = vadd.f32 %v1979, %v2021
    %v2023 = vpop.f32.mrb[0].mxu0
    %v2024 = vadd.f32 %v1981, %v2023
    %2025 = vdwg.mxu0
    %v2026 = vadd.f32 %v138, %v1846
    %v2027 = vadd.f32 %v139, %v1848
    %v2028 = vadd.f32 %v140, %v2018
    %v2029 = vadd.f32 %v141, %v2020
    %v2030 = vadd.f32 %v142, %v1850
    %v2031 = vadd.f32 %v143, %v1852
    %v2032 = vadd.f32 %v144, %v2022
    %v2033 = vadd.f32 %v145, %v2024
    %2034 = vst [vmem:[#allocation2] sm:$0xff] %v2026
    %2035 = vst [vmem:[#allocation2 + $0x8] sm:$0xff] %v2027
    %2036 = vst [vmem:[#allocation2 + $0x10] sm:$0xff] %v2028
    %2037 = vst [vmem:[#allocation2 + $0x18] sm:$0xff] %v2029
    %2038 = vst [vmem:[#allocation2 + $0x20] sm:$0xff] %v2030
    %2039 = vst [vmem:[#allocation2 + $0x28] sm:$0xff] %v2031
    %2040 = vst [vmem:[#allocation2 + $0x30] sm:$0xff] %v2032
    %2041 = vst [vmem:[#allocation2 + $0x38] sm:$0xff] %v2033
    // Predicated region
    $region62: #{tpu_custom_call.1} parent=1 // pred_check
      %p2042 = pneg %p102
    $region63: #{tpu_custom_call.1} parent=1 // pred_check_branch
      %2044 = sbr.rel (%p2042) target = $region65
    $region64: #{tpu_custom_call.1} parent=1 // pred_region
      %v2045 = vld [vmem:[#allocation2] sm:$0xff]
      %v2046 = vld [vmem:[#allocation2 + $0x8] sm:$0xff]
      %v2047 = vld [vmem:[#allocation2 + $0x10] sm:$0xff]
      %v2048 = vld [vmem:[#allocation2 + $0x18] sm:$0xff]
      %v2049 = vld [vmem:[#allocation2 + $0x20] sm:$0xff]
      %v2050 = vld [vmem:[#allocation2 + $0x28] sm:$0xff]
      %v2051 = vld [vmem:[#allocation2 + $0x30] sm:$0xff]
      %v2052 = vld [vmem:[#allocation2 + $0x38] sm:$0xff]
      %v2053 = vld [vmem:[%s2] sm:$0xf]
      %v2055 = vlaneseq
      %v2056 = vshrl.u32 %v2055, 7
      %v2057 = vsub.s32 0, %v2056
      %v2058 = vrot.slane %v2053, %v2057
      %v2059 = vlaneseq
      %v2060 = vshrl.u32 %v2059, 7
      %v2061 = vsub.s32 1, %v2060
      %v2062 = vrot.slane %v2053, %v2061
      %v2063 = vlaneseq
      %v2064 = vshrl.u32 %v2063, 7
      %v2065 = vsub.s32 2, %v2064
      %v2066 = vrot.slane %v2053, %v2065
      %v2067 = vlaneseq
      %v2068 = vshrl.u32 %v2067, 7
      %v2069 = vsub.s32 3, %v2068
      %v2070 = vrot.slane %v2053, %v2069
      %v2075 = vadd.f32 %v2045, %v2058
      %v2076 = vadd.f32 %v2046, %v2062
      %v2077 = vadd.f32 %v2047, %v2066
      %v2078 = vadd.f32 %v2048, %v2070
      %v2079 = vadd.f32 %v2049, %v2058
      %v2080 = vadd.f32 %v2050, %v2062
      %v2081 = vadd.f32 %v2051, %v2066
      %v2082 = vadd.f32 %v2052, %v2070
      %v2083 = vmax.f32 %v2075, 0.0
      %v2084 = vmax.f32 %v2076, 0.0
      %v2085 = vmax.f32 %v2077, 0.0
      %v2086 = vmax.f32 %v2078, 0.0
      %v2087 = vmax.f32 %v2079, 0.0
      %v2088 = vmax.f32 %v2080, 0.0
      %v2089 = vmax.f32 %v2081, 0.0
      %v2090 = vmax.f32 %v2082, 0.0
      %v2091 = vpack.c.bf16 %v2087, %v2083
      %v2092 = vpack.c.bf16 %v2088, %v2084
      %v2093 = vpack.c.bf16 %v2089, %v2085
      %v2094 = vpack.c.bf16 %v2090, %v2086
      %v2095 = vld [vmem:[#allocation8] sm:$0xff]
      %v2096 = vld [vmem:[#allocation8 + $0x8] sm:$0xff]
      %v2097 = vld [vmem:[#allocation8 + $0x10] sm:$0xff]
      %v2098 = vld [vmem:[#allocation8 + $0x18] sm:$0xff]
      %v2099 = vld [vmem:[#allocation8 + $0x20] sm:$0xff]
      %v2100 = vld [vmem:[#allocation8 + $0x28] sm:$0xff]
      %v2101 = vld [vmem:[#allocation8 + $0x30] sm:$0xff]
      %v2102 = vld [vmem:[#allocation8 + $0x38] sm:$0xff]
      %v2103 = vld [vmem:[#allocation8 + $0x40] sm:$0xff]
      %v2104 = vld [vmem:[#allocation8 + $0x48] sm:$0xff]
      %v2105 = vld [vmem:[#allocation8 + $0x50] sm:$0xff]
      %v2106 = vld [vmem:[#allocation8 + $0x58] sm:$0xff]
      %v2107 = vld [vmem:[#allocation8 + $0x60] sm:$0xff]
      %v2108 = vld [vmem:[#allocation8 + $0x68] sm:$0xff]
      %v2109 = vld [vmem:[#allocation8 + $0x70] sm:$0xff]
      %v2110 = vld [vmem:[#allocation8 + $0x78] sm:$0xff]
      %v2111 = vld [vmem:[#allocation8 + $0x80] sm:$0xff]
      %v2112 = vld [vmem:[#allocation8 + $0x88] sm:$0xff]
      %v2113 = vld [vmem:[#allocation8 + $0x90] sm:$0xff]
      %v2114 = vld [vmem:[#allocation8 + $0x98] sm:$0xff]
      %v2115 = vld [vmem:[#allocation8 + $0xa0] sm:$0xff]
      %v2116 = vld [vmem:[#allocation8 + $0xa8] sm:$0xff]
      %v2117 = vld [vmem:[#allocation8 + $0xb0] sm:$0xff]
      %v2118 = vld [vmem:[#allocation8 + $0xb8] sm:$0xff]
      %v2119 = vld [vmem:[#allocation8 + $0xc0] sm:$0xff]
      %v2120 = vld [vmem:[#allocation8 + $0xc8] sm:$0xff]
      %v2121 = vld [vmem:[#allocation8 + $0xd0] sm:$0xff]
      %v2122 = vld [vmem:[#allocation8 + $0xd8] sm:$0xff]
      %v2123 = vld [vmem:[#allocation8 + $0xe0] sm:$0xff]
      %v2124 = vld [vmem:[#allocation8 + $0xe8] sm:$0xff]
      %v2125 = vld [vmem:[#allocation8 + $0xf0] sm:$0xff]
      %v2126 = vld [vmem:[#allocation8 + $0xf8] sm:$0xff]
      %v2127 = vld [vmem:[#allocation8 + $0x100] sm:$0xff]
      %v2128 = vld [vmem:[#allocation8 + $0x108] sm:$0xff]
      %v2129 = vld [vmem:[#allocation8 + $0x110] sm:$0xff]
      %v2130 = vld [vmem:[#allocation8 + $0x118] sm:$0xff]
      %v2131 = vld [vmem:[#allocation8 + $0x120] sm:$0xff]
      %v2132 = vld [vmem:[#allocation8 + $0x128] sm:$0xff]
      %v2133 = vld [vmem:[#allocation8 + $0x130] sm:$0xff]
      %v2134 = vld [vmem:[#allocation8 + $0x138] sm:$0xff]
      %v2135 = vld [vmem:[#allocation8 + $0x140] sm:$0xff]
      %v2136 = vld [vmem:[#allocation8 + $0x148] sm:$0xff]
      %v2137 = vld [vmem:[#allocation8 + $0x150] sm:$0xff]
      %v2138 = vld [vmem:[#allocation8 + $0x158] sm:$0xff]
      %v2139 = vld [vmem:[#allocation8 + $0x160] sm:$0xff]
      %v2140 = vld [vmem:[#allocation8 + $0x168] sm:$0xff]
      %v2141 = vld [vmem:[#allocation8 + $0x170] sm:$0xff]
      %v2142 = vld [vmem:[#allocation8 + $0x178] sm:$0xff]
      %v2143 = vld [vmem:[#allocation8 + $0x180] sm:$0xff]
      %v2144 = vld [vmem:[#allocation8 + $0x188] sm:$0xff]
      %v2145 = vld [vmem:[#allocation8 + $0x190] sm:$0xff]
      %v2146 = vld [vmem:[#allocation8 + $0x198] sm:$0xff]
      %v2147 = vld [vmem:[#allocation8 + $0x1a0] sm:$0xff]
      %v2148 = vld [vmem:[#allocation8 + $0x1a8] sm:$0xff]
      %v2149 = vld [vmem:[#allocation8 + $0x1b0] sm:$0xff]
      %v2150 = vld [vmem:[#allocation8 + $0x1b8] sm:$0xff]
      %v2151 = vld [vmem:[#allocation8 + $0x1c0] sm:$0xff]
      %v2152 = vld [vmem:[#allocation8 + $0x1c8] sm:$0xff]
      %v2153 = vld [vmem:[#allocation8 + $0x1d0] sm:$0xff]
      %v2154 = vld [vmem:[#allocation8 + $0x1d8] sm:$0xff]
      %v2155 = vld [vmem:[#allocation8 + $0x1e0] sm:$0xff]
      %v2156 = vld [vmem:[#allocation8 + $0x1e8] sm:$0xff]
      %v2157 = vld [vmem:[#allocation8 + $0x1f0] sm:$0xff]
      %v2158 = vld [vmem:[#allocation8 + $0x1f8] sm:$0xff]
      %v2159 = vld [vmem:[%s4] sm:$0x3]
      %v2161 = vlaneseq
      %v2162 = vshrl.u32 %v2161, 7
      %v2163 = vsub.s32 0, %v2162
      %v2164 = vrot.slane %v2159, %v2163
      %v2165 = vlaneseq
      %v2166 = vshrl.u32 %v2165, 7
      %v2167 = vsub.s32 1, %v2166
      %v2168 = vrot.slane %v2159, %v2167
      %v2235 = vunpack.c.l.b16 %v2095
      %v2236 = vunpack.c.h.b16 %v2095
      %v2237 = vunpack.c.l.b16 %v2096
      %v2238 = vunpack.c.h.b16 %v2096
      %v2239 = vunpack.c.l.b16 %v2097
      %v2240 = vunpack.c.h.b16 %v2097
      %v2241 = vunpack.c.l.b16 %v2098
      %v2242 = vunpack.c.h.b16 %v2098
      %v2243 = vunpack.c.l.b16 %v2099
      %v2244 = vunpack.c.h.b16 %v2099
      %v2245 = vunpack.c.l.b16 %v2100
      %v2246 = vunpack.c.h.b16 %v2100
      %v2247 = vunpack.c.l.b16 %v2101
      %v2248 = vunpack.c.h.b16 %v2101
      %v2249 = vunpack.c.l.b16 %v2102
      %v2250 = vunpack.c.h.b16 %v2102
      %v2251 = vunpack.c.l.b16 %v2103
      %v2252 = vunpack.c.h.b16 %v2103
      %v2253 = vunpack.c.l.b16 %v2104
      %v2254 = vunpack.c.h.b16 %v2104
      %v2255 = vunpack.c.l.b16 %v2105
      %v2256 = vunpack.c.h.b16 %v2105
      %v2257 = vunpack.c.l.b16 %v2106
      %v2258 = vunpack.c.h.b16 %v2106
      %v2259 = vunpack.c.l.b16 %v2107
      %v2260 = vunpack.c.h.b16 %v2107
      %v2261 = vunpack.c.l.b16 %v2108
      %v2262 = vunpack.c.h.b16 %v2108
      %v2263 = vunpack.c.l.b16 %v2109
      %v2264 = vunpack.c.h.b16 %v2109
      %v2265 = vunpack.c.l.b16 %v2110
      %v2266 = vunpack.c.h.b16 %v2110
      %v2267 = vunpack.c.l.b16 %v2111
      %v2268 = vunpack.c.h.b16 %v2111
      %v2269 = vunpack.c.l.b16 %v2112
      %v2270 = vunpack.c.h.b16 %v2112
      %v2271 = vunpack.c.l.b16 %v2113
      %v2272 = vunpack.c.h.b16 %v2113
      %v2273 = vunpack.c.l.b16 %v2114
      %v2274 = vunpack.c.h.b16 %v2114
      %v2275 = vunpack.c.l.b16 %v2115
      %v2276 = vunpack.c.h.b16 %v2115
      %v2277 = vunpack.c.l.b16 %v2116
      %v2278 = vunpack.c.h.b16 %v2116
      %v2279 = vunpack.c.l.b16 %v2117
      %v2280 = vunpack.c.h.b16 %v2117
      %v2281 = vunpack.c.l.b16 %v2118
      %v2282 = vunpack.c.h.b16 %v2118
      %v2283 = vunpack.c.l.b16 %v2119
      %v2284 = vunpack.c.h.b16 %v2119
      %v2285 = vunpack.c.l.b16 %v2120
      %v2286 = vunpack.c.h.b16 %v2120
      %v2287 = vunpack.c.l.b16 %v2121
      %v2288 = vunpack.c.h.b16 %v2121
      %v2289 = vunpack.c.l.b16 %v2122
      %v2290 = vunpack.c.h.b16 %v2122
      %v2291 = vunpack.c.l.b16 %v2123
      %v2292 = vunpack.c.h.b16 %v2123
      %v2293 = vunpack.c.l.b16 %v2124
      %v2294 = vunpack.c.h.b16 %v2124
      %v2295 = vunpack.c.l.b16 %v2125
      %v2296 = vunpack.c.h.b16 %v2125
      %v2297 = vunpack.c.l.b16 %v2126
      %v2298 = vunpack.c.h.b16 %v2126
      %v2299 = vunpack.c.l.b16 %v2127
      %v2300 = vunpack.c.h.b16 %v2127
      %v2301 = vunpack.c.l.b16 %v2128
      %v2302 = vunpack.c.h.b16 %v2128
      %v2303 = vunpack.c.l.b16 %v2129
      %v2304 = vunpack.c.h.b16 %v2129
      %v2305 = vunpack.c.l.b16 %v2130
      %v2306 = vunpack.c.h.b16 %v2130
      %v2307 = vunpack.c.l.b16 %v2131
      %v2308 = vunpack.c.h.b16 %v2131
      %v2309 = vunpack.c.l.b16 %v2132
      %v2310 = vunpack.c.h.b16 %v2132
      %v2311 = vunpack.c.l.b16 %v2133
      %v2312 = vunpack.c.h.b16 %v2133
      %v2313 = vunpack.c.l.b16 %v2134
      %v2314 = vunpack.c.h.b16 %v2134
      %v2315 = vunpack.c.l.b16 %v2135
      %v2316 = vunpack.c.h.b16 %v2135
      %v2317 = vunpack.c.l.b16 %v2136
      %v2318 = vunpack.c.h.b16 %v2136
      %v2319 = vunpack.c.l.b16 %v2137
      %v2320 = vunpack.c.h.b16 %v2137
      %v2321 = vunpack.c.l.b16 %v2138
      %v2322 = vunpack.c.h.b16 %v2138
      %v2323 = vunpack.c.l.b16 %v2139
      %v2324 = vunpack.c.h.b16 %v2139
      %v2325 = vunpack.c.l.b16 %v2140
      %v2326 = vunpack.c.h.b16 %v2140
      %v2327 = vunpack.c.l.b16 %v2141
      %v2328 = vunpack.c.h.b16 %v2141
      %v2329 = vunpack.c.l.b16 %v2142
      %v2330 = vunpack.c.h.b16 %v2142
      %v2331 = vunpack.c.l.b16 %v2143
      %v2332 = vunpack.c.h.b16 %v2143
      %v2333 = vunpack.c.l.b16 %v2144
      %v2334 = vunpack.c.h.b16 %v2144
      %v2335 = vunpack.c.l.b16 %v2145
      %v2336 = vunpack.c.h.b16 %v2145
      %v2337 = vunpack.c.l.b16 %v2146
      %v2338 = vunpack.c.h.b16 %v2146
      %v2339 = vunpack.c.l.b16 %v2147
      %v2340 = vunpack.c.h.b16 %v2147
      %v2341 = vunpack.c.l.b16 %v2148
      %v2342 = vunpack.c.h.b16 %v2148
      %v2343 = vunpack.c.l.b16 %v2149
      %v2344 = vunpack.c.h.b16 %v2149
      %v2345 = vunpack.c.l.b16 %v2150
      %v2346 = vunpack.c.h.b16 %v2150
      %v2347 = vunpack.c.l.b16 %v2151
      %v2348 = vunpack.c.h.b16 %v2151
      %v2349 = vunpack.c.l.b16 %v2152
      %v2350 = vunpack.c.h.b16 %v2152
      %v2351 = vunpack.c.l.b16 %v2153
      %v2352 = vunpack.c.h.b16 %v2153
      %v2353 = vunpack.c.l.b16 %v2154
      %v2354 = vunpack.c.h.b16 %v2154
      %v2355 = vunpack.c.l.b16 %v2155
      %v2356 = vunpack.c.h.b16 %v2155
      %v2357 = vunpack.c.l.b16 %v2156
      %v2358 = vunpack.c.h.b16 %v2156
      %v2359 = vunpack.c.l.b16 %v2157
      %v2360 = vunpack.c.h.b16 %v2157
      %v2361 = vunpack.c.l.b16 %v2158
      %v2362 = vunpack.c.h.b16 %v2158
      %v2363 = vpack.c.b16 %v2237, %v2235
      %v2364 = vpack.c.b16 %v2238, %v2236
      %v2365 = vpack.c.b16 %v2241, %v2239
      %v2366 = vpack.c.b16 %v2242, %v2240
      %v2367 = vpack.c.b16 %v2245, %v2243
      %v2368 = vpack.c.b16 %v2246, %v2244
      %v2369 = vpack.c.b16 %v2249, %v2247
      %v2370 = vpack.c.b16 %v2250, %v2248
      %v2371 = vpack.c.b16 %v2253, %v2251
      %v2372 = vpack.c.b16 %v2254, %v2252
      %v2373 = vpack.c.b16 %v2257, %v2255
      %v2374 = vpack.c.b16 %v2258, %v2256
      %v2375 = vpack.c.b16 %v2261, %v2259
      %v2376 = vpack.c.b16 %v2262, %v2260
      %v2377 = vpack.c.b16 %v2265, %v2263
      %v2378 = vpack.c.b16 %v2266, %v2264
      %v2379 = vpack.c.b16 %v2269, %v2267
      %v2380 = vpack.c.b16 %v2270, %v2268
      %v2381 = vpack.c.b16 %v2273, %v2271
      %v2382 = vpack.c.b16 %v2274, %v2272
      %v2383 = vpack.c.b16 %v2277, %v2275
      %v2384 = vpack.c.b16 %v2278, %v2276
      %v2385 = vpack.c.b16 %v2281, %v2279
      %v2386 = vpack.c.b16 %v2282, %v2280
      %v2387 = vpack.c.b16 %v2285, %v2283
      %v2388 = vpack.c.b16 %v2286, %v2284
      %v2389 = vpack.c.b16 %v2289, %v2287
      %v2390 = vpack.c.b16 %v2290, %v2288
      %v2391 = vpack.c.b16 %v2293, %v2291
      %v2392 = vpack.c.b16 %v2294, %v2292
      %v2393 = vpack.c.b16 %v2297, %v2295
      %v2394 = vpack.c.b16 %v2298, %v2296
      %v2395 = vpack.c.b16 %v2301, %v2299
      %v2396 = vpack.c.b16 %v2302, %v2300
      %v2397 = vpack.c.b16 %v2305, %v2303
      %v2398 = vpack.c.b16 %v2306, %v2304
      %v2399 = vpack.c.b16 %v2309, %v2307
      %v2400 = vpack.c.b16 %v2310, %v2308
      %v2401 = vpack.c.b16 %v2313, %v2311
      %v2402 = vpack.c.b16 %v2314, %v2312
      %v2403 = vpack.c.b16 %v2317, %v2315
      %v2404 = vpack.c.b16 %v2318, %v2316
      %v2405 = vpack.c.b16 %v2321, %v2319
      %v2406 = vpack.c.b16 %v2322, %v2320
      %v2407 = vpack.c.b16 %v2325, %v2323
      %v2408 = vpack.c.b16 %v2326, %v2324
      %v2409 = vpack.c.b16 %v2329, %v2327
      %v2410 = vpack.c.b16 %v2330, %v2328
      %v2411 = vpack.c.b16 %v2333, %v2331
      %v2412 = vpack.c.b16 %v2334, %v2332
      %v2413 = vpack.c.b16 %v2337, %v2335
      %v2414 = vpack.c.b16 %v2338, %v2336
      %v2415 = vpack.c.b16 %v2341, %v2339
      %v2416 = vpack.c.b16 %v2342, %v2340
      %v2417 = vpack.c.b16 %v2345, %v2343
      %v2418 = vpack.c.b16 %v2346, %v2344
      %v2419 = vpack.c.b16 %v2349, %v2347
      %v2420 = vpack.c.b16 %v2350, %v2348
      %v2421 = vpack.c.b16 %v2353, %v2351
      %v2422 = vpack.c.b16 %v2354, %v2352
      %v2423 = vpack.c.b16 %v2357, %v2355
      %v2424 = vpack.c.b16 %v2358, %v2356
      %v2425 = vpack.c.b16 %v2361, %v2359
      %v2426 = vpack.c.b16 %v2362, %v2360
      %2491 = vmatprep.subr.bf16.mxu0 %v2364
      %2492 = vmatpush1.bf16.msra.mxu0 %v2363
      %2493 = vmatprep.subr.bf16.mxu0 %v2366
      %2494 = vmatpush1.bf16.msra.mxu0 %v2365
      %2495 = vmatprep.subr.bf16.mxu0 %v2368
      %2496 = vmatpush1.bf16.msra.mxu0 %v2367
      %2497 = vmatprep.subr.bf16.mxu0 %v2370
      %2498 = vmatpush1.bf16.msra.mxu0 %v2369
      %2499 = vmatprep.subr.bf16.mxu0 %v2372
      %2500 = vmatpush1.bf16.msra.mxu0 %v2371
      %2501 = vmatprep.subr.bf16.mxu0 %v2374
      %2502 = vmatpush1.bf16.msra.mxu0 %v2373
      %2503 = vmatprep.subr.bf16.mxu0 %v2376
      %2504 = vmatpush1.bf16.msra.mxu0 %v2375
      %2505 = vmatprep.subr.bf16.mxu0 %v2378
      %2506 = vmatpush1.bf16.msra.mxu0 %v2377
      %2507 = vmatprep.subr.bf16.mxu0 %v2380
      %2508 = vmatpush1.bf16.msra.mxu0 %v2379
      %2509 = vmatprep.subr.bf16.mxu0 %v2382
      %2510 = vmatpush1.bf16.msra.mxu0 %v2381
      %2511 = vmatprep.subr.bf16.mxu0 %v2384
      %2512 = vmatpush1.bf16.msra.mxu0 %v2383
      %2513 = vmatprep.subr.bf16.mxu0 %v2386
      %2514 = vmatpush1.bf16.msra.mxu0 %v2385
      %2515 = vmatprep.subr.bf16.mxu0 %v2388
      %2516 = vmatpush1.bf16.msra.mxu0 %v2387
      %2517 = vmatprep.subr.bf16.mxu0 %v2390
      %2518 = vmatpush1.bf16.msra.mxu0 %v2389
      %2519 = vmatprep.subr.bf16.mxu0 %v2392
      %2520 = vmatpush1.bf16.msra.mxu0 %v2391
      %2521 = vmatprep.subr.bf16.mxu0 %v2394
      %2522 = vmatpush1.bf16.msra.mxu0 %v2393
      %2523 = vmatprep.mubr.bf16.mxu0 %v2092
      %2524 = vmatmul.mubr.bf16.gmra.mrb[0].mxu0 %v2091
      %v2525 = vpop.f32.mrb[0].mxu0
      %v2526 = vadd.f32 %v2164, %v2525
      %v2527 = vpop.f32.mrb[0].mxu0
      %v2528 = vadd.f32 %v2168, %v2527
      %v2529 = vpop.f32.mrb[0].mxu0
      %v2530 = vadd.f32 %v2164, %v2529
      %v2531 = vpop.f32.mrb[0].mxu0
      %v2532 = vadd.f32 %v2168, %v2531
      %2533 = vdwg.mxu0
      %2534 = vmatprep.subr.bf16.mxu0 %v2396
      %2535 = vmatpush1.bf16.msra.mxu0 %v2395
      %2536 = vmatprep.subr.bf16.mxu0 %v2398
      %2537 = vmatpush1.bf16.msra.mxu0 %v2397
      %2538 = vmatprep.subr.bf16.mxu0 %v2400
      %2539 = vmatpush1.bf16.msra.mxu0 %v2399
      %2540 = vmatprep.subr.bf16.mxu0 %v2402
      %2541 = vmatpush1.bf16.msra.mxu0 %v2401
      %2542 = vmatprep.subr.bf16.mxu0 %v2404
      %2543 = vmatpush1.bf16.msra.mxu0 %v2403
      %2544 = vmatprep.subr.bf16.mxu0 %v2406
      %2545 = vmatpush1.bf16.msra.mxu0 %v2405
      %2546 = vmatprep.subr.bf16.mxu0 %v2408
      %2547 = vmatpush1.bf16.msra.mxu0 %v2407
      %2548 = vmatprep.subr.bf16.mxu0 %v2410
      %2549 = vmatpush1.bf16.msra.mxu0 %v2409
      %2550 = vmatprep.subr.bf16.mxu0 %v2412
      %2551 = vmatpush1.bf16.msra.mxu0 %v2411
      %2552 = vmatprep.subr.bf16.mxu0 %v2414
      %2553 = vmatpush1.bf16.msra.mxu0 %v2413
      %2554 = vmatprep.subr.bf16.mxu0 %v2416
      %2555 = vmatpush1.bf16.msra.mxu0 %v2415
      %2556 = vmatprep.subr.bf16.mxu0 %v2418
      %2557 = vmatpush1.bf16.msra.mxu0 %v2417
      %2558 = vmatprep.subr.bf16.mxu0 %v2420
      %2559 = vmatpush1.bf16.msra.mxu0 %v2419
      %2560 = vmatprep.subr.bf16.mxu0 %v2422
      %2561 = vmatpush1.bf16.msra.mxu0 %v2421
      %2562 = vmatprep.subr.bf16.mxu0 %v2424
      %2563 = vmatpush1.bf16.msra.mxu0 %v2423
      %2564 = vmatprep.subr.bf16.mxu0 %v2426
      %2565 = vmatpush1.bf16.msra.mxu0 %v2425
      %2566 = vmatprep.mubr.bf16.mxu0 %v2094
      %2567 = vmatmul.mubr.bf16.gmra.mrb[0].mxu0 %v2093
      %v2568 = vpop.f32.mrb[0].mxu0
      %v2569 = vadd.f32 %v2526, %v2568
      %v2570 = vpop.f32.mrb[0].mxu0
      %v2571 = vadd.f32 %v2528, %v2570
      %v2572 = vpop.f32.mrb[0].mxu0
      %v2573 = vadd.f32 %v2530, %v2572
      %v2574 = vpop.f32.mrb[0].mxu0
      %v2575 = vadd.f32 %v2532, %v2574
      %2576 = vdwg.mxu0
      %v2577 = vmax.f32 %v2569, 0.0
      %v2578 = vmax.f32 %v2571, 0.0
      %v2579 = vmax.f32 %v2573, 0.0
      %v2580 = vmax.f32 %v2575, 0.0
      %v2581 = vpack.c.bf16 %v2579, %v2577
      %v2582 = vpack.c.bf16 %v2580, %v2578
      %v2583 = vld [vmem:[#allocation9] sm:$0xf]
      %v2584 = vld [vmem:[#allocation9 + $0x4] sm:$0xf]
      %v2585 = vld [vmem:[#allocation9 + $0x8] sm:$0xf]
      %v2586 = vld [vmem:[#allocation9 + $0xc] sm:$0xf]
      %v2587 = vld [vmem:[#allocation9 + $0x10] sm:$0xf]
      %v2588 = vld [vmem:[#allocation9 + $0x14] sm:$0xf]
      %v2589 = vld [vmem:[#allocation9 + $0x18] sm:$0xf]
      %v2590 = vld [vmem:[#allocation9 + $0x1c] sm:$0xf]
      %v2591 = vld [vmem:[#allocation9 + $0x20] sm:$0xf]
      %v2592 = vld [vmem:[#allocation9 + $0x24] sm:$0xf]
      %v2593 = vld [vmem:[#allocation9 + $0x28] sm:$0xf]
      %v2594 = vld [vmem:[#allocation9 + $0x2c] sm:$0xf]
      %v2595 = vld [vmem:[#allocation9 + $0x30] sm:$0xf]
      %v2596 = vld [vmem:[#allocation9 + $0x34] sm:$0xf]
      %v2597 = vld [vmem:[#allocation9 + $0x38] sm:$0xf]
      %v2598 = vld [vmem:[#allocation9 + $0x3c] sm:$0xf]
      %v2599 = vld [vmem:[#allocation9 + $0x40] sm:$0xf]
      %v2600 = vld [vmem:[#allocation9 + $0x44] sm:$0xf]
      %v2601 = vld [vmem:[#allocation9 + $0x48] sm:$0xf]
      %v2602 = vld [vmem:[#allocation9 + $0x4c] sm:$0xf]
      %v2603 = vld [vmem:[#allocation9 + $0x50] sm:$0xf]
      %v2604 = vld [vmem:[#allocation9 + $0x54] sm:$0xf]
      %v2605 = vld [vmem:[#allocation9 + $0x58] sm:$0xf]
      %v2606 = vld [vmem:[#allocation9 + $0x5c] sm:$0xf]
      %v2607 = vld [vmem:[#allocation9 + $0x60] sm:$0xf]
      %v2608 = vld [vmem:[#allocation9 + $0x64] sm:$0xf]
      %v2609 = vld [vmem:[#allocation9 + $0x68] sm:$0xf]
      %v2610 = vld [vmem:[#allocation9 + $0x6c] sm:$0xf]
      %v2611 = vld [vmem:[#allocation9 + $0x70] sm:$0xf]
      %v2612 = vld [vmem:[#allocation9 + $0x74] sm:$0xf]
      %v2613 = vld [vmem:[#allocation9 + $0x78] sm:$0xf]
      %v2614 = vld [vmem:[#allocation9 + $0x7c] sm:$0xf]
      %v2615 = vld [vmem:[%s6] sm:$0x1]
      %v2617 = vlaneseq
      %v2618 = vshrl.u32 %v2617, 7
      %v2619 = vsub.s32 0, %v2618
      %v2620 = vrot.slane %v2615, %v2619
      %v2654 = vunpack.c.l.b16 %v2583
      %v2655 = vunpack.c.l.b16 %v2584
      %v2656 = vunpack.c.l.b16 %v2585
      %v2657 = vunpack.c.l.b16 %v2586
      %v2658 = vunpack.c.l.b16 %v2587
      %v2659 = vunpack.c.l.b16 %v2588
      %v2660 = vunpack.c.l.b16 %v2589
      %v2661 = vunpack.c.l.b16 %v2590
      %v2662 = vunpack.c.l.b16 %v2591
      %v2663 = vunpack.c.l.b16 %v2592
      %v2664 = vunpack.c.l.b16 %v2593
      %v2665 = vunpack.c.l.b16 %v2594
      %v2666 = vunpack.c.l.b16 %v2595
      %v2667 = vunpack.c.l.b16 %v2596
      %v2668 = vunpack.c.l.b16 %v2597
      %v2669 = vunpack.c.l.b16 %v2598
      %v2670 = vunpack.c.l.b16 %v2599
      %v2671 = vunpack.c.l.b16 %v2600
      %v2672 = vunpack.c.l.b16 %v2601
      %v2673 = vunpack.c.l.b16 %v2602
      %v2674 = vunpack.c.l.b16 %v2603
      %v2675 = vunpack.c.l.b16 %v2604
      %v2676 = vunpack.c.l.b16 %v2605
      %v2677 = vunpack.c.l.b16 %v2606
      %v2678 = vunpack.c.l.b16 %v2607
      %v2679 = vunpack.c.l.b16 %v2608
      %v2680 = vunpack.c.l.b16 %v2609
      %v2681 = vunpack.c.l.b16 %v2610
      %v2682 = vunpack.c.l.b16 %v2611
      %v2683 = vunpack.c.l.b16 %v2612
      %v2684 = vunpack.c.l.b16 %v2613
      %v2685 = vunpack.c.l.b16 %v2614
      %v2686 = vpack.c.b16 %v2655, %v2654
      %v2687 = vpack.c.b16 %v2657, %v2656
      %v2688 = vpack.c.b16 %v2659, %v2658
      %v2689 = vpack.c.b16 %v2661, %v2660
      %v2690 = vpack.c.b16 %v2663, %v2662
      %v2691 = vpack.c.b16 %v2665, %v2664
      %v2692 = vpack.c.b16 %v2667, %v2666
      %v2693 = vpack.c.b16 %v2669, %v2668
      %v2694 = vpack.c.b16 %v2671, %v2670
      %v2695 = vpack.c.b16 %v2673, %v2672
      %v2696 = vpack.c.b16 %v2675, %v2674
      %v2697 = vpack.c.b16 %v2677, %v2676
      %v2698 = vpack.c.b16 %v2679, %v2678
      %v2699 = vpack.c.b16 %v2681, %v2680
      %v2700 = vpack.c.b16 %v2683, %v2682
      %v2701 = vpack.c.b16 %v2685, %v2684
      %2718 = vmatprep.subr.bf16.mxu0 0
      %2719 = vmatpush1.bf16.msra.mxu0 %v2686
      %2720 = vmatprep.subr.bf16.mxu0 0
      %2721 = vmatpush1.bf16.msra.mxu0 %v2687
      %2722 = vmatprep.subr.bf16.mxu0 0
      %2723 = vmatpush1.bf16.msra.mxu0 %v2688
      %2724 = vmatprep.subr.bf16.mxu0 0
      %2725 = vmatpush1.bf16.msra.mxu0 %v2689
      %2726 = vmatprep.subr.bf16.mxu0 0
      %2727 = vmatpush1.bf16.msra.mxu0 %v2690
      %2728 = vmatprep.subr.bf16.mxu0 0
      %2729 = vmatpush1.bf16.msra.mxu0 %v2691
      %2730 = vmatprep.subr.bf16.mxu0 0
      %2731 = vmatpush1.bf16.msra.mxu0 %v2692
      %2732 = vmatprep.subr.bf16.mxu0 0
      %2733 = vmatpush1.bf16.msra.mxu0 %v2693
      %2734 = vmatprep.subr.bf16.mxu0 0
      %2735 = vmatpush1.bf16.msra.mxu0 %v2694
      %2736 = vmatprep.subr.bf16.mxu0 0
      %2737 = vmatpush1.bf16.msra.mxu0 %v2695
      %2738 = vmatprep.subr.bf16.mxu0 0
      %2739 = vmatpush1.bf16.msra.mxu0 %v2696
      %2740 = vmatprep.subr.bf16.mxu0 0
      %2741 = vmatpush1.bf16.msra.mxu0 %v2697
      %2742 = vmatprep.subr.bf16.mxu0 0
      %2743 = vmatpush1.bf16.msra.mxu0 %v2698
      %2744 = vmatprep.subr.bf16.mxu0 0
      %2745 = vmatpush1.bf16.msra.mxu0 %v2699
      %2746 = vmatprep.subr.bf16.mxu0 0
      %2747 = vmatpush1.bf16.msra.mxu0 %v2700
      %2748 = vmatprep.subr.bf16.mxu0 0
      %2749 = vmatpush1.bf16.msra.mxu0 %v2701
      %2750 = vmatprep.mubr.bf16.mxu0 %v2582
      %2751 = vmatmul.mubr.bf16.gmra.mrb[0].mxu0 %v2581
      %v2752 = vpop.f32.mrb[0].mxu0
      %v2753 = vadd.f32 %v2620, %v2752
      %v2754 = vpop.f32.mrb[0].mxu0
      %v2755 = vpop.f32.mrb[0].mxu0
      %v2756 = vadd.f32 %v2620, %v2755
      %v2757 = vpop.f32.mrb[0].mxu0
      %2758 = vdwg.mxu0
      %v2759 = vmax.f32 %v2753, 0.0
      %v2760 = vmax.f32 %v2756, 0.0
      %v2761 = vpack.c.bf16 %v2760, %v2759
      %v2762 = vld [vmem:[#allocation11] sm:$0xf]
      %v2763 = vld [vmem:[#allocation11 + $0x4] sm:$0xf]
      %v2764 = vld [vmem:[#allocation11 + $0x8] sm:$0xf]
      %v2765 = vld [vmem:[#allocation11 + $0xc] sm:$0xf]
      %v2766 = vld [vmem:[#allocation11 + $0x10] sm:$0xf]
      %v2767 = vld [vmem:[#allocation11 + $0x14] sm:$0xf]
      %v2768 = vld [vmem:[#allocation11 + $0x18] sm:$0xf]
      %v2769 = vld [vmem:[#allocation11 + $0x1c] sm:$0xf]
      %v2770 = vld [vmem:[#allocation11 + $0x20] sm:$0xf]
      %v2771 = vld [vmem:[#allocation11 + $0x24] sm:$0xf]
      %v2772 = vld [vmem:[#allocation11 + $0x28] sm:$0xf]
      %v2773 = vld [vmem:[#allocation11 + $0x2c] sm:$0xf]
      %v2774 = vld [vmem:[#allocation11 + $0x30] sm:$0xf]
      %v2775 = vld [vmem:[#allocation11 + $0x34] sm:$0xf]
      %v2776 = vld [vmem:[#allocation11 + $0x38] sm:$0xf]
      %v2777 = vld [vmem:[#allocation11 + $0x3c] sm:$0xf]
      %v2778 = vld [vmem:[%s8] sm:$0x1]
      %v2780 = vlaneseq
      %v2781 = vshrl.u32 %v2780, 7
      %v2782 = vsub.s32 0, %v2781
      %v2783 = vrot.slane %v2778, %v2782
      %v2801 = vunpack.c.l.b16 %v2762
      %v2802 = vunpack.c.l.b16 %v2763
      %v2803 = vunpack.c.l.b16 %v2764
      %v2804 = vunpack.c.l.b16 %v2765
      %v2805 = vunpack.c.l.b16 %v2766
      %v2806 = vunpack.c.l.b16 %v2767
      %v2807 = vunpack.c.l.b16 %v2768
      %v2808 = vunpack.c.l.b16 %v2769
      %v2809 = vunpack.c.l.b16 %v2770
      %v2810 = vunpack.c.l.b16 %v2771
      %v2811 = vunpack.c.l.b16 %v2772
      %v2812 = vunpack.c.l.b16 %v2773
      %v2813 = vunpack.c.l.b16 %v2774
      %v2814 = vunpack.c.l.b16 %v2775
      %v2815 = vunpack.c.l.b16 %v2776
      %v2816 = vunpack.c.l.b16 %v2777
      %v2817 = vpack.c.b16 %v2802, %v2801
      %v2818 = vpack.c.b16 %v2804, %v2803
      %v2819 = vpack.c.b16 %v2806, %v2805
      %v2820 = vpack.c.b16 %v2808, %v2807
      %v2821 = vpack.c.b16 %v2810, %v2809
      %v2822 = vpack.c.b16 %v2812, %v2811
      %v2823 = vpack.c.b16 %v2814, %v2813
      %v2824 = vpack.c.b16 %v2816, %v2815
      %2833 = vmatprep.subr.bf16.mxu0 0
      %2834 = vmatpush1.bf16.msra.mxu0 %v2817
      %2835 = vmatprep.subr.bf16.mxu0 0
      %2836 = vmatpush1.bf16.msra.mxu0 %v2818
      %2837 = vmatprep.subr.bf16.mxu0 0
      %2838 = vmatpush1.bf16.msra.mxu0 %v2819
      %2839 = vmatprep.subr.bf16.mxu0 0
      %2840 = vmatpush1.bf16.msra.mxu0 %v2820
      %2841 = vmatprep.subr.bf16.mxu0 0
      %2842 = vmatpush1.bf16.msra.mxu0 %v2821
      %2843 = vmatprep.subr.bf16.mxu0 0
      %2844 = vmatpush1.bf16.msra.mxu0 %v2822
      %2845 = vmatprep.subr.bf16.mxu0 0
      %2846 = vmatpush1.bf16.msra.mxu0 %v2823
      %2847 = vmatprep.subr.bf16.mxu0 0
      %2848 = vmatpush1.bf16.msra.mxu0 %v2824
      %2849 = vmatprep.subr.bf16.mxu0 0
      %2850 = vmatpush1.bf16.msra.mxu0 0
      %2851 = vmatprep.subr.bf16.mxu0 0
      %2852 = vmatpush1.bf16.msra.mxu0 0
      %2853 = vmatprep.subr.bf16.mxu0 0
      %2854 = vmatpush1.bf16.msra.mxu0 0
      %2855 = vmatprep.subr.bf16.mxu0 0
      %2856 = vmatpush1.bf16.msra.mxu0 0
      %2857 = vmatprep.subr.bf16.mxu0 0
      %2858 = vmatpush1.bf16.msra.mxu0 0
      %2859 = vmatprep.subr.bf16.mxu0 0
      %2860 = vmatpush1.bf16.msra.mxu0 0
      %2861 = vmatprep.subr.bf16.mxu0 0
      %2862 = vmatpush1.bf16.msra.mxu0 0
      %2863 = vmatprep.subr.bf16.mxu0 0
      %2864 = vmatpush1.bf16.msra.mxu0 0
      %2865 = vmatprep.mubr.bf16.mxu0 0
      %2866 = vmatmul.mubr.bf16.gmra.mrb[0].mxu0 %v2761
      %v2867 = vpop.f32.mrb[0].mxu0
      %v2868 = vadd.f32 %v2783, %v2867
      %v2869 = vpop.f32.mrb[0].mxu0
      %v2870 = vpop.f32.mrb[0].mxu0
      %v2871 = vadd.f32 %v2783, %v2870
      %v2872 = vpop.f32.mrb[0].mxu0
      %2873 = vdwg.mxu0
      %2874 = vst [vmem:[#allocation12] sm:$0xff] %v2868
      %2875 = vst [vmem:[#allocation12 + $0x8] sm:$0xff] %v2871
    $region65: #{tpu_custom_call.1} parent=1 // pred_fallthru
      _
    // Predicated region
    $region66: #{tpu_custom_call.1} parent=1 // pred_check
      _
    $region67: #{tpu_custom_call.1} parent=1 // pred_check_branch
      %2877 = sbr.rel (0) target = $region69
    $region68: #{tpu_custom_call.1} parent=1 // pred_region
      %s2879 = ssub.s32 256, 256
      %2880 = vsyncadd [#allocation5], %s2879
      %s2881 = sshll.u32 [#allocation12], 4
      %s2882 = int_to_ptr.vmem [resolvable:$true] %s2881
      %2887 = dma.vmem_to_hbm [thread:$0]  %s2882, 256, %s9, [#allocation5], 128, 128, 8
    $region69: #{tpu_custom_call.1} parent=1 // pred_fallthru
      _
    // Predicated region
    $region70: #{tpu_custom_call.1} parent=1 // pred_check
      _
    $region71: #{tpu_custom_call.1} parent=1 // pred_check_branch
      %2889 = sbr.rel (0) target = $region73
    $region72: #{tpu_custom_call.1} parent=1 // pred_region
      %2890 = dma.done [#allocation5], 256
    $region73: #{tpu_custom_call.1} parent=1 // pred_fallthru
      _
    %2891 = vsyncpa [#allocation4], 1
    %2892 = vsyncpa [#allocation7], 1
    %2893 = vsyncpa [#allocation10], 1
    %2894 = vsyncpa [#allocation5], 1

// kernel: tpu_custom_call.1
$region0: #{tpu_custom_call.1}
  #allocation0 [shape = 'u32[]', space=smem, size = 0x4, offset = 0x4, fixed_abs, tag = 'smem constant byte address 0x4 - core index']
  #allocation1 [shape = 'u32[144,128]{1,0:T(1,128)}', space=vmem, size = 0x12000, scoped, tag = 'internal scratch']
  #allocation2 [shape = 'f32[16,512]{1,0:T(8,128)}', space=vmem, size = 0x8000, scoped, tag = 'scratch operand']
  %s0 = inlined_call_operand.hbm [shape: f32[16,1024], index: 0, kind: input, shape index: {}]
  %s1 = inlined_call_operand.hbm [shape: bf16[1024,512], index: 1, kind: input, shape index: {}]
  %s2 = inlined_call_operand.vmem [shape: f32[1,512], index: 2, kind: input, shape index: {}]
  %s3 = inlined_call_operand.hbm [shape: bf16[512,256], index: 3, kind: input, shape index: {}]
  %s4 = inlined_call_operand.vmem [shape: f32[1,256], index: 4, kind: input, shape index: {}]
  %s5 = inlined_call_operand.hbm [shape: bf16[256,128], index: 5, kind: input, shape index: {}]
  %s6 = inlined_call_operand.vmem [shape: f32[1,128], index: 6, kind: input, shape index: {}]
  %s7 = inlined_call_operand.hbm [shape: bf16[128,128], index: 7, kind: input, shape index: {}]
  %s8 = inlined_call_operand.vmem [shape: f32[1,128], index: 8, kind: input, shape index: {}]
  %s9 = inlined_call_operand.hbm [shape: f32[16,128], index: 9, kind: output, shape index: {}]
  %s10 = sld [smem:[#allocation0]]
  $region74: #{tpu_custom_call.1} parent=0
    _
  %s12 = ssub.s32 1, %s10
  %s13 = scalar_select 0, %s12, %s10
  $region1: #{tpu_custom_call.1} parent=0
    #allocation3 [shape = 'u8[65536]{0}', space=vmem, size = 0x10000, scoped, tag = 'input window, operand 0, single buffered']
    #allocation4 [shape = 's32[1]{0}', space=sflag, size = 0x4, scoped, tag = 'scoped memory for tpu_custom_call.1']
    #allocation5 [shape = 's32[1]{0}', space=sflag, size = 0x4, scoped, tag = 'scoped memory for tpu_custom_call.1']
    #allocation6 [shape = 'u8[1048576]{0}', space=vmem, size = 0x100000, scoped, tag = 'input window, operand 1, single buffered']
    #allocation7 [shape = 's32[1]{0}', space=sflag, size = 0x4, scoped, tag = 'scoped memory for tpu_custom_call.1']
    #allocation8 [shape = 'u8[262144]{0}', space=vmem, size = 0x40000, scoped, tag = 'input window, operand 3, single buffered']
    #allocation9 [shape = 'u8[65536]{0}', space=vmem, size = 0x10000, scoped, tag = 'input window, operand 5, single buffered']
    #allocation10 [shape = 's32[1]{0}', space=sflag, size = 0x4, scoped, tag = 'scoped memory for tpu_custom_call.1']
    #allocation11 [shape = 'u8[32768]{0}', space=vmem, size = 0x8000, scoped, tag = 'input window, operand 7, single buffered']
    #allocation12 [shape = 'u8[8192]{0}', space=vmem, size = 0x2000, scoped, tag = 'output window, operand 0, single buffered']
    %14 = vsyncpa [#allocation4], 0
    %15 = vsyncpa [#allocation7], 0
    %16 = vsyncpa [#allocation10], 0
    %17 = vsyncpa [#allocation5], 0
    // Predicated region
    $region2: #{tpu_custom_call.1} parent=1 // pred_check
      _
    $region3: #{tpu_custom_call.1} parent=1 // pred_check_branch
      %19 = sbr.rel (0) target = $region5
    $region4: #{tpu_custom_call.1} parent=1 // pred_region
      %s21 = ssub.s32 2048, 2048
      %22 = vsyncadd [#allocation4], %s21
      %s23 = sshll.u32 [#allocation3], 4
      %s24 = int_to_ptr.vmem [resolvable:$true] %s23
      %29 = dma.hbm_to_vmem [thread:$0]  %s0, 2048, %s24, [#allocation4], 1024, 1024, 64
    $region5: #{tpu_custom_call.1} parent=1 // pred_fallthru
      _
    // Predicated region
    $region6: #{tpu_custom_call.1} parent=1 // pred_check
      _
    $region7: #{tpu_custom_call.1} parent=1 // pred_check_branch
      %31 = sbr.rel (0) target = $region9
    $region8: #{tpu_custom_call.1} parent=1 // pred_region
      %s33 = ssub.s32 32768, 32768
      %34 = vsyncadd [#allocation7], %s33
      %s35 = sshll.u32 [#allocation6], 4
      %s36 = int_to_ptr.vmem [resolvable:$true] %s35
      %41 = dma.hbm_to_vmem [thread:$0]  %s1, 32768, %s36, [#allocation7], 256, 256, 16
    $region9: #{tpu_custom_call.1} parent=1 // pred_fallthru
      _
    // Predicated region
    $region10: #{tpu_custom_call.1} parent=1 // pred_check
      _
    $region11: #{tpu_custom_call.1} parent=1 // pred_check_branch
      %43 = sbr.rel (0) target = $region13
    $region12: #{tpu_custom_call.1} parent=1 // pred_region
      _
    $region13: #{tpu_custom_call.1} parent=1 // pred_fallthru
      _
    // Predicated region
    $region14: #{tpu_custom_call.1} parent=1 // pred_check
      _
    $region15: #{tpu_custom_call.1} parent=1 // pred_check_branch
      %45 = sbr.rel (0) target = $region17
    $region16: #{tpu_custom_call.1} parent=1 // pred_region
      %s47 = ssub.s32 8192, 8192
      %48 = vsyncadd [#allocation7], %s47
      %s49 = sshll.u32 [#allocation8], 4
      %s50 = int_to_ptr.vmem [resolvable:$true] %s49
      %55 = dma.hbm_to_vmem [thread:$0]  %s3, 8192, %s50, [#allocation7], 128, 128, 8
    $region17: #{tpu_custom_call.1} parent=1 // pred_fallthru
      _
    // Predicated region
    $region18: #{tpu_custom_call.1} parent=1 // pred_check
      _
    $region19: #{tpu_custom_call.1} parent=1 // pred_check_branch
      %57 = sbr.rel (0) target = $region21
    $region20: #{tpu_custom_call.1} parent=1 // pred_region
      _
    $region21: #{tpu_custom_call.1} parent=1 // pred_fallthru
      _
    // Predicated region
    $region22: #{tpu_custom_call.1} parent=1 // pred_check
      _
    $region23: #{tpu_custom_call.1} parent=1 // pred_check_branch
      %59 = sbr.rel (0) target = $region25
    $region24: #{tpu_custom_call.1} parent=1 // pred_region
      %s61 = ssub.s32 2048, 2048
      %62 = vsyncadd [#allocation10], %s61
      %s63 = sshll.u32 [#allocation9], 4
      %s64 = int_to_ptr.vmem [resolvable:$true] %s63
      %69 = dma.hbm_to_vmem [thread:$0]  %s5, 2048, %s64, [#allocation10], 64, 64, 4
    $region25: #{tpu_custom_call.1} parent=1 // pred_fallthru
      _
    // Predicated region
    $region26: #{tpu_custom_call.1} parent=1 // pred_check
      _
    $region27: #{tpu_custom_call.1} parent=1 // pred_check_branch
      %71 = sbr.rel (0) target = $region29
    $region28: #{tpu_custom_call.1} parent=1 // pred_region
      _
    $region29: #{tpu_custom_call.1} parent=1 // pred_fallthru
      _
    // Predicated region
    $region30: #{tpu_custom_call.1} parent=1 // pred_check
      _
    $region31: #{tpu_custom_call.1} parent=1 // pred_check_branch
      %73 = sbr.rel (0) target = $region33
    $region32: #{tpu_custom_call.1} parent=1 // pred_region
      %s75 = ssub.s32 1024, 1024
      %76 = vsyncadd [#allocation10], %s75
      %s77 = sshll.u32 [#allocation11], 4
      %s78 = int_to_ptr.vmem [resolvable:$true] %s77
      %83 = dma.hbm_to_vmem [thread:$0]  %s7, 1024, %s78, [#allocation10], 64, 64, 4
    $region33: #{tpu_custom_call.1} parent=1 // pred_fallthru
      _
    // Predicated region
    $region34: #{tpu_custom_call.1} parent=1 // pred_check
      _
    $region35: #{tpu_custom_call.1} parent=1 // pred_check_branch
      %85 = sbr.rel (0) target = $region37
    $region36: #{tpu_custom_call.1} parent=1 // pred_region
      _
    $region37: #{tpu_custom_call.1} parent=1 // pred_fallthru
      _
    // Predicated region
    $region38: #{tpu_custom_call.1} parent=1 // pred_check
      _
    $region39: #{tpu_custom_call.1} parent=1 // pred_check_branch
      %87 = sbr.rel (0) target = $region41
    $region40: #{tpu_custom_call.1} parent=1 // pred_region
      %88 = dma.done [#allocation4], 2048
    $region41: #{tpu_custom_call.1} parent=1 // pred_fallthru
      _
    // Predicated region
    $region42: #{tpu_custom_call.1} parent=1 // pred_check
      _
    $region43: #{tpu_custom_call.1} parent=1 // pred_check_branch
      %90 = sbr.rel (0) target = $region45
    $region44: #{tpu_custom_call.1} parent=1 // pred_region
      %91 = dma.done [#allocation7], 32768
    $region45: #{tpu_custom_call.1} parent=1 // pred_fallthru
      _
    // Predicated region
    $region46: #{tpu_custom_call.1} parent=1 // pred_check
      _
    $region47: #{tpu_custom_call.1} parent=1 // pred_check_branch
      %93 = sbr.rel (0) target = $region49
    $region48: #{tpu_custom_call.1} parent=1 // pred_region
      %94 = dma.done [#allocation7], 8192
    $region49: #{tpu_custom_call.1} parent=1 // pred_fallthru
      _
    // Predicated region
    $region50: #{tpu_custom_call.1} parent=1 // pred_check
      _
    $region51: #{tpu_custom_call.1} parent=1 // pred_check_branch
      %96 = sbr.rel (0) target = $region53
    $region52: #{tpu_custom_call.1} parent=1 // pred_region
      %97 = dma.done [#allocation10], 2048
    $region53: #{tpu_custom_call.1} parent=1 // pred_fallthru
      _
    // Predicated region
    $region54: #{tpu_custom_call.1} parent=1 // pred_check
      _
    $region55: #{tpu_custom_call.1} parent=1 // pred_check_branch
      %99 = sbr.rel (0) target = $region57
    $region56: #{tpu_custom_call.1} parent=1 // pred_region
      %100 = dma.done [#allocation10], 1024
    $region57: #{tpu_custom_call.1} parent=1 // pred_fallthru
      _
    %p102 = scmp.eq.s32.totalorder 0, 0
    // Predicated region
    $region58: #{tpu_custom_call.1} parent=1 // pred_check
      %p103 = pneg %p102
    $region59: #{tpu_custom_call.1} parent=1 // pred_check_branch
      %105 = sbr.rel (%p103) target = $region61
    $region60: #{tpu_custom_call.1} parent=1 // pred_region
      %106 = vst [vmem:[#allocation2] sm:$0xff] 0.0
      %107 = vst [vmem:[#allocation2 + $0x8] sm:$0xff] 0.0
      %108 = vst [vmem:[#allocation2 + $0x10] sm:$0xff] 0.0
      %109 = vst [vmem:[#allocation2 + $0x18] sm:$0xff] 0.0
      %110 = vst [vmem:[#allocation2 + $0x20] sm:$0xff] 0.0
      %111 = vst [vmem:[#allocation2 + $0x28] sm:$0xff] 0.0
      %112 = vst [vmem:[#allocation2 + $0x30] sm:$0xff] 0.0
      %113 = vst [vmem:[#allocation2 + $0x38] sm:$0xff] 0.0
    $region61: #{tpu_custom_call.1} parent=1 // pred_fallthru
      _
    %v114 = vld [vmem:[#allocation3] sm:$0xff]
    %v115 = vld [vmem:[#allocation3 + $0x8] sm:$0xff]
    %v116 = vld [vmem:[#allocation3 + $0x10] sm:$0xff]
    %v117 = vld [vmem:[#allocation3 + $0x18] sm:$0xff]
    %v118 = vld [vmem:[#allocation3 + $0x20] sm:$0xff]
    %v119 = vld [vmem:[#allocation3 + $0x28] sm:$0xff]
    %v120 = vld [vmem:[#allocation3 + $0x30] sm:$0xff]
    %v121 = vld [vmem:[#allocation3 + $0x38] sm:$0xff]
    %v122 = vld [vmem:[#allocation3 + $0x40] sm:$0xff]
    %v123 = vld [vmem:[#allocation3 + $0x48] sm:$0xff]
    %v124 = vld [vmem:[#allocation3 + $0x50] sm:$0xff]
    %v125 = vld [vmem:[#allocation3 + $0x58] sm:$0xff]
    %v126 = vld [vmem:[#allocation3 + $0x60] sm:$0xff]
    %v127 = vld [vmem:[#allocation3 + $0x68] sm:$0xff]
    %v128 = vld [vmem:[#allocation3 + $0x70] sm:$0xff]
    %v129 = vld [vmem:[#allocation3 + $0x78] sm:$0xff]
    %v130 = vpack.c.bf16 %v122, %v114
    %v131 = vpack.c.bf16 %v123, %v115
    %v132 = vpack.c.bf16 %v124, %v116
    %v133 = vpack.c.bf16 %v125, %v117
    %v134 = vpack.c.bf16 %v126, %v118
    %v135 = vpack.c.bf16 %v127, %v119
    %v136 = vpack.c.bf16 %v128, %v120
    %v137 = vpack.c.bf16 %v129, %v121
    %v138 = vld [vmem:[#allocation2] sm:$0xff]
    %v139 = vld [vmem:[#allocation2 + $0x8] sm:$0xff]
    %v140 = vld [vmem:[#allocation2 + $0x10] sm:$0xff]
    %v141 = vld [vmem:[#allocation2 + $0x18] sm:$0xff]
    %v142 = vld [vmem:[#allocation2 + $0x20] sm:$0xff]
    %v143 = vld [vmem:[#allocation2 + $0x28] sm:$0xff]
    %v144 = vld [vmem:[#allocation2 + $0x30] sm:$0xff]
    %v145 = vld [vmem:[#allocation2 + $0x38] sm:$0xff]
    %v146 = vld [vmem:[#allocation6] sm:$0xff]
    %v147 = vld [vmem:[#allocation6 + $0x8] sm:$0xff]
    %v148 = vld [vmem:[#allocation6 + $0x10] sm:$0xff]
    %v149 = vld [vmem:[#allocation6 + $0x18] sm:$0xff]
    %v150 = vld [vmem:[#allocation6 + $0x20] sm:$0xff]
    %v151 = vld [vmem:[#allocation6 + $0x28] sm:$0xff]
    %v152 = vld [vmem:[#allocation6 + $0x30] sm:$0xff]
    %v153 = vld [vmem:[#allocation6 + $0x38] sm:$0xff]
    %v154 = vld [vmem:[#allocation6 + $0x40] sm:$0xff]
    %v155 = vld [vmem:[#allocation6 + $0x48] sm:$0xff]
    %v156 = vld [vmem:[#allocation6 + $0x50] sm:$0xff]
    %v157 = vld [vmem:[#allocation6 + $0x58] sm:$0xff]
    %v158 = vld [vmem:[#allocation6 + $0x60] sm:$0xff]
    %v159 = vld [vmem:[#allocation6 + $0x68] sm:$0xff]
    %v160 = vld [vmem:[#allocation6 + $0x70] sm:$0xff]
    %v161 = vld [vmem:[#allocation6 + $0x78] sm:$0xff]
    %v162 = vld [vmem:[#allocation6 + $0x80] sm:$0xff]
    %v163 = vld [vmem:[#allocation6 + $0x88] sm:$0xff]
    %v164 = vld [vmem:[#allocation6 + $0x90] sm:$0xff]
    %v165 = vld [vmem:[#allocation6 + $0x98] sm:$0xff]
    %v166 = vld [vmem:[#allocation6 + $0xa0] sm:$0xff]
    %v167 = vld [vmem:[#allocation6 + $0xa8] sm:$0xff]
    %v168 = vld [vmem:[#allocation6 + $0xb0] sm:$0xff]
    %v169 = vld [vmem:[#allocation6 + $0xb8] sm:$0xff]
    %v170 = vld [vmem:[#allocation6 + $0xc0] sm:$0xff]
    %v171 = vld [vmem:[#allocation6 + $0xc8] sm:$0xff]
    %v172 = vld [vmem:[#allocation6 + $0xd0] sm:$0xff]
    %v173 = vld [vmem:[#allocation6 + $0xd8] sm:$0xff]
    %v174 = vld [vmem:[#allocation6 + $0xe0] sm:$0xff]
    %v175 = vld [vmem:[#allocation6 + $0xe8] sm:$0xff]
    %v176 = vld [vmem:[#allocation6 + $0xf0] sm:$0xff]
    %v177 = vld [vmem:[#allocation6 + $0xf8] sm:$0xff]
    %v178 = vld [vmem:[#allocation6 + $0x100] sm:$0xff]
    %v179 = vld [vmem:[#allocation6 + $0x108] sm:$0xff]
    %v180 = vld [vmem:[#allocation6 + $0x110] sm:$0xff]
    %v181 = vld [vmem:[#allocation6 + $0x118] sm:$0xff]
    %v182 = vld [vmem:[#allocation6 + $0x120] sm:$0xff]
    %v183 = vld [vmem:[#allocation6 + $0x128] sm:$0xff]
    %v184 = vld [vmem:[#allocation6 + $0x130] sm:$0xff]
    %v185 = vld [vmem:[#allocation6 + $0x138] sm:$0xff]
    %v186 = vld [vmem:[#allocation6 + $0x140] sm:$0xff]
    %v187 = vld [vmem:[#allocation6 + $0x148] sm:$0xff]
    %v188 = vld [vmem:[#allocation6 + $0x150] sm:$0xff]
    %v189 = vld [vmem:[#allocation6 + $0x158] sm:$0xff]
    %v190 = vld [vmem:[#allocation6 + $0x160] sm:$0xff]
    %v191 = vld [vmem:[#allocation6 + $0x168] sm:$0xff]
    %v192 = vld [vmem:[#allocation6 + $0x170] sm:$0xff]
    %v193 = vld [vmem:[#allocation6 + $0x178] sm:$0xff]
    %v194 = vld [vmem:[#allocation6 + $0x180] sm:$0xff]
    %v195 = vld [vmem:[#allocation6 + $0x188] sm:$0xff]
    %v196 = vld [vmem:[#allocation6 + $0x190] sm:$0xff]
    %v197 = vld [vmem:[#allocation6 + $0x198] sm:$0xff]
    %v198 = vld [vmem:[#allocation6 + $0x1a0] sm:$0xff]
    %v199 = vld [vmem:[#allocation6 + $0x1a8] sm:$0xff]
    %v200 = vld [vmem:[#allocation6 + $0x1b0] sm:$0xff]
    %v201 = vld [vmem:[#allocation6 + $0x1b8] sm:$0xff]
    %v202 = vld [vmem:[#allocation6 + $0x1c0] sm:$0xff]
    %v203 = vld [vmem:[#allocation6 + $0x1c8] sm:$0xff]
    %v204 = vld [vmem:[#allocation6 + $0x1d0] sm:$0xff]
    %v205 = vld [vmem:[#allocation6 + $0x1d8] sm:$0xff]
    %v206 = vld [vmem:[#allocation6 + $0x1e0] sm:$0xff]
    %v207 = vld [vmem:[#allocation6 + $0x1e8] sm:$0xff]
    %v208 = vld [vmem:[#allocation6 + $0x1f0] sm:$0xff]
    %v209 = vld [vmem:[#allocation6 + $0x1f8] sm:$0xff]
    %v210 = vld [vmem:[#allocation6 + $0x200] sm:$0xff]
    %v211 = vld [vmem:[#allocation6 + $0x208] sm:$0xff]
    %v212 = vld [vmem:[#allocation6 + $0x210] sm:$0xff]
    %v213 = vld [vmem:[#allocation6 + $0x218] sm:$0xff]
    %v214 = vld [vmem:[#allocation6 + $0x220] sm:$0xff]
    %v215 = vld [vmem:[#allocation6 + $0x228] sm:$0xff]
    %v216 = vld [vmem:[#allocation6 + $0x230] sm:$0xff]
    %v217 = vld [vmem:[#allocation6 + $0x238] sm:$0xff]
    %v218 = vld [vmem:[#allocation6 + $0x240] sm:$0xff]
    %v219 = vld [vmem:[#allocation6 + $0x248] sm:$0xff]
    %v220 = vld [vmem:[#allocation6 + $0x250] sm:$0xff]
    %v221 = vld [vmem:[#allocation6 + $0x258] sm:$0xff]
    %v222 = vld [vmem:[#allocation6 + $0x260] sm:$0xff]
    %v223 = vld [vmem:[#allocation6 + $0x268] sm:$0xff]
    %v224 = vld [vmem:[#allocation6 + $0x270] sm:$0xff]
    %v225 = vld [vmem:[#allocation6 + $0x278] sm:$0xff]
    %v226 = vld [vmem:[#allocation6 + $0x280] sm:$0xff]
    %v227 = vld [vmem:[#allocation6 + $0x288] sm:$0xff]
    %v228 = vld [vmem:[#allocation6 + $0x290] sm:$0xff]
    %v229 = vld [vmem:[#allocation6 + $0x298] sm:$0xff]
    %v230 = vld [vmem:[#allocation6 + $0x2a0] sm:$0xff]
    %v231 = vld [vmem:[#allocation6 + $0x2a8] sm:$0xff]
    %v232 = vld [vmem:[#allocation6 + $0x2b0] sm:$0xff]
    %v233 = vld [vmem:[#allocation6 + $0x2b8] sm:$0xff]
    %v234 = vld [vmem:[#allocation6 + $0x2c0] sm:$0xff]
    %v235 = vld [vmem:[#allocation6 + $0x2c8] sm:$0xff]
    %v236 = vld [vmem:[#allocation6 + $0x2d0] sm:$0xff]
    %v237 = vld [vmem:[#allocation6 + $0x2d8] sm:$0xff]
    %v238 = vld [vmem:[#allocation6 + $0x2e0] sm:$0xff]
    %v239 = vld [vmem:[#allocation6 + $0x2e8] sm:$0xff]
    %v240 = vld [vmem:[#allocation6 + $0x2f0] sm:$0xff]
    %v241 = vld [vmem:[#allocation6 + $0x2f8] sm:$0xff]
    %v242 = vld [vmem:[#allocation6 + $0x300] sm:$0xff]
    %v243 = vld [vmem:[#allocation6 + $0x308] sm:$0xff]
    %v244 = vld [vmem:[#allocation6 + $0x310] sm:$0xff]
    %v245 = vld [vmem:[#allocation6 + $0x318] sm:$0xff]
    %v246 = vld [vmem:[#allocation6 + $0x320] sm:$0xff]
    %v247 = vld [vmem:[#allocation6 + $0x328] sm:$0xff]
    %v248 = vld [vmem:[#allocation6 + $0x330] sm:$0xff]
    %v249 = vld [vmem:[#allocation6 + $0x338] sm:$0xff]
    %v250 = vld [vmem:[#allocation6 + $0x340] sm:$0xff]
    %v251 = vld [vmem:[#allocation6 + $0x348] sm:$0xff]
    %v252 = vld [vmem:[#allocation6 + $0x350] sm:$0xff]
    %v253 = vld [vmem:[#allocation6 + $0x358] sm:$0xff]
    %v254 = vld [vmem:[#allocation6 + $0x360] sm:$0xff]
    %v255 = vld [vmem:[#allocation6 + $0x368] sm:$0xff]
    %v256 = vld [vmem:[#allocation6 + $0x370] sm:$0xff]
    %v257 = vld [vmem:[#allocation6 + $0x378] sm:$0xff]
    %v258 = vld [vmem:[#allocation6 + $0x380] sm:$0xff]
    %v259 = vld [vmem:[#allocation6 + $0x388] sm:$0xff]
    %v260 = vld [vmem:[#allocation6 + $0x390] sm:$0xff]
    %v261 = vld [vmem:[#allocation6 + $0x398] sm:$0xff]
    %v262 = vld [vmem:[#allocation6 + $0x3a0] sm:$0xff]
    %v263 = vld [vmem:[#allocation6 + $0x3a8] sm:$0xff]
    %v264 = vld [vmem:[#allocation6 + $0x3b0] sm:$0xff]
    %v265 = vld [vmem:[#allocation6 + $0x3b8] sm:$0xff]
    %v266 = vld [vmem:[#allocation6 + $0x3c0] sm:$0xff]
    %v267 = vld [vmem:[#allocation6 + $0x3c8] sm:$0xff]
    %v268 = vld [vmem:[#allocation6 + $0x3d0] sm:$0xff]
    %v269 = vld [vmem:[#allocation6 + $0x3d8] sm:$0xff]
    %v270 = vld [vmem:[#allocation6 + $0x3e0] sm:$0xff]
    %v271 = vld [vmem:[#allocation6 + $0x3e8] sm:$0xff]
    %v272 = vld [vmem:[#allocation6 + $0x3f0] sm:$0xff]
    %v273 = vld [vmem:[#allocation6 + $0x3f8] sm:$0xff]
    %v274 = vld [vmem:[#allocation6 + $0x400] sm:$0xff]
    %v275 = vld [vmem:[#allocation6 + $0x408] sm:$0xff]
    %v276 = vld [vmem:[#allocation6 + $0x410] sm:$0xff]
    %v277 = vld [vmem:[#allocation6 + $0x418] sm:$0xff]
    %v278 = vld [vmem:[#allocation6 + $0x420] sm:$0xff]
    %v279 = vld [vmem:[#allocation6 + $0x428] sm:$0xff]
    %v280 = vld [vmem:[#allocation6 + $0x430] sm:$0xff]
    %v281 = vld [vmem:[#allocation6 + $0x438] sm:$0xff]
    %v282 = vld [vmem:[#allocation6 + $0x440] sm:$0xff]
    %v283 = vld [vmem:[#allocation6 + $0x448] sm:$0xff]
    %v284 = vld [vmem:[#allocation6 + $0x450] sm:$0xff]
    %v285 = vld [vmem:[#allocation6 + $0x458] sm:$0xff]
    %v286 = vld [vmem:[#allocation6 + $0x460] sm:$0xff]
    %v287 = vld [vmem:[#allocation6 + $0x468] sm:$0xff]
    %v288 = vld [vmem:[#allocation6 + $0x470] sm:$0xff]
    %v289 = vld [vmem:[#allocation6 + $0x478] sm:$0xff]
    %v290 = vld [vmem:[#allocation6 + $0x480] sm:$0xff]
    %v291 = vld [vmem:[#allocation6 + $0x488] sm:$0xff]
    %v292 = vld [vmem:[#allocation6 + $0x490] sm:$0xff]
    %v293 = vld [vmem:[#allocation6 + $0x498] sm:$0xff]
    %v294 = vld [vmem:[#allocation6 + $0x4a0] sm:$0xff]
    %v295 = vld [vmem:[#allocation6 + $0x4a8] sm:$0xff]
    %v296 = vld [vmem:[#allocation6 + $0x4b0] sm:$0xff]
    %v297 = vld [vmem:[#allocation6 + $0x4b8] sm:$0xff]
    %v298 = vld [vmem:[#allocation6 + $0x4c0] sm:$0xff]
    %v299 = vld [vmem:[#allocation6 + $0x4c8] sm:$0xff]
    %v300 = vld [vmem:[#allocation6 + $0x4d0] sm:$0xff]
    %v301 = vld [vmem:[#allocation6 + $0x4d8] sm:$0xff]
    %v302 = vld [vmem:[#allocation6 + $0x4e0] sm:$0xff]
    %v303 = vld [vmem:[#allocation6 + $0x4e8] sm:$0xff]
    %v304 = vld [vmem:[#allocation6 + $0x4f0] sm:$0xff]
    %v305 = vld [vmem:[#allocation6 + $0x4f8] sm:$0xff]
    %v306 = vld [vmem:[#allocation6 + $0x500] sm:$0xff]
    %v307 = vld [vmem:[#allocation6 + $0x508] sm:$0xff]
    %v308 = vld [vmem:[#allocation6 + $0x510] sm:$0xff]
    %v309 = vld [vmem:[#allocation6 + $0x518] sm:$0xff]
    %v310 = vld [vmem:[#allocation6 + $0x520] sm:$0xff]
    %v311 = vld [vmem:[#allocation6 + $0x528] sm:$0xff]
    %v312 = vld [vmem:[#allocation6 + $0x530] sm:$0xff]
    %v313 = vld [vmem:[#allocation6 + $0x538] sm:$0xff]
    %v314 = vld [vmem:[#allocation6 + $0x540] sm:$0xff]
    %v315 = vld [vmem:[#allocation6 + $0x548] sm:$0xff]
    %v316 = vld [vmem:[#allocation6 + $0x550] sm:$0xff]
    %v317 = vld [vmem:[#allocation6 + $0x558] sm:$0xff]
    %v318 = vld [vmem:[#allocation6 + $0x560] sm:$0xff]
    %v319 = vld [vmem:[#allocation6 + $0x568] sm:$0xff]
    %v320 = vld [vmem:[#allocation6 + $0x570] sm:$0xff]
    %v321 = vld [vmem:[#allocation6 + $0x578] sm:$0xff]
    %v322 = vld [vmem:[#allocation6 + $0x580] sm:$0xff]
    %v323 = vld [vmem:[#allocation6 + $0x588] sm:$0xff]
    %v324 = vld [vmem:[#allocation6 + $0x590] sm:$0xff]
    %v325 = vld [vmem:[#allocation6 + $0x598] sm:$0xff]
    %v326 = vld [vmem:[#allocation6 + $0x5a0] sm:$0xff]
    %v327 = vld [vmem:[#allocation6 + $0x5a8] sm:$0xff]
    %v328 = vld [vmem:[#allocation6 + $0x5b0] sm:$0xff]
    %v329 = vld [vmem:[#allocation6 + $0x5b8] sm:$0xff]
    %v330 = vld [vmem:[#allocation6 + $0x5c0] sm:$0xff]
    %v331 = vld [vmem:[#allocation6 + $0x5c8] sm:$0xff]
    %v332 = vld [vmem:[#allocation6 + $0x5d0] sm:$0xff]
    %v333 = vld [vmem:[#allocation6 + $0x5d8] sm:$0xff]
    %v334 = vld [vmem:[#allocation6 + $0x5e0] sm:$0xff]
    %v335 = vld [vmem:[#allocation6 + $0x5e8] sm:$0xff]
    %v336 = vld [vmem:[#allocation6 + $0x5f0] sm:$0xff]
    %v337 = vld [vmem:[#allocation6 + $0x5f8] sm:$0xff]
    %v338 = vld [vmem:[#allocation6 + $0x600] sm:$0xff]
    %v339 = vld [vmem:[#allocation6 + $0x608] sm:$0xff]
    %v340 = vld [vmem:[#allocation6 + $0x610] sm:$0xff]
    %v341 = vld [vmem:[#allocation6 + $0x618] sm:$0xff]
    %v342 = vld [vmem:[#allocation6 + $0x620] sm:$0xff]
    %v343 = vld [vmem:[#allocation6 + $0x628] sm:$0xff]
    %v344 = vld [vmem:[#allocation6 + $0x630] sm:$0xff]
    %v345 = vld [vmem:[#allocation6 + $0x638] sm:$0xff]
    %v346 = vld [vmem:[#allocation6 + $0x640] sm:$0xff]
    %v347 = vld [vmem:[#allocation6 + $0x648] sm:$0xff]
    %v348 = vld [vmem:[#allocation6 + $0x650] sm:$0xff]
    %v349 = vld [vmem:[#allocation6 + $0x658] sm:$0xff]
    %v350 = vld [vmem:[#allocation6 + $0x660] sm:$0xff]
    %v351 = vld [vmem:[#allocation6 + $0x668] sm:$0xff]
    %v352 = vld [vmem:[#allocation6 + $0x670] sm:$0xff]
    %v353 = vld [vmem:[#allocation6 + $0x678] sm:$0xff]
    %v354 = vld [vmem:[#allocation6 + $0x680] sm:$0xff]
    %v355 = vld [vmem:[#allocation6 + $0x688] sm:$0xff]
    %v356 = vld [vmem:[#allocation6 + $0x690] sm:$0xff]
    %v357 = vld [vmem:[#allocation6 + $0x698] sm:$0xff]
    %v358 = vld [vmem:[#allocation6 + $0x6a0] sm:$0xff]
    %v359 = vld [vmem:[#allocation6 + $0x6a8] sm:$0xff]
    %v360 = vld [vmem:[#allocation6 + $0x6b0] sm:$0xff]
    %v361 = vld [vmem:[#allocation6 + $0x6b8] sm:$0xff]
    %v362 = vld [vmem:[#allocation6 + $0x6c0] sm:$0xff]
    %v363 = vld [vmem:[#allocation6 + $0x6c8] sm:$0xff]
    %v364 = vld [vmem:[#allocation6 + $0x6d0] sm:$0xff]
    %v365 = vld [vmem:[#allocation6 + $0x6d8] sm:$0xff]
    %v366 = vld [vmem:[#allocation6 + $0x6e0] sm:$0xff]
    %v367 = vld [vmem:[#allocation6 + $0x6e8] sm:$0xff]
    %v368 = vld [vmem:[#allocation6 + $0x6f0] sm:$0xff]
    %v369 = vld [vmem:[#allocation6 + $0x6f8] sm:$0xff]
    %v370 = vld [vmem:[#allocation6 + $0x700] sm:$0xff]
    %v371 = vld [vmem:[#allocation6 + $0x708] sm:$0xff]
    %v372 = vld [vmem:[#allocation6 + $0x710] sm:$0xff]
    %v373 = vld [vmem:[#allocation6 + $0x718] sm:$0xff]
    %v374 = vld [vmem:[#allocation6 + $0x720] sm:$0xff]
    %v375 = vld [vmem:[#allocation6 + $0x728] sm:$0xff]
    %v376 = vld [vmem:[#allocation6 + $0x730] sm:$0xff]
    %v377 = vld [vmem:[#allocation6 + $0x738] sm:$0xff]
    %v378 = vld [vmem:[#allocation6 + $0x740] sm:$0xff]
    %v379 = vld [vmem:[#allocation6 + $0x748] sm:$0xff]
    %v380 = vld [vmem:[#allocation6 + $0x750] sm:$0xff]
    %v381 = vld [vmem:[#allocation6 + $0x758] sm:$0xff]
    %v382 = vld [vmem:[#allocation6 + $0x760] sm:$0xff]
    %v383 = vld [vmem:[#allocation6 + $0x768] sm:$0xff]
    %v384 = vld [vmem:[#allocation6 + $0x770] sm:$0xff]
    %v385 = vld [vmem:[#allocation6 + $0x778] sm:$0xff]
    %v386 = vld [vmem:[#allocation6 + $0x780] sm:$0xff]
    %v387 = vld [vmem:[#allocation6 + $0x788] sm:$0xff]
    %v388 = vld [vmem:[#allocation6 + $0x790] sm:$0xff]
    %v389 = vld [vmem:[#allocation6 + $0x798] sm:$0xff]
    %v390 = vld [vmem:[#allocation6 + $0x7a0] sm:$0xff]
    %v391 = vld [vmem:[#allocation6 + $0x7a8] sm:$0xff]
    %v392 = vld [vmem:[#allocation6 + $0x7b0] sm:$0xff]
    %v393 = vld [vmem:[#allocation6 + $0x7b8] sm:$0xff]
    %v394 = vld [vmem:[#allocation6 + $0x7c0] sm:$0xff]
    %v395 = vld [vmem:[#allocation6 + $0x7c8] sm:$0xff]
    %v396 = vld [vmem:[#allocation6 + $0x7d0] sm:$0xff]
    %v397 = vld [vmem:[#allocation6 + $0x7d8] sm:$0xff]
    %v398 = vld [vmem:[#allocation6 + $0x7e0] sm:$0xff]
    %v399 = vld [vmem:[#allocation6 + $0x7e8] sm:$0xff]
    %v400 = vld [vmem:[#allocation6 + $0x7f0] sm:$0xff]
    %v401 = vld [vmem:[#allocation6 + $0x7f8] sm:$0xff]
    %v658 = vunpack.c.l.b16 %v146
    %v659 = vunpack.c.h.b16 %v146
    %v660 = vunpack.c.l.b16 %v147
    %v661 = vunpack.c.h.b16 %v147
    %v662 = vunpack.c.l.b16 %v148
    %v663 = vunpack.c.h.b16 %v148
    %v664 = vunpack.c.l.b16 %v149
    %v665 = vunpack.c.h.b16 %v149
    %v666 = vunpack.c.l.b16 %v150
    %v667 = vunpack.c.h.b16 %v150
    %v668 = vunpack.c.l.b16 %v151
    %v669 = vunpack.c.h.b16 %v151
    %v670 = vunpack.c.l.b16 %v152
    %v671 = vunpack.c.h.b16 %v152
    %v672 = vunpack.c.l.b16 %v153
    %v673 = vunpack.c.h.b16 %v153
    %v674 = vunpack.c.l.b16 %v154
    %v675 = vunpack.c.h.b16 %v154
    %v676 = vunpack.c.l.b16 %v155
    %v677 = vunpack.c.h.b16 %v155
    %v678 = vunpack.c.l.b16 %v156
    %v679 = vunpack.c.h.b16 %v156
    %v680 = vunpack.c.l.b16 %v157
    %v681 = vunpack.c.h.b16 %v157
    %v682 = vunpack.c.l.b16 %v158
    %v683 = vunpack.c.h.b16 %v158
    %v684 = vunpack.c.l.b16 %v159
    %v685 = vunpack.c.h.b16 %v159
    %v686 = vunpack.c.l.b16 %v160
    %v687 = vunpack.c.h.b16 %v160
    %v688 = vunpack.c.l.b16 %v161
    %v689 = vunpack.c.h.b16 %v161
    %v690 = vunpack.c.l.b16 %v162
    %v691 = vunpack.c.h.b16 %v162
    %v692 = vunpack.c.l.b16 %v163
    %v693 = vunpack.c.h.b16 %v163
    %v694 = vunpack.c.l.b16 %v164
    %v695 = vunpack.c.h.b16 %v164
    %v696 = vunpack.c.l.b16 %v165
    %v697 = vunpack.c.h.b16 %v165
    %v698 = vunpack.c.l.b16 %v166
    %v699 = vunpack.c.h.b16 %v166
    %v700 = vunpack.c.l.b16 %v167
    %v701 = vunpack.c.h.b16 %v167
    %v702 = vunpack.c.l.b16 %v168
    %v703 = vunpack.c.h.b16 %v168
    %v704 = vunpack.c.l.b16 %v169
    %v705 = vunpack.c.h.b16 %v169
    %v706 = vunpack.c.l.b16 %v170
    %v707 = vunpack.c.h.b16 %v170
    %v708 = vunpack.c.l.b16 %v171
    %v709 = vunpack.c.h.b16 %v171
    %v710 = vunpack.c.l.b16 %v172
    %v711 = vunpack.c.h.b16 %v172
    %v712 = vunpack.c.l.b16 %v173
    %v713 = vunpack.c.h.b16 %v173
    %v714 = vunpack.c.l.b16 %v174
    %v715 = vunpack.c.h.b16 %v174
    %v716 = vunpack.c.l.b16 %v175
    %v717 = vunpack.c.h.b16 %v175
    %v718 = vunpack.c.l.b16 %v176
    %v719 = vunpack.c.h.b16 %v176
    %v720 = vunpack.c.l.b16 %v177
    %v721 = vunpack.c.h.b16 %v177
    %v722 = vunpack.c.l.b16 %v178
    %v723 = vunpack.c.h.b16 %v178
    %v724 = vunpack.c.l.b16 %v179
    %v725 = vunpack.c.h.b16 %v179
    %v726 = vunpack.c.l.b16 %v180
    %v727 = vunpack.c.h.b16 %v180
    %v728 = vunpack.c.l.b16 %v181
    %v729 = vunpack.c.h.b16 %v181
    %v730 = vunpack.c.l.b16 %v182
    %v731 = vunpack.c.h.b16 %v182
    %v732 = vunpack.c.l.b16 %v183
    %v733 = vunpack.c.h.b16 %v183
    %v734 = vunpack.c.l.b16 %v184
    %v735 = vunpack.c.h.b16 %v184
    %v736 = vunpack.c.l.b16 %v185
    %v737 = vunpack.c.h.b16 %v185
    %v738 = vunpack.c.l.b16 %v186
    %v739 = vunpack.c.h.b16 %v186
    %v740 = vunpack.c.l.b16 %v187
    %v741 = vunpack.c.h.b16 %v187
    %v742 = vunpack.c.l.b16 %v188
    %v743 = vunpack.c.h.b16 %v188
    %v744 = vunpack.c.l.b16 %v189
    %v745 = vunpack.c.h.b16 %v189
    %v746 = vunpack.c.l.b16 %v190
    %v747 = vunpack.c.h.b16 %v190
    %v748 = vunpack.c.l.b16 %v191
    %v749 = vunpack.c.h.b16 %v191
    %v750 = vunpack.c.l.b16 %v192
    %v751 = vunpack.c.h.b16 %v192
    %v752 = vunpack.c.l.b16 %v193
    %v753 = vunpack.c.h.b16 %v193
    %v754 = vunpack.c.l.b16 %v194
    %v755 = vunpack.c.h.b16 %v194
    %v756 = vunpack.c.l.b16 %v195
    %v757 = vunpack.c.h.b16 %v195
    %v758 = vunpack.c.l.b16 %v196
    %v759 = vunpack.c.h.b16 %v196
    %v760 = vunpack.c.l.b16 %v197
    %v761 = vunpack.c.h.b16 %v197
    %v762 = vunpack.c.l.b16 %v198
    %v763 = vunpack.c.h.b16 %v198
    %v764 = vunpack.c.l.b16 %v199
    %v765 = vunpack.c.h.b16 %v199
    %v766 = vunpack.c.l.b16 %v200
    %v767 = vunpack.c.h.b16 %v200
    %v768 = vunpack.c.l.b16 %v201
    %v769 = vunpack.c.h.b16 %v201
    %v770 = vunpack.c.l.b16 %v202
    %v771 = vunpack.c.h.b16 %v202
    %v772 = vunpack.c.l.b16 %v203
    %v773 = vunpack.c.h.b16 %v203
    %v774 = vunpack.c.l.b16 %v204
    %v775 = vunpack.c.h.b16 %v204
    %v776 = vunpack.c.l.b16 %v205
    %v777 = vunpack.c.h.b16 %v205
    %v778 = vunpack.c.l.b16 %v206
    %v779 = vunpack.c.h.b16 %v206
    %v780 = vunpack.c.l.b16 %v207
    %v781 = vunpack.c.h.b16 %v207
    %v782 = vunpack.c.l.b16 %v208
    %v783 = vunpack.c.h.b16 %v208
    %v784 = vunpack.c.l.b16 %v209
    %v785 = vunpack.c.h.b16 %v209
    %v786 = vunpack.c.l.b16 %v210
    %v787 = vunpack.c.h.b16 %v210
    %v788 = vunpack.c.l.b16 %v211
    %v789 = vunpack.c.h.b16 %v211
    %v790 = vunpack.c.l.b16 %v212
    %v791 = vunpack.c.h.b16 %v212
    %v792 = vunpack.c.l.b16 %v213
    %v793 = vunpack.c.h.b16 %v213
    %v794 = vunpack.c.l.b16 %v214
    %v795 = vunpack.c.h.b16 %v214
    %v796 = vunpack.c.l.b16 %v215
    %v797 = vunpack.c.h.b16 %v215
    %v798 = vunpack.c.l.b16 %v216
    %v799 = vunpack.c.h.b16 %v216
    %v800 = vunpack.c.l.b16 %v217
    %v801 = vunpack.c.h.b16 %v217
    %v802 = vunpack.c.l.b16 %v218
    %v803 = vunpack.c.h.b16 %v218
    %v804 = vunpack.c.l.b16 %v219
    %v805 = vunpack.c.h.b16 %v219
    %v806 = vunpack.c.l.b16 %v220
    %v807 = vunpack.c.h.b16 %v220
    %v808 = vunpack.c.l.b16 %v221
    %v809 = vunpack.c.h.b16 %v221
    %v810 = vunpack.c.l.b16 %v222
    %v811 = vunpack.c.h.b16 %v222
    %v812 = vunpack.c.l.b16 %v223
    %v813 = vunpack.c.h.b16 %v223
    %v814 = vunpack.c.l.b16 %v224
    %v815 = vunpack.c.h.b16 %v224
    %v816 = vunpack.c.l.b16 %v225
    %v817 = vunpack.c.h.b16 %v225
    %v818 = vunpack.c.l.b16 %v226
    %v819 = vunpack.c.h.b16 %v226
    %v820 = vunpack.c.l.b16 %v227
    %v821 = vunpack.c.h.b16 %v227
    %v822 = vunpack.c.l.b16 %v228
    %v823 = vunpack.c.h.b16 %v228
    %v824 = vunpack.c.l.b16 %v229
    %v825 = vunpack.c.h.b16 %v229
    %v826 = vunpack.c.l.b16 %v230
    %v827 = vunpack.c.h.b16 %v230
    %v828 = vunpack.c.l.b16 %v231
    %v829 = vunpack.c.h.b16 %v231
    %v830 = vunpack.c.l.b16 %v232
    %v831 = vunpack.c.h.b16 %v232
    %v832 = vunpack.c.l.b16 %v233
    %v833 = vunpack.c.h.b16 %v233
    %v834 = vunpack.c.l.b16 %v234
    %v835 = vunpack.c.h.b16 %v234
    %v836 = vunpack.c.l.b16 %v235
    %v837 = vunpack.c.h.b16 %v235
    %v838 = vunpack.c.l.b16 %v236
    %v839 = vunpack.c.h.b16 %v236
    %v840 = vunpack.c.l.b16 %v237
    %v841 = vunpack.c.h.b16 %v237
    %v842 = vunpack.c.l.b16 %v238
    %v843 = vunpack.c.h.b16 %v238
    %v844 = vunpack.c.l.b16 %v239
    %v845 = vunpack.c.h.b16 %v239
    %v846 = vunpack.c.l.b16 %v240
    %v847 = vunpack.c.h.b16 %v240
    %v848 = vunpack.c.l.b16 %v241
    %v849 = vunpack.c.h.b16 %v241
    %v850 = vunpack.c.l.b16 %v242
    %v851 = vunpack.c.h.b16 %v242
    %v852 = vunpack.c.l.b16 %v243
    %v853 = vunpack.c.h.b16 %v243
    %v854 = vunpack.c.l.b16 %v244
    %v855 = vunpack.c.h.b16 %v244
    %v856 = vunpack.c.l.b16 %v245
    %v857 = vunpack.c.h.b16 %v245
    %v858 = vunpack.c.l.b16 %v246
    %v859 = vunpack.c.h.b16 %v246
    %v860 = vunpack.c.l.b16 %v247
    %v861 = vunpack.c.h.b16 %v247
    %v862 = vunpack.c.l.b16 %v248
    %v863 = vunpack.c.h.b16 %v248
    %v864 = vunpack.c.l.b16 %v249
    %v865 = vunpack.c.h.b16 %v249
    %v866 = vunpack.c.l.b16 %v250
    %v867 = vunpack.c.h.b16 %v250
    %v868 = vunpack.c.l.b16 %v251
    %v869 = vunpack.c.h.b16 %v251
    %v870 = vunpack.c.l.b16 %v252
    %v871 = vunpack.c.h.b16 %v252
    %v872 = vunpack.c.l.b16 %v253
    %v873 = vunpack.c.h.b16 %v253
    %v874 = vunpack.c.l.b16 %v254
    %v875 = vunpack.c.h.b16 %v254
    %v876 = vunpack.c.l.b16 %v255
    %v877 = vunpack.c.h.b16 %v255
    %v878 = vunpack.c.l.b16 %v256
    %v879 = vunpack.c.h.b16 %v256
    %v880 = vunpack.c.l.b16 %v257
    %v881 = vunpack.c.h.b16 %v257
    %v882 = vunpack.c.l.b16 %v258
    %v883 = vunpack.c.h.b16 %v258
    %v884 = vunpack.c.l.b16 %v259
    %v885 = vunpack.c.h.b16 %v259
    %v886 = vunpack.c.l.b16 %v260
    %v887 = vunpack.c.h.b16 %v260
    %v888 = vunpack.c.l.b16 %v261
    %v889 = vunpack.c.h.b16 %v261
    %v890 = vunpack.c.l.b16 %v262
    %v891 = vunpack.c.h.b16 %v262
    %v892 = vunpack.c.l.b16 %v263
    %v893 = vunpack.c.h.b16 %v263
    %v894 = vunpack.c.l.b16 %v264
    %v895 = vunpack.c.h.b16 %v264
    %v896 = vunpack.c.l.b16 %v265
    %v897 = vunpack.c.h.b16 %v265
    %v898 = vunpack.c.l.b16 %v266
    %v899 = vunpack.c.h.b16 %v266
    %v900 = vunpack.c.l.b16 %v267
    %v901 = vunpack.c.h.b16 %v267
    %v902 = vunpack.c.l.b16 %v268
    %v903 = vunpack.c.h.b16 %v268
    %v904 = vunpack.c.l.b16 %v269
    %v905 = vunpack.c.h.b16 %v269
    %v906 = vunpack.c.l.b16 %v270
    %v907 = vunpack.c.h.b16 %v270
    %v908 = vunpack.c.l.b16 %v271
    %v909 = vunpack.c.h.b16 %v271
    %v910 = vunpack.c.l.b16 %v272
    %v911 = vunpack.c.h.b16 %v272
    %v912 = vunpack.c.l.b16 %v273
    %v913 = vunpack.c.h.b16 %v273
    %v914 = vunpack.c.l.b16 %v274
    %v915 = vunpack.c.h.b16 %v274
    %v916 = vunpack.c.l.b16 %v275
    %v917 = vunpack.c.h.b16 %v275
    %v918 = vunpack.c.l.b16 %v276
    %v919 = vunpack.c.h.b16 %v276
    %v920 = vunpack.c.l.b16 %v277
    %v921 = vunpack.c.h.b16 %v277
    %v922 = vunpack.c.l.b16 %v278
    %v923 = vunpack.c.h.b16 %v278
    %v924 = vunpack.c.l.b16 %v279
    %v925 = vunpack.c.h.b16 %v279
    %v926 = vunpack.c.l.b16 %v280
    %v927 = vunpack.c.h.b16 %v280
    %v928 = vunpack.c.l.b16 %v281
    %v929 = vunpack.c.h.b16 %v281
    %v930 = vunpack.c.l.b16 %v282
    %v931 = vunpack.c.h.b16 %v282
    %v932 = vunpack.c.l.b16 %v283
    %v933 = vunpack.c.h.b16 %v283
    %v934 = vunpack.c.l.b16 %v284
    %v935 = vunpack.c.h.b16 %v284
    %v936 = vunpack.c.l.b16 %v285
    %v937 = vunpack.c.h.b16 %v285
    %v938 = vunpack.c.l.b16 %v286
    %v939 = vunpack.c.h.b16 %v286
    %v940 = vunpack.c.l.b16 %v287
    %v941 = vunpack.c.h.b16 %v287
    %v942 = vunpack.c.l.b16 %v288
    %v943 = vunpack.c.h.b16 %v288
    %v944 = vunpack.c.l.b16 %v289
    %v945 = vunpack.c.h.b16 %v289
    %v946 = vunpack.c.l.b16 %v290
    %v947 = vunpack.c.h.b16 %v290
    %v948 = vunpack.c.l.b16 %v291
    %v949 = vunpack.c.h.b16 %v291
    %v950 = vunpack.c.l.b16 %v292
    %v951 = vunpack.c.h.b16 %v292
    %v952 = vunpack.c.l.b16 %v293
    %v953 = vunpack.c.h.b16 %v293
    %v954 = vunpack.c.l.b16 %v294
    %v955 = vunpack.c.h.b16 %v294
    %v956 = vunpack.c.l.b16 %v295
    %v957 = vunpack.c.h.b16 %v295
    %v958 = vunpack.c.l.b16 %v296
    %v959 = vunpack.c.h.b16 %v296
    %v960 = vunpack.c.l.b16 %v297
    %v961 = vunpack.c.h.b16 %v297
    %v962 = vunpack.c.l.b16 %v298
    %v963 = vunpack.c.h.b16 %v298
    %v964 = vunpack.c.l.b16 %v299
    %v965 = vunpack.c.h.b16 %v299
    %v966 = vunpack.c.l.b16 %v300
    %v967 = vunpack.c.h.b16 %v300
    %v968 = vunpack.c.l.b16 %v301
    %v969 = vunpack.c.h.b16 %v301
    %v970 = vunpack.c.l.b16 %v302
    %v971 = vunpack.c.h.b16 %v302
    %v972 = vunpack.c.l.b16 %v303
    %v973 = vunpack.c.h.b16 %v303
    %v974 = vunpack.c.l.b16 %v304
    %v975 = vunpack.c.h.b16 %v304
    %v976 = vunpack.c.l.b16 %v305
    %v977 = vunpack.c.h.b16 %v305
    %v978 = vunpack.c.l.b16 %v306
    %v979 = vunpack.c.h.b16 %v306
    %v980 = vunpack.c.l.b16 %v307
    %v981 = vunpack.c.h.b16 %v307
    %v982 = vunpack.c.l.b16 %v308
    %v983 = vunpack.c.h.b16 %v308
    %v984 = vunpack.c.l.b16 %v309
    %v985 = vunpack.c.h.b16 %v309
    %v986 = vunpack.c.l.b16 %v310
    %v987 = vunpack.c.h.b16 %v310
    %v988 = vunpack.c.l.b16 %v311
    %v989 = vunpack.c.h.b16 %v311
    %v990 = vunpack.c.l.b16 %v312
    %v991 = vunpack.c.h.b16 %v312
    %v992 = vunpack.c.l.b16 %v313
    %v993 = vunpack.c.h.b16 %v313
    %v994 = vunpack.c.l.b16 %v314
    %v995 = vunpack.c.h.b16 %v314
    %v996 = vunpack.c.l.b16 %v315
    %v997 = vunpack.c.h.b16 %v315
    %v998 = vunpack.c.l.b16 %v316
    %v999 = vunpack.c.h.b16 %v316
    %v1000 = vunpack.c.l.b16 %v317
    %v1001 = vunpack.c.h.b16 %v317
    %v1002 = vunpack.c.l.b16 %v318
    %v1003 = vunpack.c.h.b16 %v318
    %v1004 = vunpack.c.l.b16 %v319
    %v1005 = vunpack.c.h.b16 %v319
    %v1006 = vunpack.c.l.b16 %v320
    %v1007 = vunpack.c.h.b16 %v320
    %v1008 = vunpack.c.l.b16 %v321
    %v1009 = vunpack.c.h.b16 %v321
    %v1010 = vunpack.c.l.b16 %v322
    %v1011 = vunpack.c.h.b16 %v322
    %v1012 = vunpack.c.l.b16 %v323
    %v1013 = vunpack.c.h.b16 %v323
    %v1014 = vunpack.c.l.b16 %v324
    %v1015 = vunpack.c.h.b16 %v324
    %v1016 = vunpack.c.l.b16 %v325
    %v1017 = vunpack.c.h.b16 %v325
    %v1018 = vunpack.c.l.b16 %v326
    %v1019 = vunpack.c.h.b16 %v326
    %v1020 = vunpack.c.l.b16 %v327
    %v1021 = vunpack.c.h.b16 %v327
    %v1022 = vunpack.c.l.b16 %v328
    %v1023 = vunpack.c.h.b16 %v328
    %v1024 = vunpack.c.l.b16 %v329
    %v1025 = vunpack.c.h.b16 %v329
    %v1026 = vunpack.c.l.b16 %v330
    %v1027 = vunpack.c.h.b16 %v330
    %v1028 = vunpack.c.l.b16 %v331
    %v1029 = vunpack.c.h.b16 %v331
    %v1030 = vunpack.c.l.b16 %v332
    %v1031 = vunpack.c.h.b16 %v332
    %v1032 = vunpack.c.l.b16 %v333
    %v1033 = vunpack.c.h.b16 %v333
    %v1034 = vunpack.c.l.b16 %v334
    %v1035 = vunpack.c.h.b16 %v334
    %v1036 = vunpack.c.l.b16 %v335
    %v1037 = vunpack.c.h.b16 %v335
    %v1038 = vunpack.c.l.b16 %v336
    %v1039 = vunpack.c.h.b16 %v336
    %v1040 = vunpack.c.l.b16 %v337
    %v1041 = vunpack.c.h.b16 %v337
    %v1042 = vunpack.c.l.b16 %v338
    %v1043 = vunpack.c.h.b16 %v338
    %v1044 = vunpack.c.l.b16 %v339
    %v1045 = vunpack.c.h.b16 %v339
    %v1046 = vunpack.c.l.b16 %v340
    %v1047 = vunpack.c.h.b16 %v340
    %v1048 = vunpack.c.l.b16 %v341
    %v1049 = vunpack.c.h.b16 %v341
    %v1050 = vunpack.c.l.b16 %v342
    %v1051 = vunpack.c.h.b16 %v342
    %v1052 = vunpack.c.l.b16 %v343
    %v1053 = vunpack.c.h.b16 %v343
    %v1054 = vunpack.c.l.b16 %v344
    %v1055 = vunpack.c.h.b16 %v344
    %v1056 = vunpack.c.l.b16 %v345
    %v1057 = vunpack.c.h.b16 %v345
    %v1058 = vunpack.c.l.b16 %v346
    %v1059 = vunpack.c.h.b16 %v346
    %v1060 = vunpack.c.l.b16 %v347
    %v1061 = vunpack.c.h.b16 %v347
    %v1062 = vunpack.c.l.b16 %v348
    %v1063 = vunpack.c.h.b16 %v348
    %v1064 = vunpack.c.l.b16 %v349
    %v1065 = vunpack.c.h.b16 %v349
    %v1066 = vunpack.c.l.b16 %v350
    %v1067 = vunpack.c.h.b16 %v350
    %v1068 = vunpack.c.l.b16 %v351
    %v1069 = vunpack.c.h.b16 %v351
    %v1070 = vunpack.c.l.b16 %v352
    %v1071 = vunpack.c.h.b16 %v352
    %v1072 = vunpack.c.l.b16 %v353
    %v1073 = vunpack.c.h.b16 %v353
    %v1074 = vunpack.c.l.b16 %v354
    %v1075 = vunpack.c.h.b16 %v354
    %v1076 = vunpack.c.l.b16 %v355
    %v1077 = vunpack.c.h.b16 %v355
    %v1078 = vunpack.c.l.b16 %v356
    %v1079 = vunpack.c.h.b16 %v356
    %v1080 = vunpack.c.l.b16 %v357
    %v1081 = vunpack.c.h.b16 %v357
    %v1082 = vunpack.c.l.b16 %v358
    %v1083 = vunpack.c.h.b16 %v358
    %v1084 = vunpack.c.l.b16 %v359
    %v1085 = vunpack.c.h.b16 %v359
    %v1086 = vunpack.c.l.b16 %v360
    %v1087 = vunpack.c.h.b16 %v360
    %v1088 = vunpack.c.l.b16 %v361
    %v1089 = vunpack.c.h.b16 %v361
    %v1090 = vunpack.c.l.b16 %v362
    %v1091 = vunpack.c.h.b16 %v362
    %v1092 = vunpack.c.l.b16 %v363
    %v1093 = vunpack.c.h.b16 %v363
    %v1094 = vunpack.c.l.b16 %v364
    %v1095 = vunpack.c.h.b16 %v364
    %v1096 = vunpack.c.l.b16 %v365
    %v1097 = vunpack.c.h.b16 %v365
    %v1098 = vunpack.c.l.b16 %v366
    %v1099 = vunpack.c.h.b16 %v366
    %v1100 = vunpack.c.l.b16 %v367
    %v1101 = vunpack.c.h.b16 %v367
    %v1102 = vunpack.c.l.b16 %v368
    %v1103 = vunpack.c.h.b16 %v368
    %v1104 = vunpack.c.l.b16 %v369
    %v1105 = vunpack.c.h.b16 %v369
    %v1106 = vunpack.c.l.b16 %v370
    %v1107 = vunpack.c.h.b16 %v370
    %v1108 = vunpack.c.l.b16 %v371
    %v1109 = vunpack.c.h.b16 %v371
    %v1110 = vunpack.c.l.b16 %v372
    %v1111 = vunpack.c.h.b16 %v372
    %v1112 = vunpack.c.l.b16 %v373
    %v1113 = vunpack.c.h.b16 %v373
    %v1114 = vunpack.c.l.b16 %v374
    %v1115 = vunpack.c.h.b16 %v374
    %v1116 = vunpack.c.l.b16 %v375
    %v1117 = vunpack.c.h.b16 %v375
    %v1118 = vunpack.c.l.b16 %v376
    %v1119 = vunpack.c.h.b16 %v376
    %v1120 = vunpack.c.l.b16 %v377
    %v1121 = vunpack.c.h.b16 %v377
    %v1122 = vunpack.c.l.b16 %v378
    %v1123 = vunpack.c.h.b16 %v378
    %v1124 = vunpack.c.l.b16 %v379
    %v1125 = vunpack.c.h.b16 %v379
    %v1126 = vunpack.c.l.b16 %v380
    %v1127 = vunpack.c.h.b16 %v380
    %v1128 = vunpack.c.l.b16 %v381
    %v1129 = vunpack.c.h.b16 %v381
    %v1130 = vunpack.c.l.b16 %v382
    %v1131 = vunpack.c.h.b16 %v382
    %v1132 = vunpack.c.l.b16 %v383
    %v1133 = vunpack.c.h.b16 %v383
    %v1134 = vunpack.c.l.b16 %v384
    %v1135 = vunpack.c.h.b16 %v384
    %v1136 = vunpack.c.l.b16 %v385
    %v1137 = vunpack.c.h.b16 %v385
    %v1138 = vunpack.c.l.b16 %v386
    %v1139 = vunpack.c.h.b16 %v386
    %v1140 = vunpack.c.l.b16 %v387
    %v1141 = vunpack.c.h.b16 %v387
    %v1142 = vunpack.c.l.b16 %v388
    %v1143 = vunpack.c.h.b16 %v388
    %v1144 = vunpack.c.l.b16 %v389
    %v1145 = vunpack.c.h.b16 %v389
    %v1146 = vunpack.c.l.b16 %v390
    %v1147 = vunpack.c.h.b16 %v390
    %v1148 = vunpack.c.l.b16 %v391
    %v1149 = vunpack.c.h.b16 %v391
    %v1150 = vunpack.c.l.b16 %v392
    %v1151 = vunpack.c.h.b16 %v392
    %v1152 = vunpack.c.l.b16 %v393
    %v1153 = vunpack.c.h.b16 %v393
    %v1154 = vunpack.c.l.b16 %v394
    %v1155 = vunpack.c.h.b16 %v394
    %v1156 = vunpack.c.l.b16 %v395
    %v1157 = vunpack.c.h.b16 %v395
    %v1158 = vunpack.c.l.b16 %v396
    %v1159 = vunpack.c.h.b16 %v396
    %v1160 = vunpack.c.l.b16 %v397
    %v1161 = vunpack.c.h.b16 %v397
    %v1162 = vunpack.c.l.b16 %v398
    %v1163 = vunpack.c.h.b16 %v398
    %v1164 = vunpack.c.l.b16 %v399
    %v1165 = vunpack.c.h.b16 %v399
    %v1166 = vunpack.c.l.b16 %v400
    %v1167 = vunpack.c.h.b16 %v400
    %v1168 = vunpack.c.l.b16 %v401
    %v1169 = vunpack.c.h.b16 %v401
    %v1170 = vpack.c.b16 %v662, %v658
    %v1171 = vpack.c.b16 %v663, %v659
    %v1172 = vpack.c.b16 %v664, %v660
    %v1173 = vpack.c.b16 %v665, %v661
    %v1174 = vpack.c.b16 %v670, %v666
    %v1175 = vpack.c.b16 %v671, %v667
    %v1176 = vpack.c.b16 %v672, %v668
    %v1177 = vpack.c.b16 %v673, %v669
    %v1178 = vpack.c.b16 %v678, %v674
    %v1179 = vpack.c.b16 %v679, %v675
    %v1180 = vpack.c.b16 %v680, %v676
    %v1181 = vpack.c.b16 %v681, %v677
    %v1182 = vpack.c.b16 %v686, %v682
    %v1183 = vpack.c.b16 %v687, %v683
    %v1184 = vpack.c.b16 %v688, %v684
    %v1185 = vpack.c.b16 %v689, %v685
    %v1186 = vpack.c.b16 %v694, %v690
    %v1187 = vpack.c.b16 %v695, %v691
    %v1188 = vpack.c.b16 %v696, %v692
    %v1189 = vpack.c.b16 %v697, %v693
    %v1190 = vpack.c.b16 %v702, %v698
    %v1191 = vpack.c.b16 %v703, %v699
    %v1192 = vpack.c.b16 %v704, %v700
    %v1193 = vpack.c.b16 %v705, %v701
    %v1194 = vpack.c.b16 %v710, %v706
    %v1195 = vpack.c.b16 %v711, %v707
    %v1196 = vpack.c.b16 %v712, %v708
    %v1197 = vpack.c.b16 %v713, %v709
    %v1198 = vpack.c.b16 %v718, %v714
    %v1199 = vpack.c.b16 %v719, %v715
    %v1200 = vpack.c.b16 %v720, %v716
    %v1201 = vpack.c.b16 %v721, %v717
    %v1202 = vpack.c.b16 %v726, %v722
    %v1203 = vpack.c.b16 %v727, %v723
    %v1204 = vpack.c.b16 %v728, %v724
    %v1205 = vpack.c.b16 %v729, %v725
    %v1206 = vpack.c.b16 %v734, %v730
    %v1207 = vpack.c.b16 %v735, %v731
    %v1208 = vpack.c.b16 %v736, %v732
    %v1209 = vpack.c.b16 %v737, %v733
    %v1210 = vpack.c.b16 %v742, %v738
    %v1211 = vpack.c.b16 %v743, %v739
    %v1212 = vpack.c.b16 %v744, %v740
    %v1213 = vpack.c.b16 %v745, %v741
    %v1214 = vpack.c.b16 %v750, %v746
    %v1215 = vpack.c.b16 %v751, %v747
    %v1216 = vpack.c.b16 %v752, %v748
    %v1217 = vpack.c.b16 %v753, %v749
    %v1218 = vpack.c.b16 %v758, %v754
    %v1219 = vpack.c.b16 %v759, %v755
    %v1220 = vpack.c.b16 %v760, %v756
    %v1221 = vpack.c.b16 %v761, %v757
    %v1222 = vpack.c.b16 %v766, %v762
    %v1223 = vpack.c.b16 %v767, %v763
    %v1224 = vpack.c.b16 %v768, %v764
    %v1225 = vpack.c.b16 %v769, %v765
    %v1226 = vpack.c.b16 %v774, %v770
    %v1227 = vpack.c.b16 %v775, %v771
    %v1228 = vpack.c.b16 %v776, %v772
    %v1229 = vpack.c.b16 %v777, %v773
    %v1230 = vpack.c.b16 %v782, %v778
    %v1231 = vpack.c.b16 %v783, %v779
    %v1232 = vpack.c.b16 %v784, %v780
    %v1233 = vpack.c.b16 %v785, %v781
    %v1234 = vpack.c.b16 %v790, %v786
    %v1235 = vpack.c.b16 %v791, %v787
    %v1236 = vpack.c.b16 %v792, %v788
    %v1237 = vpack.c.b16 %v793, %v789
    %v1238 = vpack.c.b16 %v798, %v794
    %v1239 = vpack.c.b16 %v799, %v795
    %v1240 = vpack.c.b16 %v800, %v796
    %v1241 = vpack.c.b16 %v801, %v797
    %v1242 = vpack.c.b16 %v806, %v802
    %v1243 = vpack.c.b16 %v807, %v803
    %v1244 = vpack.c.b16 %v808, %v804
    %v1245 = vpack.c.b16 %v809, %v805
    %v1246 = vpack.c.b16 %v814, %v810
    %v1247 = vpack.c.b16 %v815, %v811
    %v1248 = vpack.c.b16 %v816, %v812
    %v1249 = vpack.c.b16 %v817, %v813
    %v1250 = vpack.c.b16 %v822, %v818
    %v1251 = vpack.c.b16 %v823, %v819
    %v1252 = vpack.c.b16 %v824, %v820
    %v1253 = vpack.c.b16 %v825, %v821
    %v1254 = vpack.c.b16 %v830, %v826
    %v1255 = vpack.c.b16 %v831, %v827
    %v1256 = vpack.c.b16 %v832, %v828
    %v1257 = vpack.c.b16 %v833, %v829
    %v1258 = vpack.c.b16 %v838, %v834
    %v1259 = vpack.c.b16 %v839, %v835
    %v1260 = vpack.c.b16 %v840, %v836
    %v1261 = vpack.c.b16 %v841, %v837
    %v1262 = vpack.c.b16 %v846, %v842
    %v1263 = vpack.c.b16 %v847, %v843
    %v1264 = vpack.c.b16 %v848, %v844
    %v1265 = vpack.c.b16 %v849, %v845
    %v1266 = vpack.c.b16 %v854, %v850
    %v1267 = vpack.c.b16 %v855, %v851
    %v1268 = vpack.c.b16 %v856, %v852
    %v1269 = vpack.c.b16 %v857, %v853
    %v1270 = vpack.c.b16 %v862, %v858
    %v1271 = vpack.c.b16 %v863, %v859
    %v1272 = vpack.c.b16 %v864, %v860
    %v1273 = vpack.c.b16 %v865, %v861
    %v1274 = vpack.c.b16 %v870, %v866
    %v1275 = vpack.c.b16 %v871, %v867
    %v1276 = vpack.c.b16 %v872, %v868
    %v1277 = vpack.c.b16 %v873, %v869
    %v1278 = vpack.c.b16 %v878, %v874
    %v1279 = vpack.c.b16 %v879, %v875
    %v1280 = vpack.c.b16 %v880, %v876
    %v1281 = vpack.c.b16 %v881, %v877
    %v1282 = vpack.c.b16 %v886, %v882
    %v1283 = vpack.c.b16 %v887, %v883
    %v1284 = vpack.c.b16 %v888, %v884
    %v1285 = vpack.c.b16 %v889, %v885
    %v1286 = vpack.c.b16 %v894, %v890
    %v1287 = vpack.c.b16 %v895, %v891
    %v1288 = vpack.c.b16 %v896, %v892
    %v1289 = vpack.c.b16 %v897, %v893
    %v1290 = vpack.c.b16 %v902, %v898
    %v1291 = vpack.c.b16 %v903, %v899
    %v1292 = vpack.c.b16 %v904, %v900
    %v1293 = vpack.c.b16 %v905, %v901
    %v1294 = vpack.c.b16 %v910, %v906
    %v1295 = vpack.c.b16 %v911, %v907
    %v1296 = vpack.c.b16 %v912, %v908
    %v1297 = vpack.c.b16 %v913, %v909
    %v1298 = vpack.c.b16 %v918, %v914
    %v1299 = vpack.c.b16 %v919, %v915
    %v1300 = vpack.c.b16 %v920, %v916
    %v1301 = vpack.c.b16 %v921, %v917
    %v1302 = vpack.c.b16 %v926, %v922
    %v1303 = vpack.c.b16 %v927, %v923
    %v1304 = vpack.c.b16 %v928, %v924
    %v1305 = vpack.c.b16 %v929, %v925
    %v1306 = vpack.c.b16 %v934, %v930
    %v1307 = vpack.c.b16 %v935, %v931
    %v1308 = vpack.c.b16 %v936, %v932
    %v1309 = vpack.c.b16 %v937, %v933
    %v1310 = vpack.c.b16 %v942, %v938
    %v1311 = vpack.c.b16 %v943, %v939
    %v1312 = vpack.c.b16 %v944, %v940
    %v1313 = vpack.c.b16 %v945, %v941
    %v1314 = vpack.c.b16 %v950, %v946
    %v1315 = vpack.c.b16 %v951, %v947
    %v1316 = vpack.c.b16 %v952, %v948
    %v1317 = vpack.c.b16 %v953, %v949
    %v1318 = vpack.c.b16 %v958, %v954
    %v1319 = vpack.c.b16 %v959, %v955
    %v1320 = vpack.c.b16 %v960, %v956
    %v1321 = vpack.c.b16 %v961, %v957
    %v1322 = vpack.c.b16 %v966, %v962
    %v1323 = vpack.c.b16 %v967, %v963
    %v1324 = vpack.c.b16 %v968, %v964
    %v1325 = vpack.c.b16 %v969, %v965
    %v1326 = vpack.c.b16 %v974, %v970
    %v1327 = vpack.c.b16 %v975, %v971
    %v1328 = vpack.c.b16 %v976, %v972
    %v1329 = vpack.c.b16 %v977, %v973
    %v1330 = vpack.c.b16 %v982, %v978
    %v1331 = vpack.c.b16 %v983, %v979
    %v1332 = vpack.c.b16 %v984, %v980
    %v1333 = vpack.c.b16 %v985, %v981
    %v1334 = vpack.c.b16 %v990, %v986
    %v1335 = vpack.c.b16 %v991, %v987
    %v1336 = vpack.c.b16 %v992, %v988
    %v1337 = vpack.c.b16 %v993, %v989
    %v1338 = vpack.c.b16 %v998, %v994
    %v1339 = vpack.c.b16 %v999, %v995
    %v1340 = vpack.c.b16 %v1000, %v996
    %v1341 = vpack.c.b16 %v1001, %v997
    %v1342 = vpack.c.b16 %v1006, %v1002
    %v1343 = vpack.c.b16 %v1007, %v1003
    %v1344 = vpack.c.b16 %v1008, %v1004
    %v1345 = vpack.c.b16 %v1009, %v1005
    %v1346 = vpack.c.b16 %v1014, %v1010
    %v1347 = vpack.c.b16 %v1015, %v1011
    %v1348 = vpack.c.b16 %v1016, %v1012
    %v1349 = vpack.c.b16 %v1017, %v1013
    %v1350 = vpack.c.b16 %v1022, %v1018
    %v1351 = vpack.c.b16 %v1023, %v1019
    %v1352 = vpack.c.b16 %v1024, %v1020
    %v1353 = vpack.c.b16 %v1025, %v1021
    %v1354 = vpack.c.b16 %v1030, %v1026
    %v1355 = vpack.c.b16 %v1031, %v1027
    %v1356 = vpack.c.b16 %v1032, %v1028
    %v1357 = vpack.c.b16 %v1033, %v1029
    %v1358 = vpack.c.b16 %v1038, %v1034
    %v1359 = vpack.c.b16 %v1039, %v1035
    %v1360 = vpack.c.b16 %v1040, %v1036
    %v1361 = vpack.c.b16 %v1041, %v1037
    %v1362 = vpack.c.b16 %v1046, %v1042
    %v1363 = vpack.c.b16 %v1047, %v1043
    %v1364 = vpack.c.b16 %v1048, %v1044
    %v1365 = vpack.c.b16 %v1049, %v1045
    %v1366 = vpack.c.b16 %v1054, %v1050
    %v1367 = vpack.c.b16 %v1055, %v1051
    %v1368 = vpack.c.b16 %v1056, %v1052
    %v1369 = vpack.c.b16 %v1057, %v1053
    %v1370 = vpack.c.b16 %v1062, %v1058
    %v1371 = vpack.c.b16 %v1063, %v1059
    %v1372 = vpack.c.b16 %v1064, %v1060
    %v1373 = vpack.c.b16 %v1065, %v1061
    %v1374 = vpack.c.b16 %v1070, %v1066
    %v1375 = vpack.c.b16 %v1071, %v1067
    %v1376 = vpack.c.b16 %v1072, %v1068
    %v1377 = vpack.c.b16 %v1073, %v1069
    %v1378 = vpack.c.b16 %v1078, %v1074
    %v1379 = vpack.c.b16 %v1079, %v1075
    %v1380 = vpack.c.b16 %v1080, %v1076
    %v1381 = vpack.c.b16 %v1081, %v1077
    %v1382 = vpack.c.b16 %v1086, %v1082
    %v1383 = vpack.c.b16 %v1087, %v1083
    %v1384 = vpack.c.b16 %v1088, %v1084
    %v1385 = vpack.c.b16 %v1089, %v1085
    %v1386 = vpack.c.b16 %v1094, %v1090
    %v1387 = vpack.c.b16 %v1095, %v1091
    %v1388 = vpack.c.b16 %v1096, %v1092
    %v1389 = vpack.c.b16 %v1097, %v1093
    %v1390 = vpack.c.b16 %v1102, %v1098
    %v1391 = vpack.c.b16 %v1103, %v1099
    %v1392 = vpack.c.b16 %v1104, %v1100
    %v1393 = vpack.c.b16 %v1105, %v1101
    %v1394 = vpack.c.b16 %v1110, %v1106
    %v1395 = vpack.c.b16 %v1111, %v1107
    %v1396 = vpack.c.b16 %v1112, %v1108
    %v1397 = vpack.c.b16 %v1113, %v1109
    %v1398 = vpack.c.b16 %v1118, %v1114
    %v1399 = vpack.c.b16 %v1119, %v1115
    %v1400 = vpack.c.b16 %v1120, %v1116
    %v1401 = vpack.c.b16 %v1121, %v1117
    %v1402 = vpack.c.b16 %v1126, %v1122
    %v1403 = vpack.c.b16 %v1127, %v1123
    %v1404 = vpack.c.b16 %v1128, %v1124
    %v1405 = vpack.c.b16 %v1129, %v1125
    %v1406 = vpack.c.b16 %v1134, %v1130
    %v1407 = vpack.c.b16 %v1135, %v1131
    %v1408 = vpack.c.b16 %v1136, %v1132
    %v1409 = vpack.c.b16 %v1137, %v1133
    %v1410 = vpack.c.b16 %v1142, %v1138
    %v1411 = vpack.c.b16 %v1143, %v1139
    %v1412 = vpack.c.b16 %v1144, %v1140
    %v1413 = vpack.c.b16 %v1145, %v1141
    %v1414 = vpack.c.b16 %v1150, %v1146
    %v1415 = vpack.c.b16 %v1151, %v1147
    %v1416 = vpack.c.b16 %v1152, %v1148
    %v1417 = vpack.c.b16 %v1153, %v1149
    %v1418 = vpack.c.b16 %v1158, %v1154
    %v1419 = vpack.c.b16 %v1159, %v1155
    %v1420 = vpack.c.b16 %v1160, %v1156
    %v1421 = vpack.c.b16 %v1161, %v1157
    %v1422 = vpack.c.b16 %v1166, %v1162
    %v1423 = vpack.c.b16 %v1167, %v1163
    %v1424 = vpack.c.b16 %v1168, %v1164
    %v1425 = vpack.c.b16 %v1169, %v1165
    %1682 = vmatprep.subr.bf16.mxu0 %v1171
    %1683 = vmatpush1.bf16.msra.mxu0 %v1170
    %1684 = vmatprep.subr.bf16.mxu0 %v1175
    %1685 = vmatpush1.bf16.msra.mxu0 %v1174
    %1686 = vmatprep.subr.bf16.mxu0 %v1179
    %1687 = vmatpush1.bf16.msra.mxu0 %v1178
    %1688 = vmatprep.subr.bf16.mxu0 %v1183
    %1689 = vmatpush1.bf16.msra.mxu0 %v1182
    %1690 = vmatprep.subr.bf16.mxu0 %v1187
    %1691 = vmatpush1.bf16.msra.mxu0 %v1186
    %1692 = vmatprep.subr.bf16.mxu0 %v1191
    %1693 = vmatpush1.bf16.msra.mxu0 %v1190
    %1694 = vmatprep.subr.bf16.mxu0 %v1195
    %1695 = vmatpush1.bf16.msra.mxu0 %v1194
    %1696 = vmatprep.subr.bf16.mxu0 %v1199
    %1697 = vmatpush1.bf16.msra.mxu0 %v1198
    %1698 = vmatprep.subr.bf16.mxu0 %v1203
    %1699 = vmatpush1.bf16.msra.mxu0 %v1202
    %1700 = vmatprep.subr.bf16.mxu0 %v1207
    %1701 = vmatpush1.bf16.msra.mxu0 %v1206
    %1702 = vmatprep.subr.bf16.mxu0 %v1211
    %1703 = vmatpush1.bf16.msra.mxu0 %v1210
    %1704 = vmatprep.subr.bf16.mxu0 %v1215
    %1705 = vmatpush1.bf16.msra.mxu0 %v1214
    %1706 = vmatprep.subr.bf16.mxu0 %v1219
    %1707 = vmatpush1.bf16.msra.mxu0 %v1218
    %1708 = vmatprep.subr.bf16.mxu0 %v1223
    %1709 = vmatpush1.bf16.msra.mxu0 %v1222
    %1710 = vmatprep.subr.bf16.mxu0 %v1227
    %1711 = vmatpush1.bf16.msra.mxu0 %v1226
    %1712 = vmatprep.subr.bf16.mxu0 %v1231
    %1713 = vmatpush1.bf16.msra.mxu0 %v1230
    %1714 = vmatprep.mubr.bf16.mxu0 %v131
    %1715 = vmatmul.mubr.bf16.gmra.mrb[0].mxu0 %v130
    %v1716 = vpop.f32.mrb[0].mxu0
    %v1717 = vadd.f32 0.0, %v1716
    %v1718 = vpop.f32.mrb[0].mxu0
    %v1719 = vadd.f32 0.0, %v1718
    %v1720 = vpop.f32.mrb[0].mxu0
    %v1721 = vadd.f32 0.0, %v1720
    %v1722 = vpop.f32.mrb[0].mxu0
    %v1723 = vadd.f32 0.0, %v1722
    %1724 = vdwg.mxu0
    %1725 = vmatprep.subr.bf16.mxu0 %v1235
    %1726 = vmatpush1.bf16.msra.mxu0 %v1234
    %1727 = vmatprep.subr.bf16.mxu0 %v1239
    %1728 = vmatpush1.bf16.msra.mxu0 %v1238
    %1729 = vmatprep.subr.bf16.mxu0 %v1243
    %1730 = vmatpush1.bf16.msra.mxu0 %v1242
    %1731 = vmatprep.subr.bf16.mxu0 %v1247
    %1732 = vmatpush1.bf16.msra.mxu0 %v1246
    %1733 = vmatprep.subr.bf16.mxu0 %v1251
    %1734 = vmatpush1.bf16.msra.mxu0 %v1250
    %1735 = vmatprep.subr.bf16.mxu0 %v1255
    %1736 = vmatpush1.bf16.msra.mxu0 %v1254
    %1737 = vmatprep.subr.bf16.mxu0 %v1259
    %1738 = vmatpush1.bf16.msra.mxu0 %v1258
    %1739 = vmatprep.subr.bf16.mxu0 %v1263
    %1740 = vmatpush1.bf16.msra.mxu0 %v1262
    %1741 = vmatprep.subr.bf16.mxu0 %v1267
    %1742 = vmatpush1.bf16.msra.mxu0 %v1266
    %1743 = vmatprep.subr.bf16.mxu0 %v1271
    %1744 = vmatpush1.bf16.msra.mxu0 %v1270
    %1745 = vmatprep.subr.bf16.mxu0 %v1275
    %1746 = vmatpush1.bf16.msra.mxu0 %v1274
    %1747 = vmatprep.subr.bf16.mxu0 %v1279
    %1748 = vmatpush1.bf16.msra.mxu0 %v1278
    %1749 = vmatprep.subr.bf16.mxu0 %v1283
    %1750 = vmatpush1.bf16.msra.mxu0 %v1282
    %1751 = vmatprep.subr.bf16.mxu0 %v1287
    %1752 = vmatpush1.bf16.msra.mxu0 %v1286
    %1753 = vmatprep.subr.bf16.mxu0 %v1291
    %1754 = vmatpush1.bf16.msra.mxu0 %v1290
    %1755 = vmatprep.subr.bf16.mxu0 %v1295
    %1756 = vmatpush1.bf16.msra.mxu0 %v1294
    %1757 = vmatprep.mubr.bf16.mxu0 %v133
    %1758 = vmatmul.mubr.bf16.gmra.mrb[0].mxu0 %v132
    %v1759 = vpop.f32.mrb[0].mxu0
    %v1760 = vadd.f32 %v1717, %v1759
    %v1761 = vpop.f32.mrb[0].mxu0
    %v1762 = vadd.f32 %v1719, %v1761
    %v1763 = vpop.f32.mrb[0].mxu0
    %v1764 = vadd.f32 %v1721, %v1763
    %v1765 = vpop.f32.mrb[0].mxu0
    %v1766 = vadd.f32 %v1723, %v1765
    %1767 = vdwg.mxu0
    %1768 = vmatprep.subr.bf16.mxu0 %v1299
    %1769 = vmatpush1.bf16.msra.mxu0 %v1298
    %1770 = vmatprep.subr.bf16.mxu0 %v1303
    %1771 = vmatpush1.bf16.msra.mxu0 %v1302
    %1772 = vmatprep.subr.bf16.mxu0 %v1307
    %1773 = vmatpush1.bf16.msra.mxu0 %v1306
    %1774 = vmatprep.subr.bf16.mxu0 %v1311
    %1775 = vmatpush1.bf16.msra.mxu0 %v1310
    %1776 = vmatprep.subr.bf16.mxu0 %v1315
    %1777 = vmatpush1.bf16.msra.mxu0 %v1314
    %1778 = vmatprep.subr.bf16.mxu0 %v1319
    %1779 = vmatpush1.bf16.msra.mxu0 %v1318
    %1780 = vmatprep.subr.bf16.mxu0 %v1323
    %1781 = vmatpush1.bf16.msra.mxu0 %v1322
    %1782 = vmatprep.subr.bf16.mxu0 %v1327
    %1783 = vmatpush1.bf16.msra.mxu0 %v1326
    %1784 = vmatprep.subr.bf16.mxu0 %v1331
    %1785 = vmatpush1.bf16.msra.mxu0 %v1330
    %1786 = vmatprep.subr.bf16.mxu0 %v1335
    %1787 = vmatpush1.bf16.msra.mxu0 %v1334
    %1788 = vmatprep.subr.bf16.mxu0 %v1339
    %1789 = vmatpush1.bf16.msra.mxu0 %v1338
    %1790 = vmatprep.subr.bf16.mxu0 %v1343
    %1791 = vmatpush1.bf16.msra.mxu0 %v1342
    %1792 = vmatprep.subr.bf16.mxu0 %v1347
    %1793 = vmatpush1.bf16.msra.mxu0 %v1346
    %1794 = vmatprep.subr.bf16.mxu0 %v1351
    %1795 = vmatpush1.bf16.msra.mxu0 %v1350
    %1796 = vmatprep.subr.bf16.mxu0 %v1355
    %1797 = vmatpush1.bf16.msra.mxu0 %v1354
    %1798 = vmatprep.subr.bf16.mxu0 %v1359
    %1799 = vmatpush1.bf16.msra.mxu0 %v1358
    %1800 = vmatprep.mubr.bf16.mxu0 %v135
    %1801 = vmatmul.mubr.bf16.gmra.mrb[0].mxu0 %v134
    %v1802 = vpop.f32.mrb[0].mxu0
    %v1803 = vadd.f32 %v1760, %v1802
    %v1804 = vpop.f32.mrb[0].mxu0
    %v1805 = vadd.f32 %v1762, %v1804
    %v1806 = vpop.f32.mrb[0].mxu0
    %v1807 = vadd.f32 %v1764, %v1806
    %v1808 = vpop.f32.mrb[0].mxu0
    %v1809 = vadd.f32 %v1766, %v1808
    %1810 = vdwg.mxu0
    %1811 = vmatprep.subr.bf16.mxu0 %v1363
    %1812 = vmatpush1.bf16.msra.mxu0 %v1362
    %1813 = vmatprep.subr.bf16.mxu0 %v1367
    %1814 = vmatpush1.bf16.msra.mxu0 %v1366
    %1815 = vmatprep.subr.bf16.mxu0 %v1371
    %1816 = vmatpush1.bf16.msra.mxu0 %v1370
    %1817 = vmatprep.subr.bf16.mxu0 %v1375
    %1818 = vmatpush1.bf16.msra.mxu0 %v1374
    %1819 = vmatprep.subr.bf16.mxu0 %v1379
    %1820 = vmatpush1.bf16.msra.mxu0 %v1378
    %1821 = vmatprep.subr.bf16.mxu0 %v1383
    %1822 = vmatpush1.bf16.msra.mxu0 %v1382
    %1823 = vmatprep.subr.bf16.mxu0 %v1387
    %1824 = vmatpush1.bf16.msra.mxu0 %v1386
    %1825 = vmatprep.subr.bf16.mxu0 %v1391
    %1826 = vmatpush1.bf16.msra.mxu0 %v1390
    %1827 = vmatprep.subr.bf16.mxu0 %v1395
    %1828 = vmatpush1.bf16.msra.mxu0 %v1394
    %1829 = vmatprep.subr.bf16.mxu0 %v1399
    %1830 = vmatpush1.bf16.msra.mxu0 %v1398
    %1831 = vmatprep.subr.bf16.mxu0 %v1403
    %1832 = vmatpush1.bf16.msra.mxu0 %v1402
    %1833 = vmatprep.subr.bf16.mxu0 %v1407
    %1834 = vmatpush1.bf16.msra.mxu0 %v1406
    %1835 = vmatprep.subr.bf16.mxu0 %v1411
    %1836 = vmatpush1.bf16.msra.mxu0 %v1410
    %1837 = vmatprep.subr.bf16.mxu0 %v1415
    %1838 = vmatpush1.bf16.msra.mxu0 %v1414
    %1839 = vmatprep.subr.bf16.mxu0 %v1419
    %1840 = vmatpush1.bf16.msra.mxu0 %v1418
    %1841 = vmatprep.subr.bf16.mxu0 %v1423
    %1842 = vmatpush1.bf16.msra.mxu0 %v1422
    %1843 = vmatprep.mubr.bf16.mxu0 %v137
    %1844 = vmatmul.mubr.bf16.gmra.mrb[0].mxu0 %v136
    %v1845 = vpop.f32.mrb[0].mxu0
    %v1846 = vadd.f32 %v1803, %v1845
    %v1847 = vpop.f32.mrb[0].mxu0
    %v1848 = vadd.f32 %v1805, %v1847
    %v1849 = vpop.f32.mrb[0].mxu0
    %v1850 = vadd.f32 %v1807, %v1849
    %v1851 = vpop.f32.mrb[0].mxu0
    %v1852 = vadd.f32 %v1809, %v1851
    %1853 = vdwg.mxu0
    %1854 = vmatprep.subr.bf16.mxu0 %v1173
    %1855 = vmatpush1.bf16.msra.mxu0 %v1172
    %1856 = vmatprep.subr.bf16.mxu0 %v1177
    %1857 = vmatpush1.bf16.msra.mxu0 %v1176
    %1858 = vmatprep.subr.bf16.mxu0 %v1181
    %1859 = vmatpush1.bf16.msra.mxu0 %v1180
    %1860 = vmatprep.subr.bf16.mxu0 %v1185
    %1861 = vmatpush1.bf16.msra.mxu0 %v1184
    %1862 = vmatprep.subr.bf16.mxu0 %v1189
    %1863 = vmatpush1.bf16.msra.mxu0 %v1188
    %1864 = vmatprep.subr.bf16.mxu0 %v1193
    %1865 = vmatpush1.bf16.msra.mxu0 %v1192
    %1866 = vmatprep.subr.bf16.mxu0 %v1197
    %1867 = vmatpush1.bf16.msra.mxu0 %v1196
    %1868 = vmatprep.subr.bf16.mxu0 %v1201
    %1869 = vmatpush1.bf16.msra.mxu0 %v1200
    %1870 = vmatprep.subr.bf16.mxu0 %v1205
    %1871 = vmatpush1.bf16.msra.mxu0 %v1204
    %1872 = vmatprep.subr.bf16.mxu0 %v1209
    %1873 = vmatpush1.bf16.msra.mxu0 %v1208
    %1874 = vmatprep.subr.bf16.mxu0 %v1213
    %1875 = vmatpush1.bf16.msra.mxu0 %v1212
    %1876 = vmatprep.subr.bf16.mxu0 %v1217
    %1877 = vmatpush1.bf16.msra.mxu0 %v1216
    %1878 = vmatprep.subr.bf16.mxu0 %v1221
    %1879 = vmatpush1.bf16.msra.mxu0 %v1220
    %1880 = vmatprep.subr.bf16.mxu0 %v1225
    %1881 = vmatpush1.bf16.msra.mxu0 %v1224
    %1882 = vmatprep.subr.bf16.mxu0 %v1229
    %1883 = vmatpush1.bf16.msra.mxu0 %v1228
    %1884 = vmatprep.subr.bf16.mxu0 %v1233
    %1885 = vmatpush1.bf16.msra.mxu0 %v1232
    %1886 = vmatprep.mubr.bf16.mxu0 %v131
    %1887 = vmatmul.mubr.bf16.gmra.mrb[0].mxu0 %v130
    %v1888 = vpop.f32.mrb[0].mxu0
    %v1889 = vadd.f32 0.0, %v1888
    %v1890 = vpop.f32.mrb[0].mxu0
    %v1891 = vadd.f32 0.0, %v1890
    %v1892 = vpop.f32.mrb[0].mxu0
    %v1893 = vadd.f32 0.0, %v1892
    %v1894 = vpop.f32.mrb[0].mxu0
    %v1895 = vadd.f32 0.0, %v1894
    %1896 = vdwg.mxu0
    %1897 = vmatprep.subr.bf16.mxu0 %v1237
    %1898 = vmatpush1.bf16.msra.mxu0 %v1236
    %1899 = vmatprep.subr.bf16.mxu0 %v1241
    %1900 = vmatpush1.bf16.msra.mxu0 %v1240
    %1901 = vmatprep.subr.bf16.mxu0 %v1245
    %1902 = vmatpush1.bf16.msra.mxu0 %v1244
    %1903 = vmatprep.subr.bf16.mxu0 %v1249
    %1904 = vmatpush1.bf16.msra.mxu0 %v1248
    %1905 = vmatprep.subr.bf16.mxu0 %v1253
    %1906 = vmatpush1.bf16.msra.mxu0 %v1252
    %1907 = vmatprep.subr.bf16.mxu0 %v1257
    %1908 = vmatpush1.bf16.msra.mxu0 %v1256
    %1909 = vmatprep.subr.bf16.mxu0 %v1261
    %1910 = vmatpush1.bf16.msra.mxu0 %v1260
    %1911 = vmatprep.subr.bf16.mxu0 %v1265
    %1912 = vmatpush1.bf16.msra.mxu0 %v1264
    %1913 = vmatprep.subr.bf16.mxu0 %v1269
    %1914 = vmatpush1.bf16.msra.mxu0 %v1268
    %1915 = vmatprep.subr.bf16.mxu0 %v1273
    %1916 = vmatpush1.bf16.msra.mxu0 %v1272
    %1917 = vmatprep.subr.bf16.mxu0 %v1277
    %1918 = vmatpush1.bf16.msra.mxu0 %v1276
    %1919 = vmatprep.subr.bf16.mxu0 %v1281
    %1920 = vmatpush1.bf16.msra.mxu0 %v1280
    %1921 = vmatprep.subr.bf16.mxu0 %v1285
    %1922 = vmatpush1.bf16.msra.mxu0 %v1284
    %1923 = vmatprep.subr.bf16.mxu0 %v1289
    %1924 = vmatpush1.bf16.msra.mxu0 %v1288
    %1925 = vmatprep.subr.bf16.mxu0 %v1293
    %1926 = vmatpush1.bf16.msra.mxu0 %v1292
    %1927 = vmatprep.subr.bf16.mxu0 %v1297
    %1928 = vmatpush1.bf16.msra.mxu0 %v1296
    %1929 = vmatprep.mubr.bf16.mxu0 %v133
    %1930 = vmatmul.mubr.bf16.gmra.mrb[0].mxu0 %v132
    %v1931 = vpop.f32.mrb[0].mxu0
    %v1932 = vadd.f32 %v1889, %v1931
    %v1933 = vpop.f32.mrb[0].mxu0
    %v1934 = vadd.f32 %v1891, %v1933
    %v1935 = vpop.f32.mrb[0].mxu0
    %v1936 = vadd.f32 %v1893, %v1935
    %v1937 = vpop.f32.mrb[0].mxu0
    %v1938 = vadd.f32 %v1895, %v1937
    %1939 = vdwg.mxu0
    %1940 = vmatprep.subr.bf16.mxu0 %v1301
    %1941 = vmatpush1.bf16.msra.mxu0 %v1300
    %1942 = vmatprep.subr.bf16.mxu0 %v1305
    %1943 = vmatpush1.bf16.msra.mxu0 %v1304
    %1944 = vmatprep.subr.bf16.mxu0 %v1309
    %1945 = vmatpush1.bf16.msra.mxu0 %v1308
    %1946 = vmatprep.subr.bf16.mxu0 %v1313
    %1947 = vmatpush1.bf16.msra.mxu0 %v1312
    %1948 = vmatprep.subr.bf16.mxu0 %v1317
    %1949 = vmatpush1.bf16.msra.mxu0 %v1316
    %1950 = vmatprep.subr.bf16.mxu0 %v1321
    %1951 = vmatpush1.bf16.msra.mxu0 %v1320
    %1952 = vmatprep.subr.bf16.mxu0 %v1325
    %1953 = vmatpush1.bf16.msra.mxu0 %v1324
    %1954 = vmatprep.subr.bf16.mxu0 %v1329
    %1955 = vmatpush1.bf16.msra.mxu0 %v1328
    %1956 = vmatprep.subr.bf16.mxu0 %v1333
    %1957 = vmatpush1.bf16.msra.mxu0 %v1332
    %1958 = vmatprep.subr.bf16.mxu0 %v1337
    %1959 = vmatpush1.bf16.msra.mxu0 %v1336
    %1960 = vmatprep.subr.bf16.mxu0 %v1341
    %1961 = vmatpush1.bf16.msra.mxu0 %v1340
    %1962 = vmatprep.subr.bf16.mxu0 %v1345
    %1963 = vmatpush1.bf16.msra.mxu0 %v1344
    %1964 = vmatprep.subr.bf16.mxu0 %v1349
    %1965 = vmatpush1.bf16.msra.mxu0 %v1348
    %1966 = vmatprep.subr.bf16.mxu0 %v1353
    %1967 = vmatpush1.bf16.msra.mxu0 %v1352
    %1968 = vmatprep.subr.bf16.mxu0 %v1357
    %1969 = vmatpush1.bf16.msra.mxu0 %v1356
    %1970 = vmatprep.subr.bf16.mxu0 %v1361
    %1971 = vmatpush1.bf16.msra.mxu0 %v1360
    %1972 = vmatprep.mubr.bf16.mxu0 %v135
    %1973 = vmatmul.mubr.bf16.gmra.mrb[0].mxu0 %v134
    %v1974 = vpop.f32.mrb[0].mxu0
    %v1975 = vadd.f32 %v1932, %v1974
    %v1976 = vpop.f32.mrb[0].mxu0
    %v1977 = vadd.f32 %v1934, %v1976
    %v1978 = vpop.f32.mrb[0].mxu0
    %v1979 = vadd.f32 %v1936, %v1978
    %v1980 = vpop.f32.mrb[0].mxu0
    %v1981 = vadd.f32 %v1938, %v1980
    %1982 = vdwg.mxu0
    %1983 = vmatprep.subr.bf16.mxu0 %v1365
    %1984 = vmatpush1.bf16.msra.mxu0 %v1364
    %1985 = vmatprep.subr.bf16.mxu0 %v1369
    %1986 = vmatpush1.bf16.msra.mxu0 %v1368
    %1987 = vmatprep.subr.bf16.mxu0 %v1373
    %1988 = vmatpush1.bf16.msra.mxu0 %v1372
    %1989 = vmatprep.subr.bf16.mxu0 %v1377
    %1990 = vmatpush1.bf16.msra.mxu0 %v1376
    %1991 = vmatprep.subr.bf16.mxu0 %v1381
    %1992 = vmatpush1.bf16.msra.mxu0 %v1380
    %1993 = vmatprep.subr.bf16.mxu0 %v1385
    %1994 = vmatpush1.bf16.msra.mxu0 %v1384
    %1995 = vmatprep.subr.bf16.mxu0 %v1389
    %1996 = vmatpush1.bf16.msra.mxu0 %v1388
    %1997 = vmatprep.subr.bf16.mxu0 %v1393
    %1998 = vmatpush1.bf16.msra.mxu0 %v1392
    %1999 = vmatprep.subr.bf16.mxu0 %v1397
    %2000 = vmatpush1.bf16.msra.mxu0 %v1396
    %2001 = vmatprep.subr.bf16.mxu0 %v1401
    %2002 = vmatpush1.bf16.msra.mxu0 %v1400
    %2003 = vmatprep.subr.bf16.mxu0 %v1405
    %2004 = vmatpush1.bf16.msra.mxu0 %v1404
    %2005 = vmatprep.subr.bf16.mxu0 %v1409
    %2006 = vmatpush1.bf16.msra.mxu0 %v1408
    %2007 = vmatprep.subr.bf16.mxu0 %v1413
    %2008 = vmatpush1.bf16.msra.mxu0 %v1412
    %2009 = vmatprep.subr.bf16.mxu0 %v1417
    %2010 = vmatpush1.bf16.msra.mxu0 %v1416
    %2011 = vmatprep.subr.bf16.mxu0 %v1421
    %2012 = vmatpush1.bf16.msra.mxu0 %v1420
    %2013 = vmatprep.subr.bf16.mxu0 %v1425
    %2014 = vmatpush1.bf16.msra.mxu0 %v1424
    %2015 = vmatprep.mubr.bf16.mxu0 %v137
    %2016 = vmatmul.mubr.bf16.gmra.mrb[0].mxu0 %v136
    %v2017 = vpop.f32.mrb[0].mxu0
    %v2018 = vadd.f32 %v1975, %v2017
    %v2019 = vpop.f32.mrb[0].mxu0
    %v2020 = vadd.f32 %v1977, %v2019
    %v2021 = vpop.f32.mrb[0].mxu0
    %v2022 = vadd.f32 %v1979, %v2021
    %v2023 = vpop.f32.mrb[0].mxu0
    %v2024 = vadd.f32 %v1981, %v2023
    %2025 = vdwg.mxu0
    %v2026 = vadd.f32 %v138, %v1846
    %v2027 = vadd.f32 %v139, %v1848
    %v2028 = vadd.f32 %v140, %v2018
    %v2029 = vadd.f32 %v141, %v2020
    %v2030 = vadd.f32 %v142, %v1850
    %v2031 = vadd.f32 %v143, %v1852
    %v2032 = vadd.f32 %v144, %v2022
    %v2033 = vadd.f32 %v145, %v2024
    %2034 = vst [vmem:[#allocation2] sm:$0xff] %v2026
    %2035 = vst [vmem:[#allocation2 + $0x8] sm:$0xff] %v2027
    %2036 = vst [vmem:[#allocation2 + $0x10] sm:$0xff] %v2028
    %2037 = vst [vmem:[#allocation2 + $0x18] sm:$0xff] %v2029
    %2038 = vst [vmem:[#allocation2 + $0x20] sm:$0xff] %v2030
    %2039 = vst [vmem:[#allocation2 + $0x28] sm:$0xff] %v2031
    %2040 = vst [vmem:[#allocation2 + $0x30] sm:$0xff] %v2032
    %2041 = vst [vmem:[#allocation2 + $0x38] sm:$0xff] %v2033
    // Predicated region
    $region62: #{tpu_custom_call.1} parent=1 // pred_check
      %p2042 = pneg %p102
    $region63: #{tpu_custom_call.1} parent=1 // pred_check_branch
      %2044 = sbr.rel (%p2042) target = $region65
    $region64: #{tpu_custom_call.1} parent=1 // pred_region
      %v2045 = vld [vmem:[#allocation2] sm:$0xff]
      %v2046 = vld [vmem:[#allocation2 + $0x8] sm:$0xff]
      %v2047 = vld [vmem:[#allocation2 + $0x10] sm:$0xff]
      %v2048 = vld [vmem:[#allocation2 + $0x18] sm:$0xff]
      %v2049 = vld [vmem:[#allocation2 + $0x20] sm:$0xff]
      %v2050 = vld [vmem:[#allocation2 + $0x28] sm:$0xff]
      %v2051 = vld [vmem:[#allocation2 + $0x30] sm:$0xff]
      %v2052 = vld [vmem:[#allocation2 + $0x38] sm:$0xff]
      %v2053 = vld [vmem:[%s2] sm:$0xf]
      %v2055 = vlaneseq
      %v2056 = vshrl.u32 %v2055, 7
      %v2057 = vsub.s32 0, %v2056
      %v2058 = vrot.slane %v2053, %v2057
      %v2059 = vlaneseq
      %v2060 = vshrl.u32 %v2059, 7
      %v2061 = vsub.s32 1, %v2060
      %v2062 = vrot.slane %v2053, %v2061
      %v2063 = vlaneseq
      %v2064 = vshrl.u32 %v2063, 7
      %v2065 = vsub.s32 2, %v2064
      %v2066 = vrot.slane %v2053, %v2065
      %v2067 = vlaneseq
      %v2068 = vshrl.u32 %v2067, 7
      %v2069 = vsub.s32 3, %v2068
      %v2070 = vrot.slane %v2053, %v2069
      %v2075 = vadd.f32 %v2045, %v2058
      %v2076 = vadd.f32 %v2046, %v2062
      %v2077 = vadd.f32 %v2047, %v2066
      %v2078 = vadd.f32 %v2048, %v2070
      %v2079 = vadd.f32 %v2049, %v2058
      %v2080 = vadd.f32 %v2050, %v2062
      %v2081 = vadd.f32 %v2051, %v2066
      %v2082 = vadd.f32 %v2052, %v2070
      %v2083 = vmax.f32 %v2075, 0.0
      %v2084 = vmax.f32 %v2076, 0.0
      %v2085 = vmax.f32 %v2077, 0.0
      %v2086 = vmax.f32 %v2078, 0.0
      %v2087 = vmax.f32 %v2079, 0.0
      %v2088 = vmax.f32 %v2080, 0.0
      %v2089 = vmax.f32 %v2081, 0.0
      %v2090 = vmax.f32 %v2082, 0.0
      %v2091 = vpack.c.bf16 %v2087, %v2083
      %v2092 = vpack.c.bf16 %v2088, %v2084
      %v2093 = vpack.c.bf16 %v2089, %v2085
      %v2094 = vpack.c.bf16 %v2090, %v2086
      %v2095 = vld [vmem:[#allocation8] sm:$0xff]
      %v2096 = vld [vmem:[#allocation8 + $0x8] sm:$0xff]
      %v2097 = vld [vmem:[#allocation8 + $0x10] sm:$0xff]
      %v2098 = vld [vmem:[#allocation8 + $0x18] sm:$0xff]
      %v2099 = vld [vmem:[#allocation8 + $0x20] sm:$0xff]
      %v2100 = vld [vmem:[#allocation8 + $0x28] sm:$0xff]
      %v2101 = vld [vmem:[#allocation8 + $0x30] sm:$0xff]
      %v2102 = vld [vmem:[#allocation8 + $0x38] sm:$0xff]
      %v2103 = vld [vmem:[#allocation8 + $0x40] sm:$0xff]
      %v2104 = vld [vmem:[#allocation8 + $0x48] sm:$0xff]
      %v2105 = vld [vmem:[#allocation8 + $0x50] sm:$0xff]
      %v2106 = vld [vmem:[#allocation8 + $0x58] sm:$0xff]
      %v2107 = vld [vmem:[#allocation8 + $0x60] sm:$0xff]
      %v2108 = vld [vmem:[#allocation8 + $0x68] sm:$0xff]
      %v2109 = vld [vmem:[#allocation8 + $0x70] sm:$0xff]
      %v2110 = vld [vmem:[#allocation8 + $0x78] sm:$0xff]
      %v2111 = vld [vmem:[#allocation8 + $0x80] sm:$0xff]
      %v2112 = vld [vmem:[#allocation8 + $0x88] sm:$0xff]
      %v2113 = vld [vmem:[#allocation8 + $0x90] sm:$0xff]
      %v2114 = vld [vmem:[#allocation8 + $0x98] sm:$0xff]
      %v2115 = vld [vmem:[#allocation8 + $0xa0] sm:$0xff]
      %v2116 = vld [vmem:[#allocation8 + $0xa8] sm:$0xff]
      %v2117 = vld [vmem:[#allocation8 + $0xb0] sm:$0xff]
      %v2118 = vld [vmem:[#allocation8 + $0xb8] sm:$0xff]
      %v2119 = vld [vmem:[#allocation8 + $0xc0] sm:$0xff]
      %v2120 = vld [vmem:[#allocation8 + $0xc8] sm:$0xff]
      %v2121 = vld [vmem:[#allocation8 + $0xd0] sm:$0xff]
      %v2122 = vld [vmem:[#allocation8 + $0xd8] sm:$0xff]
      %v2123 = vld [vmem:[#allocation8 + $0xe0] sm:$0xff]
      %v2124 = vld [vmem:[#allocation8 + $0xe8] sm:$0xff]
      %v2125 = vld [vmem:[#allocation8 + $0xf0] sm:$0xff]
      %v2126 = vld [vmem:[#allocation8 + $0xf8] sm:$0xff]
      %v2127 = vld [vmem:[#allocation8 + $0x100] sm:$0xff]
      %v2128 = vld [vmem:[#allocation8 + $0x108] sm:$0xff]
      %v2129 = vld [vmem:[#allocation8 + $0x110] sm:$0xff]
      %v2130 = vld [vmem:[#allocation8 + $0x118] sm:$0xff]
      %v2131 = vld [vmem:[#allocation8 + $0x120] sm:$0xff]
      %v2132 = vld [vmem:[#allocation8 + $0x128] sm:$0xff]
      %v2133 = vld [vmem:[#allocation8 + $0x130] sm:$0xff]
      %v2134 = vld [vmem:[#allocation8 + $0x138] sm:$0xff]
      %v2135 = vld [vmem:[#allocation8 + $0x140] sm:$0xff]
      %v2136 = vld [vmem:[#allocation8 + $0x148] sm:$0xff]
      %v2137 = vld [vmem:[#allocation8 + $0x150] sm:$0xff]
      %v2138 = vld [vmem:[#allocation8 + $0x158] sm:$0xff]
      %v2139 = vld [vmem:[#allocation8 + $0x160] sm:$0xff]
      %v2140 = vld [vmem:[#allocation8 + $0x168] sm:$0xff]
      %v2141 = vld [vmem:[#allocation8 + $0x170] sm:$0xff]
      %v2142 = vld [vmem:[#allocation8 + $0x178] sm:$0xff]
      %v2143 = vld [vmem:[#allocation8 + $0x180] sm:$0xff]
      %v2144 = vld [vmem:[#allocation8 + $0x188] sm:$0xff]
      %v2145 = vld [vmem:[#allocation8 + $0x190] sm:$0xff]
      %v2146 = vld [vmem:[#allocation8 + $0x198] sm:$0xff]
      %v2147 = vld [vmem:[#allocation8 + $0x1a0] sm:$0xff]
      %v2148 = vld [vmem:[#allocation8 + $0x1a8] sm:$0xff]
      %v2149 = vld [vmem:[#allocation8 + $0x1b0] sm:$0xff]
      %v2150 = vld [vmem:[#allocation8 + $0x1b8] sm:$0xff]
      %v2151 = vld [vmem:[#allocation8 + $0x1c0] sm:$0xff]
      %v2152 = vld [vmem:[#allocation8 + $0x1c8] sm:$0xff]
      %v2153 = vld [vmem:[#allocation8 + $0x1d0] sm:$0xff]
      %v2154 = vld [vmem:[#allocation8 + $0x1d8] sm:$0xff]
      %v2155 = vld [vmem:[#allocation8 + $0x1e0] sm:$0xff]
      %v2156 = vld [vmem:[#allocation8 + $0x1e8] sm:$0xff]
      %v2157 = vld [vmem:[#allocation8 + $0x1f0] sm:$0xff]
      %v2158 = vld [vmem:[#allocation8 + $0x1f8] sm:$0xff]
      %v2159 = vld [vmem:[%s4] sm:$0x3]
      %v2161 = vlaneseq
      %v2162 = vshrl.u32 %v2161, 7
      %v2163 = vsub.s32 0, %v2162
      %v2164 = vrot.slane %v2159, %v2163
      %v2165 = vlaneseq
      %v2166 = vshrl.u32 %v2165, 7
      %v2167 = vsub.s32 1, %v2166
      %v2168 = vrot.slane %v2159, %v2167
      %v2235 = vunpack.c.l.b16 %v2095
      %v2236 = vunpack.c.h.b16 %v2095
      %v2237 = vunpack.c.l.b16 %v2096
      %v2238 = vunpack.c.h.b16 %v2096
      %v2239 = vunpack.c.l.b16 %v2097
      %v2240 = vunpack.c.h.b16 %v2097
      %v2241 = vunpack.c.l.b16 %v2098
      %v2242 = vunpack.c.h.b16 %v2098
      %v2243 = vunpack.c.l.b16 %v2099
      %v2244 = vunpack.c.h.b16 %v2099
      %v2245 = vunpack.c.l.b16 %v2100
      %v2246 = vunpack.c.h.b16 %v2100
      %v2247 = vunpack.c.l.b16 %v2101
      %v2248 = vunpack.c.h.b16 %v2101
      %v2249 = vunpack.c.l.b16 %v2102
      %v2250 = vunpack.c.h.b16 %v2102
      %v2251 = vunpack.c.l.b16 %v2103
      %v2252 = vunpack.c.h.b16 %v2103
      %v2253 = vunpack.c.l.b16 %v2104
      %v2254 = vunpack.c.h.b16 %v2104
      %v2255 = vunpack.c.l.b16 %v2105
      %v2256 = vunpack.c.h.b16 %v2105
      %v2257 = vunpack.c.l.b16 %v2106
      %v2258 = vunpack.c.h.b16 %v2106
      %v2259 = vunpack.c.l.b16 %v2107
      %v2260 = vunpack.c.h.b16 %v2107
      %v2261 = vunpack.c.l.b16 %v2108
      %v2262 = vunpack.c.h.b16 %v2108
      %v2263 = vunpack.c.l.b16 %v2109
      %v2264 = vunpack.c.h.b16 %v2109
      %v2265 = vunpack.c.l.b16 %v2110
      %v2266 = vunpack.c.h.b16 %v2110
      %v2267 = vunpack.c.l.b16 %v2111
      %v2268 = vunpack.c.h.b16 %v2111
      %v2269 = vunpack.c.l.b16 %v2112
      %v2270 = vunpack.c.h.b16 %v2112
      %v2271 = vunpack.c.l.b16 %v2113
      %v2272 = vunpack.c.h.b16 %v2113
      %v2273 = vunpack.c.l.b16 %v2114
      %v2274 = vunpack.c.h.b16 %v2114
      %v2275 = vunpack.c.l.b16 %v2115
      %v2276 = vunpack.c.h.b16 %v2115
      %v2277 = vunpack.c.l.b16 %v2116
      %v2278 = vunpack.c.h.b16 %v2116
      %v2279 = vunpack.c.l.b16 %v2117
      %v2280 = vunpack.c.h.b16 %v2117
      %v2281 = vunpack.c.l.b16 %v2118
      %v2282 = vunpack.c.h.b16 %v2118
      %v2283 = vunpack.c.l.b16 %v2119
      %v2284 = vunpack.c.h.b16 %v2119
      %v2285 = vunpack.c.l.b16 %v2120
      %v2286 = vunpack.c.h.b16 %v2120
      %v2287 = vunpack.c.l.b16 %v2121
      %v2288 = vunpack.c.h.b16 %v2121
      %v2289 = vunpack.c.l.b16 %v2122
      %v2290 = vunpack.c.h.b16 %v2122
      %v2291 = vunpack.c.l.b16 %v2123
      %v2292 = vunpack.c.h.b16 %v2123
      %v2293 = vunpack.c.l.b16 %v2124
      %v2294 = vunpack.c.h.b16 %v2124
      %v2295 = vunpack.c.l.b16 %v2125
      %v2296 = vunpack.c.h.b16 %v2125
      %v2297 = vunpack.c.l.b16 %v2126
      %v2298 = vunpack.c.h.b16 %v2126
      %v2299 = vunpack.c.l.b16 %v2127
      %v2300 = vunpack.c.h.b16 %v2127
      %v2301 = vunpack.c.l.b16 %v2128
      %v2302 = vunpack.c.h.b16 %v2128
      %v2303 = vunpack.c.l.b16 %v2129
      %v2304 = vunpack.c.h.b16 %v2129
      %v2305 = vunpack.c.l.b16 %v2130
      %v2306 = vunpack.c.h.b16 %v2130
      %v2307 = vunpack.c.l.b16 %v2131
      %v2308 = vunpack.c.h.b16 %v2131
      %v2309 = vunpack.c.l.b16 %v2132
      %v2310 = vunpack.c.h.b16 %v2132
      %v2311 = vunpack.c.l.b16 %v2133
      %v2312 = vunpack.c.h.b16 %v2133
      %v2313 = vunpack.c.l.b16 %v2134
      %v2314 = vunpack.c.h.b16 %v2134
      %v2315 = vunpack.c.l.b16 %v2135
      %v2316 = vunpack.c.h.b16 %v2135
      %v2317 = vunpack.c.l.b16 %v2136
      %v2318 = vunpack.c.h.b16 %v2136
      %v2319 = vunpack.c.l.b16 %v2137
      %v2320 = vunpack.c.h.b16 %v2137
      %v2321 = vunpack.c.l.b16 %v2138
      %v2322 = vunpack.c.h.b16 %v2138
      %v2323 = vunpack.c.l.b16 %v2139
      %v2324 = vunpack.c.h.b16 %v2139
      %v2325 = vunpack.c.l.b16 %v2140
      %v2326 = vunpack.c.h.b16 %v2140
      %v2327 = vunpack.c.l.b16 %v2141
      %v2328 = vunpack.c.h.b16 %v2141
      %v2329 = vunpack.c.l.b16 %v2142
      %v2330 = vunpack.c.h.b16 %v2142
      %v2331 = vunpack.c.l.b16 %v2143
      %v2332 = vunpack.c.h.b16 %v2143
      %v2333 = vunpack.c.l.b16 %v2144
      %v2334 = vunpack.c.h.b16 %v2144
      %v2335 = vunpack.c.l.b16 %v2145
      %v2336 = vunpack.c.h.b16 %v2145
      %v2337 = vunpack.c.l.b16 %v2146
      %v2338 = vunpack.c.h.b16 %v2146
      %v2339 = vunpack.c.l.b16 %v2147
      %v2340 = vunpack.c.h.b16 %v2147
      %v2341 = vunpack.c.l.b16 %v2148
      %v2342 = vunpack.c.h.b16 %v2148
      %v2343 = vunpack.c.l.b16 %v2149
      %v2344 = vunpack.c.h.b16 %v2149
      %v2345 = vunpack.c.l.b16 %v2150
      %v2346 = vunpack.c.h.b16 %v2150
      %v2347 = vunpack.c.l.b16 %v2151
      %v2348 = vunpack.c.h.b16 %v2151
      %v2349 = vunpack.c.l.b16 %v2152
      %v2350 = vunpack.c.h.b16 %v2152
      %v2351 = vunpack.c.l.b16 %v2153
      %v2352 = vunpack.c.h.b16 %v2153
      %v2353 = vunpack.c.l.b16 %v2154
      %v2354 = vunpack.c.h.b16 %v2154
      %v2355 = vunpack.c.l.b16 %v2155
      %v2356 = vunpack.c.h.b16 %v2155
      %v2357 = vunpack.c.l.b16 %v2156
      %v2358 = vunpack.c.h.b16 %v2156
      %v2359 = vunpack.c.l.b16 %v2157
      %v2360 = vunpack.c.h.b16 %v2157
      %v2361 = vunpack.c.l.b16 %v2158
      %v2362 = vunpack.c.h.b16 %v2158
      %v2363 = vpack.c.b16 %v2237, %v2235
      %v2364 = vpack.c.b16 %v2238, %v2236
      %v2365 = vpack.c.b16 %v2241, %v2239
      %v2366 = vpack.c.b16 %v2242, %v2240
      %v2367 = vpack.c.b16 %v2245, %v2243
      %v2368 = vpack.c.b16 %v2246, %v2244
      %v2369 = vpack.c.b16 %v2249, %v2247
      %v2370 = vpack.c.b16 %v2250, %v2248
      %v2371 = vpack.c.b16 %v2253, %v2251
      %v2372 = vpack.c.b16 %v2254, %v2252
      %v2373 = vpack.c.b16 %v2257, %v2255
      %v2374 = vpack.c.b16 %v2258, %v2256
      %v2375 = vpack.c.b16 %v2261, %v2259
      %v2376 = vpack.c.b16 %v2262, %v2260
      %v2377 = vpack.c.b16 %v2265, %v2263
      %v2378 = vpack.c.b16 %v2266, %v2264
      %v2379 = vpack.c.b16 %v2269, %v2267
      %v2380 = vpack.c.b16 %v2270, %v2268
      %v2381 = vpack.c.b16 %v2273, %v2271
      %v2382 = vpack.c.b16 %v2274, %v2272
      %v2383 = vpack.c.b16 %v2277, %v2275
      %v2384 = vpack.c.b16 %v2278, %v2276
      %v2385 = vpack.c.b16 %v2281, %v2279
      %v2386 = vpack.c.b16 %v2282, %v2280
      %v2387 = vpack.c.b16 %v2285, %v2283
      %v2388 = vpack.c.b16 %v2286, %v2284
      %v2389 = vpack.c.b16 %v2289, %v2287
      %v2390 = vpack.c.b16 %v2290, %v2288
      %v2391 = vpack.c.b16 %v2293, %v2291
      %v2392 = vpack.c.b16 %v2294, %v2292
      %v2393 = vpack.c.b16 %v2297, %v2295
      %v2394 = vpack.c.b16 %v2298, %v2296
      %v2395 = vpack.c.b16 %v2301, %v2299
      %v2396 = vpack.c.b16 %v2302, %v2300
      %v2397 = vpack.c.b16 %v2305, %v2303
      %v2398 = vpack.c.b16 %v2306, %v2304
      %v2399 = vpack.c.b16 %v2309, %v2307
      %v2400 = vpack.c.b16 %v2310, %v2308
      %v2401 = vpack.c.b16 %v2313, %v2311
      %v2402 = vpack.c.b16 %v2314, %v2312
      %v2403 = vpack.c.b16 %v2317, %v2315
      %v2404 = vpack.c.b16 %v2318, %v2316
      %v2405 = vpack.c.b16 %v2321, %v2319
      %v2406 = vpack.c.b16 %v2322, %v2320
      %v2407 = vpack.c.b16 %v2325, %v2323
      %v2408 = vpack.c.b16 %v2326, %v2324
      %v2409 = vpack.c.b16 %v2329, %v2327
      %v2410 = vpack.c.b16 %v2330, %v2328
      %v2411 = vpack.c.b16 %v2333, %v2331
      %v2412 = vpack.c.b16 %v2334, %v2332
      %v2413 = vpack.c.b16 %v2337, %v2335
      %v2414 = vpack.c.b16 %v2338, %v2336
      %v2415 = vpack.c.b16 %v2341, %v2339
      %v2416 = vpack.c.b16 %v2342, %v2340
      %v2417 = vpack.c.b16 %v2345, %v2343
      %v2418 = vpack.c.b16 %v2346, %v2344
      %v2419 = vpack.c.b16 %v2349, %v2347
      %v2420 = vpack.c.b16 %v2350, %v2348
      %v2421 = vpack.c.b16 %v2353, %v2351
      %v2422 = vpack.c.b16 %v2354, %v2352
      %v2423 = vpack.c.b16 %v2357, %v2355
      %v2424 = vpack.c.b16 %v2358, %v2356
      %v2425 = vpack.c.b16 %v2361, %v2359
      %v2426 = vpack.c.b16 %v2362, %v2360
      %2491 = vmatprep.subr.bf16.mxu0 %v2364
      %2492 = vmatpush1.bf16.msra.mxu0 %v2363
      %2493 = vmatprep.subr.bf16.mxu0 %v2366
      %2494 = vmatpush1.bf16.msra.mxu0 %v2365
      %2495 = vmatprep.subr.bf16.mxu0 %v2368
      %2496 = vmatpush1.bf16.msra.mxu0 %v2367
      %2497 = vmatprep.subr.bf16.mxu0 %v2370
      %2498 = vmatpush1.bf16.msra.mxu0 %v2369
      %2499 = vmatprep.subr.bf16.mxu0 %v2372
      %2500 = vmatpush1.bf16.msra.mxu0 %v2371
      %2501 = vmatprep.subr.bf16.mxu0 %v2374
      %2502 = vmatpush1.bf16.msra.mxu0 %v2373
      %2503 = vmatprep.subr.bf16.mxu0 %v2376
      %2504 = vmatpush1.bf16.msra.mxu0 %v2375
      %2505 = vmatprep.subr.bf16.mxu0 %v2378
      %2506 = vmatpush1.bf16.msra.mxu0 %v2377
      %2507 = vmatprep.subr.bf16.mxu0 %v2380
      %2508 = vmatpush1.bf16.msra.mxu0 %v2379
      %2509 = vmatprep.subr.bf16.mxu0 %v2382
      %2510 = vmatpush1.bf16.msra.mxu0 %v2381
      %2511 = vmatprep.subr.bf16.mxu0 %v2384
      %2512 = vmatpush1.bf16.msra.mxu0 %v2383
      %2513 = vmatprep.subr.bf16.mxu0 %v2386
      %2514 = vmatpush1.bf16.msra.mxu0 %v2385
      %2515 = vmatprep.subr.bf16.mxu0 %v2388
      %2516 = vmatpush1.bf16.msra.mxu0 %v2387
      %2517 = vmatprep.subr.bf16.mxu0 %v2390
      %2518 = vmatpush1.bf16.msra.mxu0 %v2389
      %2519 = vmatprep.subr.bf16.mxu0 %v2392
      %2520 = vmatpush1.bf16.msra.mxu0 %v2391
      %2521 = vmatprep.subr.bf16.mxu0 %v2394
      %2522 = vmatpush1.bf16.msra.mxu0 %v2393
      %2523 = vmatprep.mubr.bf16.mxu0 %v2092
      %2524 = vmatmul.mubr.bf16.gmra.mrb[0].mxu0 %v2091
      %v2525 = vpop.f32.mrb[0].mxu0
      %v2526 = vadd.f32 %v2164, %v2525
      %v2527 = vpop.f32.mrb[0].mxu0
      %v2528 = vadd.f32 %v2168, %v2527
      %v2529 = vpop.f32.mrb[0].mxu0
      %v2530 = vadd.f32 %v2164, %v2529
      %v2531 = vpop.f32.mrb[0].mxu0
      %v2532 = vadd.f32 %v2168, %v2531
      %2533 = vdwg.mxu0
      %2534 = vmatprep.subr.bf16.mxu0 %v2396
      %2535 = vmatpush1.bf16.msra.mxu0 %v2395
      %2536 = vmatprep.subr.bf16.mxu0 %v2398
      %2537 = vmatpush1.bf16.msra.mxu0 %v2397
      %2538 = vmatprep.subr.bf16.mxu0 %v2400
      %2539 = vmatpush1.bf16.msra.mxu0 %v2399
      %2540 = vmatprep.subr.bf16.mxu0 %v2402
      %2541 = vmatpush1.bf16.msra.mxu0 %v2401
      %2542 = vmatprep.subr.bf16.mxu0 %v2404
      %2543 = vmatpush1.bf16.msra.mxu0 %v2403
      %2544 = vmatprep.subr.bf16.mxu0 %v2406
      %2545 = vmatpush1.bf16.msra.mxu0 %v2405
      %2546 = vmatprep.subr.bf16.mxu0 %v2408
      %2547 = vmatpush1.bf16.msra.mxu0 %v2407
      %2548 = vmatprep.subr.bf16.mxu0 %v2410
      %2549 = vmatpush1.bf16.msra.mxu0 %v2409
      %2550 = vmatprep.subr.bf16.mxu0 %v2412
      %2551 = vmatpush1.bf16.msra.mxu0 %v2411
      %2552 = vmatprep.subr.bf16.mxu0 %v2414
      %2553 = vmatpush1.bf16.msra.mxu0 %v2413
      %2554 = vmatprep.subr.bf16.mxu0 %v2416
      %2555 = vmatpush1.bf16.msra.mxu0 %v2415
      %2556 = vmatprep.subr.bf16.mxu0 %v2418
      %2557 = vmatpush1.bf16.msra.mxu0 %v2417
      %2558 = vmatprep.subr.bf16.mxu0 %v2420
      %2559 = vmatpush1.bf16.msra.mxu0 %v2419
      %2560 = vmatprep.subr.bf16.mxu0 %v2422
      %2561 = vmatpush1.bf16.msra.mxu0 %v2421
      %2562 = vmatprep.subr.bf16.mxu0 %v2424
      %2563 = vmatpush1.bf16.msra.mxu0 %v2423
      %2564 = vmatprep.subr.bf16.mxu0 %v2426
      %2565 = vmatpush1.bf16.msra.mxu0 %v2425
      %2566 = vmatprep.mubr.bf16.mxu0 %v2094
      %2567 = vmatmul.mubr.bf16.gmra.mrb[0].mxu0 %v2093
      %v2568 = vpop.f32.mrb[0].mxu0
      %v2569 = vadd.f32 %v2526, %v2568
      %v2570 = vpop.f32.mrb[0].mxu0
      %v2571 = vadd.f32 %v2528, %v2570
      %v2572 = vpop.f32.mrb[0].mxu0
      %v2573 = vadd.f32 %v2530, %v2572
      %v2574 = vpop.f32.mrb[0].mxu0
      %v2575 = vadd.f32 %v2532, %v2574
      %2576 = vdwg.mxu0
      %v2577 = vmax.f32 %v2569, 0.0
      %v2578 = vmax.f32 %v2571, 0.0
      %v2579 = vmax.f32 %v2573, 0.0
      %v2580 = vmax.f32 %v2575, 0.0
      %v2581 = vpack.c.bf16 %v2579, %v2577
      %v2582 = vpack.c.bf16 %v2580, %v2578
      %v2583 = vld [vmem:[#allocation9] sm:$0xf]
      %v2584 = vld [vmem:[#allocation9 + $0x4] sm:$0xf]
      %v2585 = vld [vmem:[#allocation9 + $0x8] sm:$0xf]
      %v2586 = vld [vmem:[#allocation9 + $0xc] sm:$0xf]
      %v2587 = vld [vmem:[#allocation9 + $0x10] sm:$0xf]
      %v2588 = vld [vmem:[#allocation9 + $0x14] sm:$0xf]
      %v2589 = vld [vmem:[#allocation9 + $0x18] sm:$0xf]
      %v2590 = vld [vmem:[#allocation9 + $0x1c] sm:$0xf]
      %v2591 = vld [vmem:[#allocation9 + $0x20] sm:$0xf]
      %v2592 = vld [vmem:[#allocation9 + $0x24] sm:$0xf]
      %v2593 = vld [vmem:[#allocation9 + $0x28] sm:$0xf]
      %v2594 = vld [vmem:[#allocation9 + $0x2c] sm:$0xf]
      %v2595 = vld [vmem:[#allocation9 + $0x30] sm:$0xf]
      %v2596 = vld [vmem:[#allocation9 + $0x34] sm:$0xf]
      %v2597 = vld [vmem:[#allocation9 + $0x38] sm:$0xf]
      %v2598 = vld [vmem:[#allocation9 + $0x3c] sm:$0xf]
      %v2599 = vld [vmem:[#allocation9 + $0x40] sm:$0xf]
      %v2600 = vld [vmem:[#allocation9 + $0x44] sm:$0xf]
      %v2601 = vld [vmem:[#allocation9 + $0x48] sm:$0xf]
      %v2602 = vld [vmem:[#allocation9 + $0x4c] sm:$0xf]
      %v2603 = vld [vmem:[#allocation9 + $0x50] sm:$0xf]
      %v2604 = vld [vmem:[#allocation9 + $0x54] sm:$0xf]
      %v2605 = vld [vmem:[#allocation9 + $0x58] sm:$0xf]
      %v2606 = vld [vmem:[#allocation9 + $0x5c] sm:$0xf]
      %v2607 = vld [vmem:[#allocation9 + $0x60] sm:$0xf]
      %v2608 = vld [vmem:[#allocation9 + $0x64] sm:$0xf]
      %v2609 = vld [vmem:[#allocation9 + $0x68] sm:$0xf]
      %v2610 = vld [vmem:[#allocation9 + $0x6c] sm:$0xf]
      %v2611 = vld [vmem:[#allocation9 + $0x70] sm:$0xf]
      %v2612 = vld [vmem:[#allocation9 + $0x74] sm:$0xf]
      %v2613 = vld [vmem:[#allocation9 + $0x78] sm:$0xf]
      %v2614 = vld [vmem:[#allocation9 + $0x7c] sm:$0xf]
      %v2615 = vld [vmem:[%s6] sm:$0x1]
      %v2617 = vlaneseq
      %v2618 = vshrl.u32 %v2617, 7
      %v2619 = vsub.s32 0, %v2618
      %v2620 = vrot.slane %v2615, %v2619
      %v2654 = vunpack.c.l.b16 %v2583
      %v2655 = vunpack.c.l.b16 %v2584
      %v2656 = vunpack.c.l.b16 %v2585
      %v2657 = vunpack.c.l.b16 %v2586
      %v2658 = vunpack.c.l.b16 %v2587
      %v2659 = vunpack.c.l.b16 %v2588
      %v2660 = vunpack.c.l.b16 %v2589
      %v2661 = vunpack.c.l.b16 %v2590
      %v2662 = vunpack.c.l.b16 %v2591
      %v2663 = vunpack.c.l.b16 %v2592
      %v2664 = vunpack.c.l.b16 %v2593
      %v2665 = vunpack.c.l.b16 %v2594
      %v2666 = vunpack.c.l.b16 %v2595
      %v2667 = vunpack.c.l.b16 %v2596
      %v2668 = vunpack.c.l.b16 %v2597
      %v2669 = vunpack.c.l.b16 %v2598
      %v2670 = vunpack.c.l.b16 %v2599
      %v2671 = vunpack.c.l.b16 %v2600
      %v2672 = vunpack.c.l.b16 %v2601
      %v2673 = vunpack.c.l.b16 %v2602
      %v2674 = vunpack.c.l.b16 %v2603
      %v2675 = vunpack.c.l.b16 %v2604
      %v2676 = vunpack.c.l.b16 %v2605
      %v2677 = vunpack.c.l.b16 %v2606
      %v2678 = vunpack.c.l.b16 %v2607
      %v2679 = vunpack.c.l.b16 %v2608
      %v2680 = vunpack.c.l.b16 %v2609
      %v2681 = vunpack.c.l.b16 %v2610
      %v2682 = vunpack.c.l.b16 %v2611
      %v2683 = vunpack.c.l.b16 %v2612
      %v2684 = vunpack.c.l.b16 %v2613
      %v2685 = vunpack.c.l.b16 %v2614
      %v2686 = vpack.c.b16 %v2655, %v2654
      %v2687 = vpack.c.b16 %v2657, %v2656
      %v2688 = vpack.c.b16 %v2659, %v2658
      %v2689 = vpack.c.b16 %v2661, %v2660
      %v2690 = vpack.c.b16 %v2663, %v2662
      %v2691 = vpack.c.b16 %v2665, %v2664
      %v2692 = vpack.c.b16 %v2667, %v2666
      %v2693 = vpack.c.b16 %v2669, %v2668
      %v2694 = vpack.c.b16 %v2671, %v2670
      %v2695 = vpack.c.b16 %v2673, %v2672
      %v2696 = vpack.c.b16 %v2675, %v2674
      %v2697 = vpack.c.b16 %v2677, %v2676
      %v2698 = vpack.c.b16 %v2679, %v2678
      %v2699 = vpack.c.b16 %v2681, %v2680
      %v2700 = vpack.c.b16 %v2683, %v2682
      %v2701 = vpack.c.b16 %v2685, %v2684
      %2718 = vmatprep.subr.bf16.mxu0 0
      %2719 = vmatpush1.bf16.msra.mxu0 %v2686
      %2720 = vmatprep.subr.bf16.mxu0 0
      %2721 = vmatpush1.bf16.msra.mxu0 %v2687
      %2722 = vmatprep.subr.bf16.mxu0 0
      %2723 = vmatpush1.bf16.msra.mxu0 %v2688
      %2724 = vmatprep.subr.bf16.mxu0 0
      %2725 = vmatpush1.bf16.msra.mxu0 %v2689
      %2726 = vmatprep.subr.bf16.mxu0 0
      %2727 = vmatpush1.bf16.msra.mxu0 %v2690
      %2728 = vmatprep.subr.bf16.mxu0 0
      %2729 = vmatpush1.bf16.msra.mxu0 %v2691
      %2730 = vmatprep.subr.bf16.mxu0 0
      %2731 = vmatpush1.bf16.msra.mxu0 %v2692
      %2732 = vmatprep.subr.bf16.mxu0 0
      %2733 = vmatpush1.bf16.msra.mxu0 %v2693
      %2734 = vmatprep.subr.bf16.mxu0 0
      %2735 = vmatpush1.bf16.msra.mxu0 %v2694
      %2736 = vmatprep.subr.bf16.mxu0 0
      %2737 = vmatpush1.bf16.msra.mxu0 %v2695
      %2738 = vmatprep.subr.bf16.mxu0 0
      %2739 = vmatpush1.bf16.msra.mxu0 %v2696
      %2740 = vmatprep.subr.bf16.mxu0 0
      %2741 = vmatpush1.bf16.msra.mxu0 %v2697
      %2742 = vmatprep.subr.bf16.mxu0 0
      %2743 = vmatpush1.bf16.msra.mxu0 %v2698
      %2744 = vmatprep.subr.bf16.mxu0 0
      %2745 = vmatpush1.bf16.msra.mxu0 %v2699
      %2746 = vmatprep.subr.bf16.mxu0 0
      %2747 = vmatpush1.bf16.msra.mxu0 %v2700
      %2748 = vmatprep.subr.bf16.mxu0 0
      %2749 = vmatpush1.bf16.msra.mxu0 %v2701
      %2750 = vmatprep.mubr.bf16.mxu0 %v2582
      %2751 = vmatmul.mubr.bf16.gmra.mrb[0].mxu0 %v2581
      %v2752 = vpop.f32.mrb[0].mxu0
      %v2753 = vadd.f32 %v2620, %v2752
      %v2754 = vpop.f32.mrb[0].mxu0
      %v2755 = vpop.f32.mrb[0].mxu0
      %v2756 = vadd.f32 %v2620, %v2755
      %v2757 = vpop.f32.mrb[0].mxu0
      %2758 = vdwg.mxu0
      %v2759 = vmax.f32 %v2753, 0.0
      %v2760 = vmax.f32 %v2756, 0.0
      %v2761 = vpack.c.bf16 %v2760, %v2759
      %v2762 = vld [vmem:[#allocation11] sm:$0xf]
      %v2763 = vld [vmem:[#allocation11 + $0x4] sm:$0xf]
      %v2764 = vld [vmem:[#allocation11 + $0x8] sm:$0xf]
      %v2765 = vld [vmem:[#allocation11 + $0xc] sm:$0xf]
      %v2766 = vld [vmem:[#allocation11 + $0x10] sm:$0xf]
      %v2767 = vld [vmem:[#allocation11 + $0x14] sm:$0xf]
      %v2768 = vld [vmem:[#allocation11 + $0x18] sm:$0xf]
      %v2769 = vld [vmem:[#allocation11 + $0x1c] sm:$0xf]
      %v2770 = vld [vmem:[#allocation11 + $0x20] sm:$0xf]
      %v2771 = vld [vmem:[#allocation11 + $0x24] sm:$0xf]
      %v2772 = vld [vmem:[#allocation11 + $0x28] sm:$0xf]
      %v2773 = vld [vmem:[#allocation11 + $0x2c] sm:$0xf]
      %v2774 = vld [vmem:[#allocation11 + $0x30] sm:$0xf]
      %v2775 = vld [vmem:[#allocation11 + $0x34] sm:$0xf]
      %v2776 = vld [vmem:[#allocation11 + $0x38] sm:$0xf]
      %v2777 = vld [vmem:[#allocation11 + $0x3c] sm:$0xf]
      %v2778 = vld [vmem:[%s8] sm:$0x1]
      %v2780 = vlaneseq
      %v2781 = vshrl.u32 %v2780, 7
      %v2782 = vsub.s32 0, %v2781
      %v2783 = vrot.slane %v2778, %v2782
      %v2801 = vunpack.c.l.b16 %v2762
      %v2802 = vunpack.c.l.b16 %v2763
      %v2803 = vunpack.c.l.b16 %v2764
      %v2804 = vunpack.c.l.b16 %v2765
      %v2805 = vunpack.c.l.b16 %v2766
      %v2806 = vunpack.c.l.b16 %v2767
      %v2807 = vunpack.c.l.b16 %v2768
      %v2808 = vunpack.c.l.b16 %v2769
      %v2809 = vunpack.c.l.b16 %v2770
      %v2810 = vunpack.c.l.b16 %v2771
      %v2811 = vunpack.c.l.b16 %v2772
      %v2812 = vunpack.c.l.b16 %v2773
      %v2813 = vunpack.c.l.b16 %v2774
      %v2814 = vunpack.c.l.b16 %v2775
      %v2815 = vunpack.c.l.b16 %v2776
      %v2816 = vunpack.c.l.b16 %v2777
      %v2817 = vpack.c.b16 %v2802, %v2801
      %v2818 = vpack.c.b16 %v2804, %v2803
      %v2819 = vpack.c.b16 %v2806, %v2805
      %v2820 = vpack.c.b16 %v2808, %v2807
      %v2821 = vpack.c.b16 %v2810, %v2809
      %v2822 = vpack.c.b16 %v2812, %v2811
      %v2823 = vpack.c.b16 %v2814, %v2813
      %v2824 = vpack.c.b16 %v2816, %v2815
      %2833 = vmatprep.subr.bf16.mxu0 0
      %2834 = vmatpush1.bf16.msra.mxu0 %v2817
      %2835 = vmatprep.subr.bf16.mxu0 0
      %2836 = vmatpush1.bf16.msra.mxu0 %v2818
      %2837 = vmatprep.subr.bf16.mxu0 0
      %2838 = vmatpush1.bf16.msra.mxu0 %v2819
      %2839 = vmatprep.subr.bf16.mxu0 0
      %2840 = vmatpush1.bf16.msra.mxu0 %v2820
      %2841 = vmatprep.subr.bf16.mxu0 0
      %2842 = vmatpush1.bf16.msra.mxu0 %v2821
      %2843 = vmatprep.subr.bf16.mxu0 0
      %2844 = vmatpush1.bf16.msra.mxu0 %v2822
      %2845 = vmatprep.subr.bf16.mxu0 0
      %2846 = vmatpush1.bf16.msra.mxu0 %v2823
      %2847 = vmatprep.subr.bf16.mxu0 0
      %2848 = vmatpush1.bf16.msra.mxu0 %v2824
      %2849 = vmatprep.subr.bf16.mxu0 0
      %2850 = vmatpush1.bf16.msra.mxu0 0
      %2851 = vmatprep.subr.bf16.mxu0 0
      %2852 = vmatpush1.bf16.msra.mxu0 0
      %2853 = vmatprep.subr.bf16.mxu0 0
      %2854 = vmatpush1.bf16.msra.mxu0 0
      %2855 = vmatprep.subr.bf16.mxu0 0
      %2856 = vmatpush1.bf16.msra.mxu0 0
      %2857 = vmatprep.subr.bf16.mxu0 0
      %2858 = vmatpush1.bf16.msra.mxu0 0
      %2859 = vmatprep.subr.bf16.mxu0 0
      %2860 = vmatpush1.bf16.msra.mxu0 0
      %2861 = vmatprep.subr.bf16.mxu0 0
      %2862 = vmatpush1.bf16.msra.mxu0 0
      %2863 = vmatprep.subr.bf16.mxu0 0
      %2864 = vmatpush1.bf16.msra.mxu0 0
      %2865 = vmatprep.mubr.bf16.mxu0 0
      %2866 = vmatmul.mubr.bf16.gmra.mrb[0].mxu0 %v2761
      %v2867 = vpop.f32.mrb[0].mxu0
      %v2868 = vadd.f32 %v2783, %v2867
      %v2869 = vpop.f32.mrb[0].mxu0
      %v2870 = vpop.f32.mrb[0].mxu0
      %v2871 = vadd.f32 %v2783, %v2870
      %v2872 = vpop.f32.mrb[0].mxu0
      %2873 = vdwg.mxu0
      %2874 = vst [vmem:[#allocation12] sm:$0xff] %v2868
      %2875 = vst [vmem:[#allocation12 + $0x8] sm:$0xff] %v2871
    $region65: #{tpu_custom_call.1} parent=1 // pred_fallthru
      _
    // Predicated region
    $region66: #{tpu_custom_call.1} parent=1 // pred_check
      _
    $region67: #{tpu_custom_call.1} parent=1 // pred_check_branch
      %2877 = sbr.rel (0) target = $region69
    $region68: #{tpu_custom_call.1} parent=1 // pred_region
      %s2879 = ssub.s32 256, 256
      %2880 = vsyncadd [#allocation5], %s2879
      %s2881 = sshll.u32 [#allocation12], 4
      %s2882 = int_to_ptr.vmem [resolvable:$true] %s2881
      %2887 = dma.vmem_to_hbm [thread:$0]  %s2882, 256, %s9, [#allocation5], 128, 128, 8
    $region69: #{tpu_custom_call.1} parent=1 // pred_fallthru
      _
    // Predicated region
    $region70: #{tpu_custom_call.1} parent=1 // pred_check
      _
    $region71: #{tpu_custom_call.1} parent=1 // pred_check_branch
      %2889 = sbr.rel (0) target = $region73
    $region72: #{tpu_custom_call.1} parent=1 // pred_region
      %2890 = dma.done [#allocation5], 256
    $region73: #{tpu_custom_call.1} parent=1 // pred_fallthru
      _
    %2891 = vsyncpa [#allocation4], 1
    %2892 = vsyncpa [#allocation7], 1
    %2893 = vsyncpa [#allocation10], 1
    %2894 = vsyncpa [#allocation5], 1

</llo_original>
